<compile_context>
chip_gen: v7x
topology: tpu7x:2x2x1
jax: 0.10.0
libtpu: 0.0.40
codegen_flags: <defaults>
</compile_context>

<pallas_src>
import jax
import jax.numpy as jnp
from jax.experimental import pallas as pl
from jax.experimental.pallas import tpu as pltpu


_LANE = 128  # lane width: final layer / output / hidden dim padded to this


def _inrf_kernel(
    x_ref,
    w1_ref, w2_ref, w3_ref,
    wf1_ref, b1_ref,
    wf2_ref, b2_ref,
    wf3_ref, b3_ref,
    wf4_ref, b4_ref,
    wf5_ref, b5_ref,
    wf6_ref, b6_ref,
    wf7_ref, b7_ref,
    wf8_ref, b8_ref,
    out_ref,
):
    bf16 = jnp.bfloat16

    x_bf = x_ref[...]                                   # bf16 [tile_n, F]

    # --- mask branch (bias-free linears): bf16 operands, f32 accumulation ---
    m = jnp.dot(x_bf, w1_ref[...], preferred_element_type=jnp.float32)
    m = jnp.maximum(m, 0.0)                             # relu1
    m = jnp.dot(m.astype(bf16), w2_ref[...], preferred_element_type=jnp.float32)
    m = jnp.maximum(m, 0.0)                             # relu2 (as in torch code)
    m = jnp.dot(m.astype(bf16), w3_ref[...], preferred_element_type=jnp.float32)
    # NOTE: no relu after linear3 in the reference forward.

    # elementwise gate: keep m in f32, upcast x once, round result to bf16
    filtered = (m * x_bf.astype(jnp.float32)).astype(bf16)

    # --- MLP trunk: relu after fc1..fc7, none after fc8 ---
    def layer(h_bf, w_ref, b_ref):
        y = jnp.dot(h_bf, w_ref[...], preferred_element_type=jnp.float32) + b_ref[...]
        return jnp.maximum(y, 0.0).astype(bf16)

    h = layer(filtered, wf1_ref, b1_ref)
    h = layer(h, wf2_ref, b2_ref)
    h = layer(h, wf3_ref, b3_ref)
    h = layer(h, wf4_ref, b4_ref)
    h = layer(h, wf5_ref, b5_ref)
    h = layer(h, wf6_ref, b6_ref)
    h = layer(h, wf7_ref, b7_ref)

    out = jnp.dot(h, wf8_ref[...], preferred_element_type=jnp.float32) + b8_ref[...]

    out_ref[...] = out.astype(out_ref.dtype)            # bf16 store (lane-dense)


def _round_up(x, m):
    return ((x + m - 1) // m) * m


def _choose_tile_n(n, target, min_blocks=2):
    """Pick a batch tile: <= target, multiple of 64, and (for non-tiny N) small
    enough that the grid has >= min_blocks steps (keeps both v7x cores busy
    and bounds padded-row waste for small N)."""
    target = max(64, (target // 64) * 64)
    per_block = _round_up(pl.cdiv(n, min_blocks), 64)
    return min(target, per_block)


def robustified_inrf_forward(coords, params, *, tile_n=2048):
    """coords: [N, F] float32.  params: dict of pre-transposed f32 weights/biases.

    tile_n is a free perf knob. At the default 2048 the live VMEM
    (bf16 I/O double buffers + ~5 live [tile_n,128] f32 slabs + ~0.4 MiB of
    weights) is ~6 MiB, comfortably under every generation's budget (v7x has
    64 MiB physical). 1024-4096 is a reasonable sweep range; stay <= ~4096 on
    v7x so the grid keeps >= 2 blocks per core for typical N.
    """
    N, F = coords.shape
    H = params["wf2"].shape[0]
    O = params["wf8"].shape[1]
    H_pad = max(_LANE, _round_up(H, _LANE))
    O_pad = max(_LANE, _round_up(O, _LANE))

    bf16 = jnp.bfloat16

    # bf16 weights (f32 accumulation happens on the MXU); zero-pad hidden and
    # output dims to full lanes. Zero rows/cols + zero padded biases are exact
    # through ReLU, so semantics are unchanged.
    def pad_w(w, rows, cols):
        buf = jnp.zeros((rows, cols), dtype=bf16)
        return buf.at[: w.shape[0], : w.shape[1]].set(w.astype(bf16))

    def pad_b(b, cols):
        buf = jnp.zeros((1, cols), dtype=jnp.float32)
        return buf.at[:, : b.shape[1]].set(b.astype(jnp.float32))

    w1 = params["w1"].astype(bf16)
    w2 = params["w2"].astype(bf16)
    w3 = params["w3"].astype(bf16)
    wfs = [pad_w(params["wf1"], F, H_pad)]
    wfs += [pad_w(params[f"wf{i}"], H_pad, H_pad) for i in range(2, 8)]
    bs = [pad_b(params[f"b{i}"], H_pad) for i in range(1, 8)]
    wf8 = pad_w(params["wf8"], H_pad, O_pad)
    b8 = pad_b(params["b8"], O_pad)

    # Generation-aware batch tiling: >= 2 blocks where possible, low row padding.
    tile = _choose_tile_n(N, tile_n)
    n_blocks = pl.cdiv(N, tile)
    N_pad = n_blocks * tile

    # bf16 input halves input HBM traffic (x was already rounded to bf16 for
    # every matmul; the m*x gate now also sees bf16-rounded x).
    x = coords.astype(bf16)
    if N_pad != N:
        x = jnp.pad(x, ((0, N_pad - N), (0, 0)))

    # Full-array blocks for all weights/biases (constant index maps => DMA'd
    # once, VMEM-resident); batch dimension tiled across the grid.
    def rep(shape):
        return pl.BlockSpec(shape, lambda i: (0, 0))

    in_specs = [
        pl.BlockSpec((tile, F), lambda i: (i, 0)),          # x tile (bf16)
        rep((F, F)), rep((F, F)), rep((F, F)),              # W1, W2, W3
        rep((F, H_pad)), rep((1, H_pad)),                   # fc1
        rep((H_pad, H_pad)), rep((1, H_pad)),               # fc2
        rep((H_pad, H_pad)), rep((1, H_pad)),               # fc3
        rep((H_pad, H_pad)), rep((1, H_pad)),               # fc4
        rep((H_pad, H_pad)), rep((1, H_pad)),               # fc5
        rep((H_pad, H_pad)), rep((1, H_pad)),               # fc6
        rep((H_pad, H_pad)), rep((1, H_pad)),               # fc7
        rep((H_pad, O_pad)), rep((1, O_pad)),               # fc8 (lane-padded)
    ]
    out_specs = pl.BlockSpec((tile, O_pad), lambda i: (i, 0))

    # Advisory cost estimate for XLA's scheduler (bf16 activation I/O now).
    mm_elems = 3 * F * F + F * H_pad + 6 * H_pad * H_pad + H_pad * O_pad
    flops = 2 * N_pad * mm_elems
    weight_bytes = mm_elems * 2 + (7 * H_pad + O_pad) * 4
    bytes_accessed = N_pad * F * 2 + N_pad * O_pad * 2 + weight_bytes
    cost = pl.CostEstimate(flops=flops, transcendentals=0,
                           bytes_accessed=bytes_accessed)

    fn = pl.pallas_call(
        _inrf_kernel,
        out_shape=jax.ShapeDtypeStruct((N_pad, O_pad), bf16),   # bf16 output DMA
        grid=(n_blocks,),
        in_specs=in_specs,
        out_specs=out_specs,
        compiler_params=pltpu.CompilerParams(
            dimension_semantics=("parallel",),
            vmem_limit_bytes=48 * 1024 * 1024,   # safe on v5e/v6e/v7x
        ),
        cost_estimate=cost,
    )

    args = (x, w1, w2, w3,
            wfs[0], bs[0], wfs[1], bs[1], wfs[2], bs[2], wfs[3], bs[3],
            wfs[4], bs[4], wfs[5], bs[5], wfs[6], bs[6],
            wf8, b8)
    out = fn(*args)
    return out[:N, :O].astype(coords.dtype)


def init_params(key, ff_out_features, hidden_features, output_dim):
    """Deterministic init mimicking nn.Linear default U(-1/sqrt(in), 1/sqrt(in)).
    Weights are stored pre-transposed as [in, out], in f32."""
    F, H, O = ff_out_features, hidden_features, output_dim
    keys = jax.random.split(key, 32)
    ki = iter(range(32))

    def lin(fan_in, fan_out, with_bias):
        bound = 1.0 / jnp.sqrt(jnp.float32(fan_in))
        w = jax.random.uniform(keys[next(ki)], (fan_in, fan_out),
                               minval=-bound, maxval=bound, dtype=jnp.float32)
        if not with_bias:
            return w, None
        b = jax.random.uniform(keys[next(ki)], (1, fan_out),
                               minval=-bound, maxval=bound, dtype=jnp.float32)
        return w, b

    p = {}
    p["w1"], _ = lin(F, F, False)
    p["w2"], _ = lin(F, F, False)
    p["w3"], _ = lin(F, F, False)
    p["wf1"], p["b1"] = lin(F, H, True)
    for idx in range(2, 8):
        p[f"wf{idx}"], p[f"b{idx}"] = lin(H, H, True)
    p["wf8"], p["b8"] = lin(H, O, True)
    return p


def reference_forward_f32(coords, p):
    """Pure-f32 JAX reference matching the PyTorch forward exactly."""
    x = coords
    m = jnp.maximum(x @ p["w1"], 0.0)
    m = jnp.maximum(m @ p["w2"], 0.0)
    m = m @ p["w3"]
    h = m * x
    for idx in range(1, 8):
        h = jnp.maximum(h @ p[f"wf{idx}"] + p[f"b{idx}"], 0.0)
    return h @ p["wf8"] + p["b8"]


def reference_forward_bf16(coords, p):
    """Reference mirroring the kernel's bf16 input / bf16-operand matmuls /
    f32 accumulation / bf16 output store (on unpadded weights)."""
    bf16 = jnp.bfloat16
    xb = coords.astype(bf16)
    m = jnp.dot(xb, p["w1"].astype(bf16), preferred_element_type=jnp.float32)
    m = jnp.maximum(m, 0.0)
    m = jnp.dot(m.astype(bf16), p["w2"].astype(bf16),
                preferred_element_type=jnp.float32)
    m = jnp.maximum(m, 0.0)
    m = jnp.dot(m.astype(bf16), p["w3"].astype(bf16),
                preferred_element_type=jnp.float32)
    h = (m * xb.astype(jnp.float32)).astype(bf16)
    for idx in range(1, 8):
        y = jnp.dot(h, p[f"wf{idx}"].astype(bf16),
                    preferred_element_type=jnp.float32) + p[f"b{idx}"]
        h = jnp.maximum(y, 0.0).astype(bf16)
    out = jnp.dot(h, p["wf8"].astype(bf16),
                  preferred_element_type=jnp.float32) + p["b8"]
    return out.astype(bf16).astype(jnp.float32)


if __name__ == "__main__":
    # Small but TPU-friendly shapes implied by the forward:
    #   coords: [N, ff_out_features]
    N = 600                  # deliberately NOT a multiple of the tile (tests padding)
    ff_out_features = 128
    hidden_features = 64     # padded to 128 inside the wrapper
    output_dim = 4           # e.g. RGBA-like output
    # coord_dim / coordinate_scales are unused by forward().

    key = jax.random.PRNGKey(0)
    k_x, k_p = jax.random.split(key)
    coords = jax.random.normal(k_x, (N, ff_out_features), dtype=jnp.float32)
    params = init_params(k_p, ff_out_features, hidden_features, output_dim)

    out = robustified_inrf_forward(coords, params, tile_n=2048)
    out = jax.block_until_ready(out)
    assert out.shape == (N, output_dim)

    # Hard check vs. a reference that uses the same bf16 numerics (zero-padding
    # of H/O/batch is mathematically exact, so these should agree closely).
    ref_bf16 = reference_forward_bf16(coords, params)
    assert jnp.allclose(out, ref_bf16, atol=2e-2, rtol=2e-2), \
        "mismatch vs bf16-matmul reference"

    # Loose sanity check vs. the pure-f32 PyTorch-equivalent forward.
    ref_f32 = reference_forward_f32(coords, params)
    assert float(jnp.max(jnp.abs(out - ref_f32))) < 0.1, \
        "bf16 kernel drifted too far from f32 reference"

    print("KERNEL_OK")
</pallas_src>

<mosaic_0001>
module attributes {stable_mosaic.version = 11 : i64} {
  func.func @_inrf_kernel(%arg0: i32, %arg1: memref<320x128xbf16, #tpu.memory_space<vmem>>, %arg2: memref<128x128xbf16, #tpu.memory_space<vmem>>, %arg3: memref<128x128xbf16, #tpu.memory_space<vmem>>, %arg4: memref<128x128xbf16, #tpu.memory_space<vmem>>, %arg5: memref<128x128xbf16, #tpu.memory_space<vmem>>, %arg6: memref<1x128xf32, #tpu.memory_space<vmem>>, %arg7: memref<128x128xbf16, #tpu.memory_space<vmem>>, %arg8: memref<1x128xf32, #tpu.memory_space<vmem>>, %arg9: memref<128x128xbf16, #tpu.memory_space<vmem>>, %arg10: memref<1x128xf32, #tpu.memory_space<vmem>>, %arg11: memref<128x128xbf16, #tpu.memory_space<vmem>>, %arg12: memref<1x128xf32, #tpu.memory_space<vmem>>, %arg13: memref<128x128xbf16, #tpu.memory_space<vmem>>, %arg14: memref<1x128xf32, #tpu.memory_space<vmem>>, %arg15: memref<128x128xbf16, #tpu.memory_space<vmem>>, %arg16: memref<1x128xf32, #tpu.memory_space<vmem>>, %arg17: memref<128x128xbf16, #tpu.memory_space<vmem>>, %arg18: memref<1x128xf32, #tpu.memory_space<vmem>>, %arg19: memref<128x128xbf16, #tpu.memory_space<vmem>>, %arg20: memref<1x128xf32, #tpu.memory_space<vmem>>, %arg21: memref<320x128xbf16, #tpu.memory_space<vmem>>) attributes {dimension_semantics = [#tpu.dimension_semantics<parallel>], iteration_bounds = array<i64: 2>, scalar_prefetch = 0 : i64, scratch_operands = 0 : i64, tpu.core_type = #tpu.core_type<tc>, window_params = [{transform_indices = @transform_0, window_bounds = array<i64: 320, 128>}, {pipeline_mode = #tpu.pipeline_mode<synchronous>, transform_indices = @transform_1, window_bounds = array<i64: 128, 128>}, {pipeline_mode = #tpu.pipeline_mode<synchronous>, transform_indices = @transform_2, window_bounds = array<i64: 128, 128>}, {pipeline_mode = #tpu.pipeline_mode<synchronous>, transform_indices = @transform_3, window_bounds = array<i64: 128, 128>}, {pipeline_mode = #tpu.pipeline_mode<synchronous>, transform_indices = @transform_4, window_bounds = array<i64: 128, 128>}, {pipeline_mode = #tpu.pipeline_mode<synchronous>, transform_indices = @transform_5, window_bounds = array<i64: 1, 128>}, {pipeline_mode = #tpu.pipeline_mode<synchronous>, transform_indices = @transform_6, window_bounds = array<i64: 128, 128>}, {pipeline_mode = #tpu.pipeline_mode<synchronous>, transform_indices = @transform_7, window_bounds = array<i64: 1, 128>}, {pipeline_mode = #tpu.pipeline_mode<synchronous>, transform_indices = @transform_8, window_bounds = array<i64: 128, 128>}, {pipeline_mode = #tpu.pipeline_mode<synchronous>, transform_indices = @transform_9, window_bounds = array<i64: 1, 128>}, {pipeline_mode = #tpu.pipeline_mode<synchronous>, transform_indices = @transform_10, window_bounds = array<i64: 128, 128>}, {pipeline_mode = #tpu.pipeline_mode<synchronous>, transform_indices = @transform_11, window_bounds = array<i64: 1, 128>}, {pipeline_mode = #tpu.pipeline_mode<synchronous>, transform_indices = @transform_12, window_bounds = array<i64: 128, 128>}, {pipeline_mode = #tpu.pipeline_mode<synchronous>, transform_indices = @transform_13, window_bounds = array<i64: 1, 128>}, {pipeline_mode = #tpu.pipeline_mode<synchronous>, transform_indices = @transform_14, window_bounds = array<i64: 128, 128>}, {pipeline_mode = #tpu.pipeline_mode<synchronous>, transform_indices = @transform_15, window_bounds = array<i64: 1, 128>}, {pipeline_mode = #tpu.pipeline_mode<synchronous>, transform_indices = @transform_16, window_bounds = array<i64: 128, 128>}, {pipeline_mode = #tpu.pipeline_mode<synchronous>, transform_indices = @transform_17, window_bounds = array<i64: 1, 128>}, {pipeline_mode = #tpu.pipeline_mode<synchronous>, transform_indices = @transform_18, window_bounds = array<i64: 128, 128>}, {pipeline_mode = #tpu.pipeline_mode<synchronous>, transform_indices = @transform_19, window_bounds = array<i64: 1, 128>}, {transform_indices = @transform_20, window_bounds = array<i64: 320, 128>}]} {
    %c0 = arith.constant 0 : index
    %c0_0 = arith.constant 0 : index
    %0 = vector.load %arg1[%c0, %c0_0] : memref<320x128xbf16, #tpu.memory_space<vmem>>, vector<320x128xbf16>
    %c0_1 = arith.constant 0 : index
    %c0_2 = arith.constant 0 : index
    %1 = vector.load %arg2[%c0_1, %c0_2] : memref<128x128xbf16, #tpu.memory_space<vmem>>, vector<128x128xbf16>
    %cst = arith.constant dense<0.000000e+00> : vector<320x128xf32>
    %2 = tpu.matmul %0, %1, %cst {dimension_numbers = #tpu.dot_dimension_numbers<[1], [0], [0], [1], [0, 0, 1, 1], [], []>} : vector<320x128xbf16>, vector<128x128xbf16>, vector<320x128xf32> -> vector<320x128xf32>
    %cst_3 = arith.constant 0.000000e+00 : f32
    %3 = vector.broadcast %cst_3 : f32 to vector<320x128xf32>
    %4 = arith.maximumf %2, %3 : vector<320x128xf32>
    %5 = arith.truncf %4 : vector<320x128xf32> to vector<320x128xbf16>
    %c0_4 = arith.constant 0 : index
    %c0_5 = arith.constant 0 : index
    %6 = vector.load %arg3[%c0_4, %c0_5] : memref<128x128xbf16, #tpu.memory_space<vmem>>, vector<128x128xbf16>
    %cst_6 = arith.constant dense<0.000000e+00> : vector<320x128xf32>
    %7 = tpu.matmul %5, %6, %cst_6 {dimension_numbers = #tpu.dot_dimension_numbers<[1], [0], [0], [1], [0, 0, 1, 1], [], []>} : vector<320x128xbf16>, vector<128x128xbf16>, vector<320x128xf32> -> vector<320x128xf32>
    %cst_7 = arith.constant 0.000000e+00 : f32
    %8 = vector.broadcast %cst_7 : f32 to vector<320x128xf32>
    %9 = arith.maximumf %7, %8 : vector<320x128xf32>
    %10 = arith.truncf %9 : vector<320x128xf32> to vector<320x128xbf16>
    %c0_8 = arith.constant 0 : index
    %c0_9 = arith.constant 0 : index
    %11 = vector.load %arg4[%c0_8, %c0_9] : memref<128x128xbf16, #tpu.memory_space<vmem>>, vector<128x128xbf16>
    %cst_10 = arith.constant dense<0.000000e+00> : vector<320x128xf32>
    %12 = tpu.matmul %10, %11, %cst_10 {dimension_numbers = #tpu.dot_dimension_numbers<[1], [0], [0], [1], [0, 0, 1, 1], [], []>} : vector<320x128xbf16>, vector<128x128xbf16>, vector<320x128xf32> -> vector<320x128xf32>
    %13 = arith.extf %0 : vector<320x128xbf16> to vector<320x128xf32>
    %14 = arith.mulf %12, %13 : vector<320x128xf32>
    %15 = arith.truncf %14 : vector<320x128xf32> to vector<320x128xbf16>
    %c0_11 = arith.constant 0 : index
    %c0_12 = arith.constant 0 : index
    %16 = vector.load %arg5[%c0_11, %c0_12] : memref<128x128xbf16, #tpu.memory_space<vmem>>, vector<128x128xbf16>
    %cst_13 = arith.constant dense<0.000000e+00> : vector<320x128xf32>
    %17 = tpu.matmul %15, %16, %cst_13 {dimension_numbers = #tpu.dot_dimension_numbers<[1], [0], [0], [1], [0, 0, 1, 1], [], []>} : vector<320x128xbf16>, vector<128x128xbf16>, vector<320x128xf32> -> vector<320x128xf32>
    %c0_14 = arith.constant 0 : index
    %c0_15 = arith.constant 0 : index
    %18 = vector.load %arg6[%c0_14, %c0_15] : memref<1x128xf32, #tpu.memory_space<vmem>>, vector<1x128xf32>
    %19 = vector.broadcast %18 : vector<1x128xf32> to vector<320x128xf32>
    %20 = arith.addf %17, %19 : vector<320x128xf32>
    %cst_16 = arith.constant 0.000000e+00 : f32
    %21 = vector.broadcast %cst_16 : f32 to vector<320x128xf32>
    %22 = arith.maximumf %20, %21 : vector<320x128xf32>
    %23 = arith.truncf %22 : vector<320x128xf32> to vector<320x128xbf16>
    %c0_17 = arith.constant 0 : index
    %c0_18 = arith.constant 0 : index
    %24 = vector.load %arg7[%c0_17, %c0_18] : memref<128x128xbf16, #tpu.memory_space<vmem>>, vector<128x128xbf16>
    %cst_19 = arith.constant dense<0.000000e+00> : vector<320x128xf32>
    %25 = tpu.matmul %23, %24, %cst_19 {dimension_numbers = #tpu.dot_dimension_numbers<[1], [0], [0], [1], [0, 0, 1, 1], [], []>} : vector<320x128xbf16>, vector<128x128xbf16>, vector<320x128xf32> -> vector<320x128xf32>
    %c0_20 = arith.constant 0 : index
    %c0_21 = arith.constant 0 : index
    %26 = vector.load %arg8[%c0_20, %c0_21] : memref<1x128xf32, #tpu.memory_space<vmem>>, vector<1x128xf32>
    %27 = vector.broadcast %26 : vector<1x128xf32> to vector<320x128xf32>
    %28 = arith.addf %25, %27 : vector<320x128xf32>
    %cst_22 = arith.constant 0.000000e+00 : f32
    %29 = vector.broadcast %cst_22 : f32 to vector<320x128xf32>
    %30 = arith.maximumf %28, %29 : vector<320x128xf32>
    %31 = arith.truncf %30 : vector<320x128xf32> to vector<320x128xbf16>
    %c0_23 = arith.constant 0 : index
    %c0_24 = arith.constant 0 : index
    %32 = vector.load %arg9[%c0_23, %c0_24] : memref<128x128xbf16, #tpu.memory_space<vmem>>, vector<128x128xbf16>
    %cst_25 = arith.constant dense<0.000000e+00> : vector<320x128xf32>
    %33 = tpu.matmul %31, %32, %cst_25 {dimension_numbers = #tpu.dot_dimension_numbers<[1], [0], [0], [1], [0, 0, 1, 1], [], []>} : vector<320x128xbf16>, vector<128x128xbf16>, vector<320x128xf32> -> vector<320x128xf32>
    %c0_26 = arith.constant 0 : index
    %c0_27 = arith.constant 0 : index
    %34 = vector.load %arg10[%c0_26, %c0_27] : memref<1x128xf32, #tpu.memory_space<vmem>>, vector<1x128xf32>
    %35 = vector.broadcast %34 : vector<1x128xf32> to vector<320x128xf32>
    %36 = arith.addf %33, %35 : vector<320x128xf32>
    %cst_28 = arith.constant 0.000000e+00 : f32
    %37 = vector.broadcast %cst_28 : f32 to vector<320x128xf32>
    %38 = arith.maximumf %36, %37 : vector<320x128xf32>
    %39 = arith.truncf %38 : vector<320x128xf32> to vector<320x128xbf16>
    %c0_29 = arith.constant 0 : index
    %c0_30 = arith.constant 0 : index
    %40 = vector.load %arg11[%c0_29, %c0_30] : memref<128x128xbf16, #tpu.memory_space<vmem>>, vector<128x128xbf16>
    %cst_31 = arith.constant dense<0.000000e+00> : vector<320x128xf32>
    %41 = tpu.matmul %39, %40, %cst_31 {dimension_numbers = #tpu.dot_dimension_numbers<[1], [0], [0], [1], [0, 0, 1, 1], [], []>} : vector<320x128xbf16>, vector<128x128xbf16>, vector<320x128xf32> -> vector<320x128xf32>
    %c0_32 = arith.constant 0 : index
    %c0_33 = arith.constant 0 : index
    %42 = vector.load %arg12[%c0_32, %c0_33] : memref<1x128xf32, #tpu.memory_space<vmem>>, vector<1x128xf32>
    %43 = vector.broadcast %42 : vector<1x128xf32> to vector<320x128xf32>
    %44 = arith.addf %41, %43 : vector<320x128xf32>
    %cst_34 = arith.constant 0.000000e+00 : f32
    %45 = vector.broadcast %cst_34 : f32 to vector<320x128xf32>
    %46 = arith.maximumf %44, %45 : vector<320x128xf32>
    %47 = arith.truncf %46 : vector<320x128xf32> to vector<320x128xbf16>
    %c0_35 = arith.constant 0 : index
    %c0_36 = arith.constant 0 : index
    %48 = vector.load %arg13[%c0_35, %c0_36] : memref<128x128xbf16, #tpu.memory_space<vmem>>, vector<128x128xbf16>
    %cst_37 = arith.constant dense<0.000000e+00> : vector<320x128xf32>
    %49 = tpu.matmul %47, %48, %cst_37 {dimension_numbers = #tpu.dot_dimension_numbers<[1], [0], [0], [1], [0, 0, 1, 1], [], []>} : vector<320x128xbf16>, vector<128x128xbf16>, vector<320x128xf32> -> vector<320x128xf32>
    %c0_38 = arith.constant 0 : index
    %c0_39 = arith.constant 0 : index
    %50 = vector.load %arg14[%c0_38, %c0_39] : memref<1x128xf32, #tpu.memory_space<vmem>>, vector<1x128xf32>
    %51 = vector.broadcast %50 : vector<1x128xf32> to vector<320x128xf32>
    %52 = arith.addf %49, %51 : vector<320x128xf32>
    %cst_40 = arith.constant 0.000000e+00 : f32
    %53 = vector.broadcast %cst_40 : f32 to vector<320x128xf32>
    %54 = arith.maximumf %52, %53 : vector<320x128xf32>
    %55 = arith.truncf %54 : vector<320x128xf32> to vector<320x128xbf16>
    %c0_41 = arith.constant 0 : index
    %c0_42 = arith.constant 0 : index
    %56 = vector.load %arg15[%c0_41, %c0_42] : memref<128x128xbf16, #tpu.memory_space<vmem>>, vector<128x128xbf16>
    %cst_43 = arith.constant dense<0.000000e+00> : vector<320x128xf32>
    %57 = tpu.matmul %55, %56, %cst_43 {dimension_numbers = #tpu.dot_dimension_numbers<[1], [0], [0], [1], [0, 0, 1, 1], [], []>} : vector<320x128xbf16>, vector<128x128xbf16>, vector<320x128xf32> -> vector<320x128xf32>
    %c0_44 = arith.constant 0 : index
    %c0_45 = arith.constant 0 : index
    %58 = vector.load %arg16[%c0_44, %c0_45] : memref<1x128xf32, #tpu.memory_space<vmem>>, vector<1x128xf32>
    %59 = vector.broadcast %58 : vector<1x128xf32> to vector<320x128xf32>
    %60 = arith.addf %57, %59 : vector<320x128xf32>
    %cst_46 = arith.constant 0.000000e+00 : f32
    %61 = vector.broadcast %cst_46 : f32 to vector<320x128xf32>
    %62 = arith.maximumf %60, %61 : vector<320x128xf32>
    %63 = arith.truncf %62 : vector<320x128xf32> to vector<320x128xbf16>
    %c0_47 = arith.constant 0 : index
    %c0_48 = arith.constant 0 : index
    %64 = vector.load %arg17[%c0_47, %c0_48] : memref<128x128xbf16, #tpu.memory_space<vmem>>, vector<128x128xbf16>
    %cst_49 = arith.constant dense<0.000000e+00> : vector<320x128xf32>
    %65 = tpu.matmul %63, %64, %cst_49 {dimension_numbers = #tpu.dot_dimension_numbers<[1], [0], [0], [1], [0, 0, 1, 1], [], []>} : vector<320x128xbf16>, vector<128x128xbf16>, vector<320x128xf32> -> vector<320x128xf32>
    %c0_50 = arith.constant 0 : index
    %c0_51 = arith.constant 0 : index
    %66 = vector.load %arg18[%c0_50, %c0_51] : memref<1x128xf32, #tpu.memory_space<vmem>>, vector<1x128xf32>
    %67 = vector.broadcast %66 : vector<1x128xf32> to vector<320x128xf32>
    %68 = arith.addf %65, %67 : vector<320x128xf32>
    %cst_52 = arith.constant 0.000000e+00 : f32
    %69 = vector.broadcast %cst_52 : f32 to vector<320x128xf32>
    %70 = arith.maximumf %68, %69 : vector<320x128xf32>
    %71 = arith.truncf %70 : vector<320x128xf32> to vector<320x128xbf16>
    %c0_53 = arith.constant 0 : index
    %c0_54 = arith.constant 0 : index
    %72 = vector.load %arg19[%c0_53, %c0_54] : memref<128x128xbf16, #tpu.memory_space<vmem>>, vector<128x128xbf16>
    %cst_55 = arith.constant dense<0.000000e+00> : vector<320x128xf32>
    %73 = tpu.matmul %71, %72, %cst_55 {dimension_numbers = #tpu.dot_dimension_numbers<[1], [0], [0], [1], [0, 0, 1, 1], [], []>} : vector<320x128xbf16>, vector<128x128xbf16>, vector<320x128xf32> -> vector<320x128xf32>
    %c0_56 = arith.constant 0 : index
    %c0_57 = arith.constant 0 : index
    %74 = vector.load %arg20[%c0_56, %c0_57] : memref<1x128xf32, #tpu.memory_space<vmem>>, vector<1x128xf32>
    %75 = vector.broadcast %74 : vector<1x128xf32> to vector<320x128xf32>
    %76 = arith.addf %73, %75 : vector<320x128xf32>
    %77 = arith.truncf %76 : vector<320x128xf32> to vector<320x128xbf16>
    %c0_58 = arith.constant 0 : index
    %c0_59 = arith.constant 0 : index
    %78 = vector.load %arg21[%c0_58, %c0_59] : memref<320x128xbf16, #tpu.memory_space<vmem>>, vector<320x128xbf16>
    tpu.vector_store %arg21[%c0_58, %c0_59], %77 {strides = array<i32>} : memref<320x128xbf16, #tpu.memory_space<vmem>>, vector<320x128xbf16>,
    return
  }
  func.func @transform_0(%arg0: i32) -> (i32, i32) {
    %c0_i32 = arith.constant 0 : i32
    %c0_i32_0 = arith.constant 0 : i32
    return %arg0, %c0_i32 : i32, i32
  }
  func.func @transform_1(%arg0: i32) -> (i32, i32) {
    %c0_i32 = arith.constant 0 : i32
    %c0_i32_0 = arith.constant 0 : i32
    %c0_i32_1 = arith.constant 0 : i32
    return %c0_i32, %c0_i32_0 : i32, i32
  }
  func.func @transform_2(%arg0: i32) -> (i32, i32) {
    %c0_i32 = arith.constant 0 : i32
    %c0_i32_0 = arith.constant 0 : i32
    %c0_i32_1 = arith.constant 0 : i32
    return %c0_i32, %c0_i32_0 : i32, i32
  }
  func.func @transform_3(%arg0: i32) -> (i32, i32) {
    %c0_i32 = arith.constant 0 : i32
    %c0_i32_0 = arith.constant 0 : i32
    %c0_i32_1 = arith.constant 0 : i32
    return %c0_i32, %c0_i32_0 : i32, i32
  }
  func.func @transform_4(%arg0: i32) -> (i32, i32) {
    %c0_i32 = arith.constant 0 : i32
    %c0_i32_0 = arith.constant 0 : i32
    %c0_i32_1 = arith.constant 0 : i32
    return %c0_i32, %c0_i32_0 : i32, i32
  }
  func.func @transform_5(%arg0: i32) -> (i32, i32) {
    %c0_i32 = arith.constant 0 : i32
    %c0_i32_0 = arith.constant 0 : i32
    %c0_i32_1 = arith.constant 0 : i32
    return %c0_i32, %c0_i32_0 : i32, i32
  }
  func.func @transform_6(%arg0: i32) -> (i32, i32) {
    %c0_i32 = arith.constant 0 : i32
    %c0_i32_0 = arith.constant 0 : i32
    %c0_i32_1 = arith.constant 0 : i32
    return %c0_i32, %c0_i32_0 : i32, i32
  }
  func.func @transform_7(%arg0: i32) -> (i32, i32) {
    %c0_i32 = arith.constant 0 : i32
    %c0_i32_0 = arith.constant 0 : i32
    %c0_i32_1 = arith.constant 0 : i32
    return %c0_i32, %c0_i32_0 : i32, i32
  }
  func.func @transform_8(%arg0: i32) -> (i32, i32) {
    %c0_i32 = arith.constant 0 : i32
    %c0_i32_0 = arith.constant 0 : i32
    %c0_i32_1 = arith.constant 0 : i32
    return %c0_i32, %c0_i32_0 : i32, i32
  }
  func.func @transform_9(%arg0: i32) -> (i32, i32) {
    %c0_i32 = arith.constant 0 : i32
    %c0_i32_0 = arith.constant 0 : i32
    %c0_i32_1 = arith.constant 0 : i32
    return %c0_i32, %c0_i32_0 : i32, i32
  }
  func.func @transform_10(%arg0: i32) -> (i32, i32) {
    %c0_i32 = arith.constant 0 : i32
    %c0_i32_0 = arith.constant 0 : i32
    %c0_i32_1 = arith.constant 0 : i32
    return %c0_i32, %c0_i32_0 : i32, i32
  }
  func.func @transform_11(%arg0: i32) -> (i32, i32) {
    %c0_i32 = arith.constant 0 : i32
    %c0_i32_0 = arith.constant 0 : i32
    %c0_i32_1 = arith.constant 0 : i32
    return %c0_i32, %c0_i32_0 : i32, i32
  }
  func.func @transform_12(%arg0: i32) -> (i32, i32) {
    %c0_i32 = arith.constant 0 : i32
    %c0_i32_0 = arith.constant 0 : i32
    %c0_i32_1 = arith.constant 0 : i32
    return %c0_i32, %c0_i32_0 : i32, i32
  }
  func.func @transform_13(%arg0: i32) -> (i32, i32) {
    %c0_i32 = arith.constant 0 : i32
    %c0_i32_0 = arith.constant 0 : i32
    %c0_i32_1 = arith.constant 0 : i32
    return %c0_i32, %c0_i32_0 : i32, i32
  }
  func.func @transform_14(%arg0: i32) -> (i32, i32) {
    %c0_i32 = arith.constant 0 : i32
    %c0_i32_0 = arith.constant 0 : i32
    %c0_i32_1 = arith.constant 0 : i32
    return %c0_i32, %c0_i32_0 : i32, i32
  }
  func.func @transform_15(%arg0: i32) -> (i32, i32) {
    %c0_i32 = arith.constant 0 : i32
    %c0_i32_0 = arith.constant 0 : i32
    %c0_i32_1 = arith.constant 0 : i32
    return %c0_i32, %c0_i32_0 : i32, i32
  }
  func.func @transform_16(%arg0: i32) -> (i32, i32) {
    %c0_i32 = arith.constant 0 : i32
    %c0_i32_0 = arith.constant 0 : i32
    %c0_i32_1 = arith.constant 0 : i32
    return %c0_i32, %c0_i32_0 : i32, i32
  }
  func.func @transform_17(%arg0: i32) -> (i32, i32) {
    %c0_i32 = arith.constant 0 : i32
    %c0_i32_0 = arith.constant 0 : i32
    %c0_i32_1 = arith.constant 0 : i32
    return %c0_i32, %c0_i32_0 : i32, i32
  }
  func.func @transform_18(%arg0: i32) -> (i32, i32) {
    %c0_i32 = arith.constant 0 : i32
    %c0_i32_0 = arith.constant 0 : i32
    %c0_i32_1 = arith.constant 0 : i32
    return %c0_i32, %c0_i32_0 : i32, i32
  }
  func.func @transform_19(%arg0: i32) -> (i32, i32) {
    %c0_i32 = arith.constant 0 : i32
    %c0_i32_0 = arith.constant 0 : i32
    %c0_i32_1 = arith.constant 0 : i32
    return %c0_i32, %c0_i32_0 : i32, i32
  }
  func.func @transform_20(%arg0: i32) -> (i32, i32) {
    %c0_i32 = arith.constant 0 : i32
    %c0_i32_0 = arith.constant 0 : i32
    return %arg0, %c0_i32 : i32, i32
  }
}

</mosaic_0001>

<llo_original>
// kernel: tpu_custom_call.1
$region0: #{tpu_custom_call.1}
  #allocation0 [shape = 'u32[]', space=smem, size = 0x4, offset = 0x4, fixed_abs, tag = 'smem constant byte address 0x4 - core index']
  #allocation1 [shape = 'u32[144,128]{1,0:T(1,128)}', space=vmem, size = 0x12000, scoped, tag = 'internal scratch']
  %s0 = inlined_call_operand.hbm [shape: bf16[640,128], index: 0, kind: input, shape index: {}]
  %s1 = inlined_call_operand.hbm [shape: bf16[128,128], index: 1, kind: input, shape index: {}]
  %s2 = inlined_call_operand.hbm [shape: bf16[128,128], index: 2, kind: input, shape index: {}]
  %s3 = inlined_call_operand.hbm [shape: bf16[128,128], index: 3, kind: input, shape index: {}]
  %s4 = inlined_call_operand.hbm [shape: bf16[128,128], index: 4, kind: input, shape index: {}]
  %s5 = inlined_call_operand.vmem [shape: f32[1,128], index: 5, kind: input, shape index: {}]
  %s6 = inlined_call_operand.hbm [shape: bf16[128,128], index: 6, kind: input, shape index: {}]
  %s7 = inlined_call_operand.vmem [shape: f32[1,128], index: 7, kind: input, shape index: {}]
  %s8 = inlined_call_operand.hbm [shape: bf16[128,128], index: 8, kind: input, shape index: {}]
  %s9 = inlined_call_operand.vmem [shape: f32[1,128], index: 9, kind: input, shape index: {}]
  %s10 = inlined_call_operand.hbm [shape: bf16[128,128], index: 10, kind: input, shape index: {}]
  %s11 = inlined_call_operand.vmem [shape: f32[1,128], index: 11, kind: input, shape index: {}]
  %s12 = inlined_call_operand.hbm [shape: bf16[128,128], index: 12, kind: input, shape index: {}]
  %s13 = inlined_call_operand.hbm [shape: f32[1,128], index: 13, kind: input, shape index: {}]
  %s14 = inlined_call_operand.hbm [shape: bf16[128,128], index: 14, kind: input, shape index: {}]
  %s15 = inlined_call_operand.hbm [shape: f32[1,128], index: 15, kind: input, shape index: {}]
  %s16 = inlined_call_operand.hbm [shape: bf16[128,128], index: 16, kind: input, shape index: {}]
  %s17 = inlined_call_operand.hbm [shape: f32[1,128], index: 17, kind: input, shape index: {}]
  %s18 = inlined_call_operand.vmem [shape: bf16[128,128], index: 18, kind: input, shape index: {}]
  %s19 = inlined_call_operand.vmem [shape: f32[1,128], index: 19, kind: input, shape index: {}]
  %s20 = inlined_call_operand.hbm [shape: bf16[640,128], index: 20, kind: output, shape index: {}]
  %s21 = sld [smem:[#allocation0]]
  $region169: #{tpu_custom_call.1} parent=0
    _
  %s23 = ssub.s32 1, %s21
  %s24 = scalar_select 0, %s23, %s21
  $region1: #{tpu_custom_call.1} parent=0
    #allocation2 [shape = 'u8[163840]{0}', space=vmem, size = 0x28000, scoped, tag = 'input window, operand 0']
    #allocation3 [shape = 's32[2]{0}', space=sflag, size = 0x8, scoped, tag = 'scoped memory for tpu_custom_call.1']
    #allocation4 [shape = 's32[2]{0}', space=sflag, size = 0x8, scoped, tag = 'scoped memory for tpu_custom_call.1']
    #allocation5 [shape = 'u8[32768]{0}', space=vmem, size = 0x8000, scoped, tag = 'input window, operand 1, single buffered']
    #allocation6 [shape = 's32[1]{0}', space=sflag, size = 0x4, scoped, tag = 'scoped memory for tpu_custom_call.1']
    #allocation7 [shape = 'u8[32768]{0}', space=vmem, size = 0x8000, scoped, tag = 'input window, operand 2, single buffered']
    #allocation8 [shape = 'u8[32768]{0}', space=vmem, size = 0x8000, scoped, tag = 'input window, operand 3, single buffered']
    #allocation9 [shape = 's32[1]{0}', space=sflag, size = 0x4, scoped, tag = 'scoped memory for tpu_custom_call.1']
    #allocation10 [shape = 'u8[32768]{0}', space=vmem, size = 0x8000, scoped, tag = 'input window, operand 4, single buffered']
    #allocation11 [shape = 'u8[32768]{0}', space=vmem, size = 0x8000, scoped, tag = 'input window, operand 6, single buffered']
    #allocation12 [shape = 's32[1]{0}', space=sflag, size = 0x4, scoped, tag = 'scoped memory for tpu_custom_call.1']
    #allocation13 [shape = 'u8[32768]{0}', space=vmem, size = 0x8000, scoped, tag = 'input window, operand 8, single buffered']
    #allocation14 [shape = 'u8[32768]{0}', space=vmem, size = 0x8000, scoped, tag = 'input window, operand 10, single buffered']
    #allocation15 [shape = 's32[1]{0}', space=sflag, size = 0x4, scoped, tag = 'scoped memory for tpu_custom_call.1']
    #allocation16 [shape = 'u8[32768]{0}', space=vmem, size = 0x8000, scoped, tag = 'input window, operand 12, single buffered']
    #allocation17 [shape = 'u8[512]{0}', space=vmem, size = 0x400, scoped, tag = 'input window, operand 13, single buffered']
    #allocation18 [shape = 's32[1]{0}', space=sflag, size = 0x4, scoped, tag = 'scoped memory for tpu_custom_call.1']
    #allocation19 [shape = 'u8[32768]{0}', space=vmem, size = 0x8000, scoped, tag = 'input window, operand 14, single buffered']
    #allocation20 [shape = 'u8[512]{0}', space=vmem, size = 0x400, scoped, tag = 'input window, operand 15, single buffered']
    #allocation21 [shape = 's32[1]{0}', space=sflag, size = 0x4, scoped, tag = 'scoped memory for tpu_custom_call.1']
    #allocation22 [shape = 'u8[32768]{0}', space=vmem, size = 0x8000, scoped, tag = 'input window, operand 16, single buffered']
    #allocation23 [shape = 'u8[512]{0}', space=vmem, size = 0x400, scoped, tag = 'input window, operand 17, single buffered']
    #allocation24 [shape = 's32[1]{0}', space=sflag, size = 0x4, scoped, tag = 'scoped memory for tpu_custom_call.1']
    #allocation25 [shape = 'u8[163840]{0}', space=vmem, size = 0x28000, scoped, tag = 'output window, operand 0']
    %25 = vsyncpa [#allocation3], 0
    %s26 = scalar_lea.sflag [#allocation3], 1
    %27 = vsyncpa %s26, 0
    %28 = vsyncpa [#allocation6], 0
    %29 = vsyncpa [#allocation9], 0
    %30 = vsyncpa [#allocation12], 0
    %31 = vsyncpa [#allocation15], 0
    %32 = vsyncpa [#allocation18], 0
    %33 = vsyncpa [#allocation21], 0
    %34 = vsyncpa [#allocation24], 0
    %35 = vsyncpa [#allocation4], 0
    %s36 = scalar_lea.sflag [#allocation4], 1
    %37 = vsyncpa %s36, 0
    loop: start=0, step=1, limit=4
    $region2: #{tpu_custom_call.1} parent=1 // loop_pre_header
      _
    $region3: #{tpu_custom_call.1} parent=1 // loop_header
      %s39 = sphi 0, %s43
      %p40 = scmp.ge.s32.totalorder %s39, 4
      %s49 = sphi 0, %s51
      %s52 = sphi 0, %s49
      %s53 = sphi 0, %s52
      %s69 = sphi 0, %s53
      %s73 = sphi 0, %s73
      %s75 = sphi 0, %s73
      %s76 = sphi 0, %s75
      %s90 = sphi 0, %s76
      %s94 = sphi 0, %s94
      %s96 = sphi 0, %s94
      %s97 = sphi 0, %s96
      %s111 = sphi 0, %s97
      %s115 = sphi 0, %s115
      %s117 = sphi 0, %s115
      %s118 = sphi 0, %s117
      %s132 = sphi 0, %s118
      %s136 = sphi 0, %s136
      %s138 = sphi 0, %s136
      %s139 = sphi 0, %s138
      %s153 = sphi 0, %s139
      %s157 = sphi 0, %s157
      %s159 = sphi 0, %s157
      %s160 = sphi 0, %s159
      %s174 = sphi 0, %s160
      %s178 = sphi 0, %s178
      %s180 = sphi 0, %s178
      %s181 = sphi 0, %s180
      %s195 = sphi 0, %s181
      %s199 = sphi 0, %s199
      %s201 = sphi 0, %s199
      %s202 = sphi 0, %s201
      %s216 = sphi 0, %s202
      %s220 = sphi 0, %s220
      %s222 = sphi 0, %s220
      %s223 = sphi 0, %s222
      %s237 = sphi 0, %s223
      %s241 = sphi 0, %s241
      %s243 = sphi 0, %s241
      %s244 = sphi 0, %s243
      %s258 = sphi 0, %s244
      %s262 = sphi 0, %s262
      %s264 = sphi 0, %s262
      %s265 = sphi 0, %s264
      %s279 = sphi 0, %s265
      %s283 = sphi 0, %s283
      %s285 = sphi 0, %s283
      %s286 = sphi 0, %s285
      %s300 = sphi 0, %s286
      %s304 = sphi 0, %s304
      %s306 = sphi 0, %s304
      %s307 = sphi 0, %s306
      %s321 = sphi 0, %s307
      %s325 = sphi 0, %s325
      %s327 = sphi 0, %s325
      %s328 = sphi 0, %s327
      %s342 = sphi 0, %s328
      %s346 = sphi 0, %s346
      %s348 = sphi 0, %s346
      %s349 = sphi 0, %s348
      %s363 = sphi 0, %s349
      %s367 = sphi 0, %s367
      %s369 = sphi 0, %s367
      %s370 = sphi 0, %s369
      %s384 = sphi 0, %s370
      %s388 = sphi 0, %s388
      %s390 = sphi 0, %s388
      %s391 = sphi 0, %s390
      %s405 = sphi 0, %s391
      %s409 = sphi 0, %s409
      %s411 = sphi 0, %s409
      %s412 = sphi 0, %s411
      %s426 = sphi 0, %s412
      %s430 = sphi 0, %s430
      %s432 = sphi 0, %s430
      %s433 = sphi 0, %s432
      %s447 = sphi 0, %s433
      %s451 = sphi 0, %s451
      %s453 = sphi 0, %s451
      %s454 = sphi 0, %s453
      %s468 = sphi 0, %s454
      %s474 = sphi 0, %s476
      %s477 = sphi 0, %s474
      %s478 = sphi 0, %s477
      %s494 = sphi 0, %s478
    $region4: #{tpu_custom_call.1} parent=1 // loop_header_branch
      %42 = sbr.rel (%p40) target = $region8
    $region5: #{tpu_custom_call.1} parent=1 // loop_body
      %s44 = ssub.s32 %s39, 1
      %s45 = ssub.s32 %s39, 2
      %s46 = sadd.s32 %s39, 1
      %s47 = ssub.s32 %s39, %s46
      %p48 = scmp.eq.s32.totalorder %s47, 0
      %s50 = sadd.s32 %s49, 1
      %s51 = scalar_select %p48, %s49, %s50
      %p54 = pneg %p48
      %p55 = scmp.eq.s32.totalorder %s39, 1
      %p56 = por %p54, %p55
      %p57 = scmp.ne.s32.totalorder %s49, %s52
      %p58 = scmp.eq.s32.totalorder %s39, 0
      %p59 = por %p57, %p58
      %p60 = scmp.ne.s32.totalorder %s49, %s52
      %p61 = scmp.eq.s32.totalorder %s44, 1
      %p62 = por %p60, %p61
      %p63 = scmp.ne.s32.totalorder %s52, %s53
      %p64 = scmp.eq.s32.totalorder %s44, 0
      %p65 = por %p63, %p64
      %p66 = scmp.ne.s32.totalorder %s52, %s53
      %p67 = scmp.eq.s32.totalorder %s45, 1
      %p68 = por %p66, %p67
      %p70 = scmp.ne.s32.totalorder %s53, %s69
      %p71 = scmp.eq.s32.totalorder %s45, 0
      %p72 = por %p70, %p71
      %s74 = sadd.s32 %s73, 1
      %p77 = scmp.eq.s32.totalorder %s39, 1
      %p78 = scmp.ne.s32.totalorder %s73, %s75
      %p79 = scmp.eq.s32.totalorder %s39, 0
      %p80 = por %p78, %p79
      %p81 = scmp.ne.s32.totalorder %s73, %s75
      %p82 = scmp.eq.s32.totalorder %s44, 1
      %p83 = por %p81, %p82
      %p84 = scmp.ne.s32.totalorder %s75, %s76
      %p85 = scmp.eq.s32.totalorder %s44, 0
      %p86 = por %p84, %p85
      %p87 = scmp.ne.s32.totalorder %s75, %s76
      %p88 = scmp.eq.s32.totalorder %s45, 1
      %p89 = por %p87, %p88
      %p91 = scmp.ne.s32.totalorder %s76, %s90
      %p92 = scmp.eq.s32.totalorder %s45, 0
      %p93 = por %p91, %p92
      %s95 = sadd.s32 %s94, 1
      %p98 = scmp.eq.s32.totalorder %s39, 1
      %p99 = scmp.ne.s32.totalorder %s94, %s96
      %p100 = scmp.eq.s32.totalorder %s39, 0
      %p101 = por %p99, %p100
      %p102 = scmp.ne.s32.totalorder %s94, %s96
      %p103 = scmp.eq.s32.totalorder %s44, 1
      %p104 = por %p102, %p103
      %p105 = scmp.ne.s32.totalorder %s96, %s97
      %p106 = scmp.eq.s32.totalorder %s44, 0
      %p107 = por %p105, %p106
      %p108 = scmp.ne.s32.totalorder %s96, %s97
      %p109 = scmp.eq.s32.totalorder %s45, 1
      %p110 = por %p108, %p109
      %p112 = scmp.ne.s32.totalorder %s97, %s111
      %p113 = scmp.eq.s32.totalorder %s45, 0
      %p114 = por %p112, %p113
      %s116 = sadd.s32 %s115, 1
      %p119 = scmp.eq.s32.totalorder %s39, 1
      %p120 = scmp.ne.s32.totalorder %s115, %s117
      %p121 = scmp.eq.s32.totalorder %s39, 0
      %p122 = por %p120, %p121
      %p123 = scmp.ne.s32.totalorder %s115, %s117
      %p124 = scmp.eq.s32.totalorder %s44, 1
      %p125 = por %p123, %p124
      %p126 = scmp.ne.s32.totalorder %s117, %s118
      %p127 = scmp.eq.s32.totalorder %s44, 0
      %p128 = por %p126, %p127
      %p129 = scmp.ne.s32.totalorder %s117, %s118
      %p130 = scmp.eq.s32.totalorder %s45, 1
      %p131 = por %p129, %p130
      %p133 = scmp.ne.s32.totalorder %s118, %s132
      %p134 = scmp.eq.s32.totalorder %s45, 0
      %p135 = por %p133, %p134
      %s137 = sadd.s32 %s136, 1
      %p140 = scmp.eq.s32.totalorder %s39, 1
      %p141 = scmp.ne.s32.totalorder %s136, %s138
      %p142 = scmp.eq.s32.totalorder %s39, 0
      %p143 = por %p141, %p142
      %p144 = scmp.ne.s32.totalorder %s136, %s138
      %p145 = scmp.eq.s32.totalorder %s44, 1
      %p146 = por %p144, %p145
      %p147 = scmp.ne.s32.totalorder %s138, %s139
      %p148 = scmp.eq.s32.totalorder %s44, 0
      %p149 = por %p147, %p148
      %p150 = scmp.ne.s32.totalorder %s138, %s139
      %p151 = scmp.eq.s32.totalorder %s45, 1
      %p152 = por %p150, %p151
      %p154 = scmp.ne.s32.totalorder %s139, %s153
      %p155 = scmp.eq.s32.totalorder %s45, 0
      %p156 = por %p154, %p155
      %s158 = sadd.s32 %s157, 1
      %p161 = scmp.eq.s32.totalorder %s39, 1
      %p162 = scmp.ne.s32.totalorder %s157, %s159
      %p163 = scmp.eq.s32.totalorder %s39, 0
      %p164 = por %p162, %p163
      %p165 = scmp.ne.s32.totalorder %s157, %s159
      %p166 = scmp.eq.s32.totalorder %s44, 1
      %p167 = por %p165, %p166
      %p168 = scmp.ne.s32.totalorder %s159, %s160
      %p169 = scmp.eq.s32.totalorder %s44, 0
      %p170 = por %p168, %p169
      %p171 = scmp.ne.s32.totalorder %s159, %s160
      %p172 = scmp.eq.s32.totalorder %s45, 1
      %p173 = por %p171, %p172
      %p175 = scmp.ne.s32.totalorder %s160, %s174
      %p176 = scmp.eq.s32.totalorder %s45, 0
      %p177 = por %p175, %p176
      %s179 = sadd.s32 %s178, 1
      %p182 = scmp.eq.s32.totalorder %s39, 1
      %p183 = scmp.ne.s32.totalorder %s178, %s180
      %p184 = scmp.eq.s32.totalorder %s39, 0
      %p185 = por %p183, %p184
      %p186 = scmp.ne.s32.totalorder %s178, %s180
      %p187 = scmp.eq.s32.totalorder %s44, 1
      %p188 = por %p186, %p187
      %p189 = scmp.ne.s32.totalorder %s180, %s181
      %p190 = scmp.eq.s32.totalorder %s44, 0
      %p191 = por %p189, %p190
      %p192 = scmp.ne.s32.totalorder %s180, %s181
      %p193 = scmp.eq.s32.totalorder %s45, 1
      %p194 = por %p192, %p193
      %p196 = scmp.ne.s32.totalorder %s181, %s195
      %p197 = scmp.eq.s32.totalorder %s45, 0
      %p198 = por %p196, %p197
      %s200 = sadd.s32 %s199, 1
      %p203 = scmp.eq.s32.totalorder %s39, 1
      %p204 = scmp.ne.s32.totalorder %s199, %s201
      %p205 = scmp.eq.s32.totalorder %s39, 0
      %p206 = por %p204, %p205
      %p207 = scmp.ne.s32.totalorder %s199, %s201
      %p208 = scmp.eq.s32.totalorder %s44, 1
      %p209 = por %p207, %p208
      %p210 = scmp.ne.s32.totalorder %s201, %s202
      %p211 = scmp.eq.s32.totalorder %s44, 0
      %p212 = por %p210, %p211
      %p213 = scmp.ne.s32.totalorder %s201, %s202
      %p214 = scmp.eq.s32.totalorder %s45, 1
      %p215 = por %p213, %p214
      %p217 = scmp.ne.s32.totalorder %s202, %s216
      %p218 = scmp.eq.s32.totalorder %s45, 0
      %p219 = por %p217, %p218
      %s221 = sadd.s32 %s220, 1
      %p224 = scmp.eq.s32.totalorder %s39, 1
      %p225 = scmp.ne.s32.totalorder %s220, %s222
      %p226 = scmp.eq.s32.totalorder %s39, 0
      %p227 = por %p225, %p226
      %p228 = scmp.ne.s32.totalorder %s220, %s222
      %p229 = scmp.eq.s32.totalorder %s44, 1
      %p230 = por %p228, %p229
      %p231 = scmp.ne.s32.totalorder %s222, %s223
      %p232 = scmp.eq.s32.totalorder %s44, 0
      %p233 = por %p231, %p232
      %p234 = scmp.ne.s32.totalorder %s222, %s223
      %p235 = scmp.eq.s32.totalorder %s45, 1
      %p236 = por %p234, %p235
      %p238 = scmp.ne.s32.totalorder %s223, %s237
      %p239 = scmp.eq.s32.totalorder %s45, 0
      %p240 = por %p238, %p239
      %s242 = sadd.s32 %s241, 1
      %p245 = scmp.eq.s32.totalorder %s39, 1
      %p246 = scmp.ne.s32.totalorder %s241, %s243
      %p247 = scmp.eq.s32.totalorder %s39, 0
      %p248 = por %p246, %p247
      %p249 = scmp.ne.s32.totalorder %s241, %s243
      %p250 = scmp.eq.s32.totalorder %s44, 1
      %p251 = por %p249, %p250
      %p252 = scmp.ne.s32.totalorder %s243, %s244
      %p253 = scmp.eq.s32.totalorder %s44, 0
      %p254 = por %p252, %p253
      %p255 = scmp.ne.s32.totalorder %s243, %s244
      %p256 = scmp.eq.s32.totalorder %s45, 1
      %p257 = por %p255, %p256
      %p259 = scmp.ne.s32.totalorder %s244, %s258
      %p260 = scmp.eq.s32.totalorder %s45, 0
      %p261 = por %p259, %p260
      %s263 = sadd.s32 %s262, 1
      %p266 = scmp.eq.s32.totalorder %s39, 1
      %p267 = scmp.ne.s32.totalorder %s262, %s264
      %p268 = scmp.eq.s32.totalorder %s39, 0
      %p269 = por %p267, %p268
      %p270 = scmp.ne.s32.totalorder %s262, %s264
      %p271 = scmp.eq.s32.totalorder %s44, 1
      %p272 = por %p270, %p271
      %p273 = scmp.ne.s32.totalorder %s264, %s265
      %p274 = scmp.eq.s32.totalorder %s44, 0
      %p275 = por %p273, %p274
      %p276 = scmp.ne.s32.totalorder %s264, %s265
      %p277 = scmp.eq.s32.totalorder %s45, 1
      %p278 = por %p276, %p277
      %p280 = scmp.ne.s32.totalorder %s265, %s279
      %p281 = scmp.eq.s32.totalorder %s45, 0
      %p282 = por %p280, %p281
      %s284 = sadd.s32 %s283, 1
      %p287 = scmp.eq.s32.totalorder %s39, 1
      %p288 = scmp.ne.s32.totalorder %s283, %s285
      %p289 = scmp.eq.s32.totalorder %s39, 0
      %p290 = por %p288, %p289
      %p291 = scmp.ne.s32.totalorder %s283, %s285
      %p292 = scmp.eq.s32.totalorder %s44, 1
      %p293 = por %p291, %p292
      %p294 = scmp.ne.s32.totalorder %s285, %s286
      %p295 = scmp.eq.s32.totalorder %s44, 0
      %p296 = por %p294, %p295
      %p297 = scmp.ne.s32.totalorder %s285, %s286
      %p298 = scmp.eq.s32.totalorder %s45, 1
      %p299 = por %p297, %p298
      %p301 = scmp.ne.s32.totalorder %s286, %s300
      %p302 = scmp.eq.s32.totalorder %s45, 0
      %p303 = por %p301, %p302
      %s305 = sadd.s32 %s304, 1
      %p308 = scmp.eq.s32.totalorder %s39, 1
      %p309 = scmp.ne.s32.totalorder %s304, %s306
      %p310 = scmp.eq.s32.totalorder %s39, 0
      %p311 = por %p309, %p310
      %p312 = scmp.ne.s32.totalorder %s304, %s306
      %p313 = scmp.eq.s32.totalorder %s44, 1
      %p314 = por %p312, %p313
      %p315 = scmp.ne.s32.totalorder %s306, %s307
      %p316 = scmp.eq.s32.totalorder %s44, 0
      %p317 = por %p315, %p316
      %p318 = scmp.ne.s32.totalorder %s306, %s307
      %p319 = scmp.eq.s32.totalorder %s45, 1
      %p320 = por %p318, %p319
      %p322 = scmp.ne.s32.totalorder %s307, %s321
      %p323 = scmp.eq.s32.totalorder %s45, 0
      %p324 = por %p322, %p323
      %s326 = sadd.s32 %s325, 1
      %p329 = scmp.eq.s32.totalorder %s39, 1
      %p330 = scmp.ne.s32.totalorder %s325, %s327
      %p331 = scmp.eq.s32.totalorder %s39, 0
      %p332 = por %p330, %p331
      %p333 = scmp.ne.s32.totalorder %s325, %s327
      %p334 = scmp.eq.s32.totalorder %s44, 1
      %p335 = por %p333, %p334
      %p336 = scmp.ne.s32.totalorder %s327, %s328
      %p337 = scmp.eq.s32.totalorder %s44, 0
      %p338 = por %p336, %p337
      %p339 = scmp.ne.s32.totalorder %s327, %s328
      %p340 = scmp.eq.s32.totalorder %s45, 1
      %p341 = por %p339, %p340
      %p343 = scmp.ne.s32.totalorder %s328, %s342
      %p344 = scmp.eq.s32.totalorder %s45, 0
      %p345 = por %p343, %p344
      %s347 = sadd.s32 %s346, 1
      %p350 = scmp.eq.s32.totalorder %s39, 1
      %p351 = scmp.ne.s32.totalorder %s346, %s348
      %p352 = scmp.eq.s32.totalorder %s39, 0
      %p353 = por %p351, %p352
      %p354 = scmp.ne.s32.totalorder %s346, %s348
      %p355 = scmp.eq.s32.totalorder %s44, 1
      %p356 = por %p354, %p355
      %p357 = scmp.ne.s32.totalorder %s348, %s349
      %p358 = scmp.eq.s32.totalorder %s44, 0
      %p359 = por %p357, %p358
      %p360 = scmp.ne.s32.totalorder %s348, %s349
      %p361 = scmp.eq.s32.totalorder %s45, 1
      %p362 = por %p360, %p361
      %p364 = scmp.ne.s32.totalorder %s349, %s363
      %p365 = scmp.eq.s32.totalorder %s45, 0
      %p366 = por %p364, %p365
      %s368 = sadd.s32 %s367, 1
      %p371 = scmp.eq.s32.totalorder %s39, 1
      %p372 = scmp.ne.s32.totalorder %s367, %s369
      %p373 = scmp.eq.s32.totalorder %s39, 0
      %p374 = por %p372, %p373
      %p375 = scmp.ne.s32.totalorder %s367, %s369
      %p376 = scmp.eq.s32.totalorder %s44, 1
      %p377 = por %p375, %p376
      %p378 = scmp.ne.s32.totalorder %s369, %s370
      %p379 = scmp.eq.s32.totalorder %s44, 0
      %p380 = por %p378, %p379
      %p381 = scmp.ne.s32.totalorder %s369, %s370
      %p382 = scmp.eq.s32.totalorder %s45, 1
      %p383 = por %p381, %p382
      %p385 = scmp.ne.s32.totalorder %s370, %s384
      %p386 = scmp.eq.s32.totalorder %s45, 0
      %p387 = por %p385, %p386
      %s389 = sadd.s32 %s388, 1
      %p392 = scmp.eq.s32.totalorder %s39, 1
      %p393 = scmp.ne.s32.totalorder %s388, %s390
      %p394 = scmp.eq.s32.totalorder %s39, 0
      %p395 = por %p393, %p394
      %p396 = scmp.ne.s32.totalorder %s388, %s390
      %p397 = scmp.eq.s32.totalorder %s44, 1
      %p398 = por %p396, %p397
      %p399 = scmp.ne.s32.totalorder %s390, %s391
      %p400 = scmp.eq.s32.totalorder %s44, 0
      %p401 = por %p399, %p400
      %p402 = scmp.ne.s32.totalorder %s390, %s391
      %p403 = scmp.eq.s32.totalorder %s45, 1
      %p404 = por %p402, %p403
      %p406 = scmp.ne.s32.totalorder %s391, %s405
      %p407 = scmp.eq.s32.totalorder %s45, 0
      %p408 = por %p406, %p407
      %s410 = sadd.s32 %s409, 1
      %p413 = scmp.eq.s32.totalorder %s39, 1
      %p414 = scmp.ne.s32.totalorder %s409, %s411
      %p415 = scmp.eq.s32.totalorder %s39, 0
      %p416 = por %p414, %p415
      %p417 = scmp.ne.s32.totalorder %s409, %s411
      %p418 = scmp.eq.s32.totalorder %s44, 1
      %p419 = por %p417, %p418
      %p420 = scmp.ne.s32.totalorder %s411, %s412
      %p421 = scmp.eq.s32.totalorder %s44, 0
      %p422 = por %p420, %p421
      %p423 = scmp.ne.s32.totalorder %s411, %s412
      %p424 = scmp.eq.s32.totalorder %s45, 1
      %p425 = por %p423, %p424
      %p427 = scmp.ne.s32.totalorder %s412, %s426
      %p428 = scmp.eq.s32.totalorder %s45, 0
      %p429 = por %p427, %p428
      %s431 = sadd.s32 %s430, 1
      %p434 = scmp.eq.s32.totalorder %s39, 1
      %p435 = scmp.ne.s32.totalorder %s430, %s432
      %p436 = scmp.eq.s32.totalorder %s39, 0
      %p437 = por %p435, %p436
      %p438 = scmp.ne.s32.totalorder %s430, %s432
      %p439 = scmp.eq.s32.totalorder %s44, 1
      %p440 = por %p438, %p439
      %p441 = scmp.ne.s32.totalorder %s432, %s433
      %p442 = scmp.eq.s32.totalorder %s44, 0
      %p443 = por %p441, %p442
      %p444 = scmp.ne.s32.totalorder %s432, %s433
      %p445 = scmp.eq.s32.totalorder %s45, 1
      %p446 = por %p444, %p445
      %p448 = scmp.ne.s32.totalorder %s433, %s447
      %p449 = scmp.eq.s32.totalorder %s45, 0
      %p450 = por %p448, %p449
      %s452 = sadd.s32 %s451, 1
      %p455 = scmp.eq.s32.totalorder %s39, 1
      %p456 = scmp.ne.s32.totalorder %s451, %s453
      %p457 = scmp.eq.s32.totalorder %s39, 0
      %p458 = por %p456, %p457
      %p459 = scmp.ne.s32.totalorder %s451, %s453
      %p460 = scmp.eq.s32.totalorder %s44, 1
      %p461 = por %p459, %p460
      %p462 = scmp.ne.s32.totalorder %s453, %s454
      %p463 = scmp.eq.s32.totalorder %s44, 0
      %p464 = por %p462, %p463
      %p465 = scmp.ne.s32.totalorder %s453, %s454
      %p466 = scmp.eq.s32.totalorder %s45, 1
      %p467 = por %p465, %p466
      %p469 = scmp.ne.s32.totalorder %s454, %s468
      %p470 = scmp.eq.s32.totalorder %s45, 0
      %p471 = por %p469, %p470
      %s472 = ssub.s32 %s39, %s46
      %p473 = scmp.eq.s32.totalorder %s472, 0
      %s475 = sadd.s32 %s474, 1
      %s476 = scalar_select %p473, %s474, %s475
      %p479 = pneg %p473
      %p480 = scmp.eq.s32.totalorder %s39, 1
      %p481 = por %p479, %p480
      %p482 = scmp.ne.s32.totalorder %s474, %s477
      %p483 = scmp.eq.s32.totalorder %s39, 0
      %p484 = por %p482, %p483
      %p485 = scmp.ne.s32.totalorder %s474, %s477
      %p486 = scmp.eq.s32.totalorder %s44, 1
      %p487 = por %p485, %p486
      %p488 = scmp.ne.s32.totalorder %s477, %s478
      %p489 = scmp.eq.s32.totalorder %s44, 0
      %p490 = por %p488, %p489
      %p491 = scmp.ne.s32.totalorder %s477, %s478
      %p492 = scmp.eq.s32.totalorder %s45, 1
      %p493 = por %p491, %p492
      %p495 = scmp.ne.s32.totalorder %s478, %s494
      %p496 = scmp.eq.s32.totalorder %s45, 0
      %p497 = por %p495, %p496
      %p498 = scmp.le.s32.totalorder 1, %s39
      %p499 = scmp.lt.s32.totalorder %s39, 3
      %p500 = pnand %p498, %p499
      %p501 = pneg %p500
      // Predicated region
      $region9: #{tpu_custom_call.1} parent=5 // pred_check
        _
      $region10: #{tpu_custom_call.1} parent=5 // pred_check_branch
        %503 = sbr.rel (%p500) target = $region12
      $region11: #{tpu_custom_call.1} parent=5 // pred_region
        %s504 = ssub.s32 %s39, 1
        // Predicated region
        $region13: #{tpu_custom_call.1} parent=11 // pred_check
          %p505 = pneg %p86
        $region14: #{tpu_custom_call.1} parent=11 // pred_check_branch
          %507 = sbr.rel (%p505) target = $region16
        $region15: #{tpu_custom_call.1} parent=11 // pred_region
          %s509 = ssub.s32 1024, 1024
          %510 = vsyncadd [#allocation6], %s509
          %s511 = sshll.u32 [#allocation5], 4
          %s512 = int_to_ptr.vmem [resolvable:$true] %s511
          %517 = dma.hbm_to_vmem [thread:$0]  %s1, 1024, %s512, [#allocation6], 64, 64, 4
        $region16: #{tpu_custom_call.1} parent=11 // pred_fallthru
          _
        // Predicated region
        $region17: #{tpu_custom_call.1} parent=11 // pred_check
          %p518 = pneg %p107
        $region18: #{tpu_custom_call.1} parent=11 // pred_check_branch
          %520 = sbr.rel (%p518) target = $region20
        $region19: #{tpu_custom_call.1} parent=11 // pred_region
          %s522 = ssub.s32 1024, 1024
          %523 = vsyncadd [#allocation6], %s522
          %s524 = sshll.u32 [#allocation7], 4
          %s525 = int_to_ptr.vmem [resolvable:$true] %s524
          %530 = dma.hbm_to_vmem [thread:$0]  %s2, 1024, %s525, [#allocation6], 64, 64, 4
        $region20: #{tpu_custom_call.1} parent=11 // pred_fallthru
          _
        // Predicated region
        $region21: #{tpu_custom_call.1} parent=11 // pred_check
          %p531 = pneg %p128
        $region22: #{tpu_custom_call.1} parent=11 // pred_check_branch
          %533 = sbr.rel (%p531) target = $region24
        $region23: #{tpu_custom_call.1} parent=11 // pred_region
          %s535 = ssub.s32 1024, 1024
          %536 = vsyncadd [#allocation9], %s535
          %s537 = sshll.u32 [#allocation8], 4
          %s538 = int_to_ptr.vmem [resolvable:$true] %s537
          %543 = dma.hbm_to_vmem [thread:$0]  %s3, 1024, %s538, [#allocation9], 64, 64, 4
        $region24: #{tpu_custom_call.1} parent=11 // pred_fallthru
          _
        // Predicated region
        $region25: #{tpu_custom_call.1} parent=11 // pred_check
          %p544 = pneg %p149
        $region26: #{tpu_custom_call.1} parent=11 // pred_check_branch
          %546 = sbr.rel (%p544) target = $region28
        $region27: #{tpu_custom_call.1} parent=11 // pred_region
          %s548 = ssub.s32 1024, 1024
          %549 = vsyncadd [#allocation9], %s548
          %s550 = sshll.u32 [#allocation10], 4
          %s551 = int_to_ptr.vmem [resolvable:$true] %s550
          %556 = dma.hbm_to_vmem [thread:$0]  %s4, 1024, %s551, [#allocation9], 64, 64, 4
        $region28: #{tpu_custom_call.1} parent=11 // pred_fallthru
          _
        // Predicated region
        $region29: #{tpu_custom_call.1} parent=11 // pred_check
          %p557 = pneg %p170
        $region30: #{tpu_custom_call.1} parent=11 // pred_check_branch
          %559 = sbr.rel (%p557) target = $region32
        $region31: #{tpu_custom_call.1} parent=11 // pred_region
          _
        $region32: #{tpu_custom_call.1} parent=11 // pred_fallthru
          _
        // Predicated region
        $region33: #{tpu_custom_call.1} parent=11 // pred_check
          %p560 = pneg %p191
        $region34: #{tpu_custom_call.1} parent=11 // pred_check_branch
          %562 = sbr.rel (%p560) target = $region36
        $region35: #{tpu_custom_call.1} parent=11 // pred_region
          %s564 = ssub.s32 1024, 1024
          %565 = vsyncadd [#allocation12], %s564
          %s566 = sshll.u32 [#allocation11], 4
          %s567 = int_to_ptr.vmem [resolvable:$true] %s566
          %572 = dma.hbm_to_vmem [thread:$0]  %s6, 1024, %s567, [#allocation12], 64, 64, 4
        $region36: #{tpu_custom_call.1} parent=11 // pred_fallthru
          _
        // Predicated region
        $region37: #{tpu_custom_call.1} parent=11 // pred_check
          %p573 = pneg %p212
        $region38: #{tpu_custom_call.1} parent=11 // pred_check_branch
          %575 = sbr.rel (%p573) target = $region40
        $region39: #{tpu_custom_call.1} parent=11 // pred_region
          _
        $region40: #{tpu_custom_call.1} parent=11 // pred_fallthru
          _
        // Predicated region
        $region41: #{tpu_custom_call.1} parent=11 // pred_check
          %p576 = pneg %p233
        $region42: #{tpu_custom_call.1} parent=11 // pred_check_branch
          %578 = sbr.rel (%p576) target = $region44
        $region43: #{tpu_custom_call.1} parent=11 // pred_region
          %s580 = ssub.s32 1024, 1024
          %581 = vsyncadd [#allocation12], %s580
          %s582 = sshll.u32 [#allocation13], 4
          %s583 = int_to_ptr.vmem [resolvable:$true] %s582
          %588 = dma.hbm_to_vmem [thread:$0]  %s8, 1024, %s583, [#allocation12], 64, 64, 4
        $region44: #{tpu_custom_call.1} parent=11 // pred_fallthru
          _
        // Predicated region
        $region45: #{tpu_custom_call.1} parent=11 // pred_check
          %p589 = pneg %p254
        $region46: #{tpu_custom_call.1} parent=11 // pred_check_branch
          %591 = sbr.rel (%p589) target = $region48
        $region47: #{tpu_custom_call.1} parent=11 // pred_region
          _
        $region48: #{tpu_custom_call.1} parent=11 // pred_fallthru
          _
        // Predicated region
        $region49: #{tpu_custom_call.1} parent=11 // pred_check
          %p592 = pneg %p275
        $region50: #{tpu_custom_call.1} parent=11 // pred_check_branch
          %594 = sbr.rel (%p592) target = $region52
        $region51: #{tpu_custom_call.1} parent=11 // pred_region
          %s596 = ssub.s32 1024, 1024
          %597 = vsyncadd [#allocation15], %s596
          %s598 = sshll.u32 [#allocation14], 4
          %s599 = int_to_ptr.vmem [resolvable:$true] %s598
          %604 = dma.hbm_to_vmem [thread:$0]  %s10, 1024, %s599, [#allocation15], 64, 64, 4
        $region52: #{tpu_custom_call.1} parent=11 // pred_fallthru
          _
        // Predicated region
        $region53: #{tpu_custom_call.1} parent=11 // pred_check
          %p605 = pneg %p296
        $region54: #{tpu_custom_call.1} parent=11 // pred_check_branch
          %607 = sbr.rel (%p605) target = $region56
        $region55: #{tpu_custom_call.1} parent=11 // pred_region
          _
        $region56: #{tpu_custom_call.1} parent=11 // pred_fallthru
          _
        // Predicated region
        $region57: #{tpu_custom_call.1} parent=11 // pred_check
          %p608 = pneg %p317
        $region58: #{tpu_custom_call.1} parent=11 // pred_check_branch
          %610 = sbr.rel (%p608) target = $region60
        $region59: #{tpu_custom_call.1} parent=11 // pred_region
          %s612 = ssub.s32 1024, 1024
          %613 = vsyncadd [#allocation15], %s612
          %s614 = sshll.u32 [#allocation16], 4
          %s615 = int_to_ptr.vmem [resolvable:$true] %s614
          %620 = dma.hbm_to_vmem [thread:$0]  %s12, 1024, %s615, [#allocation15], 64, 64, 4
        $region60: #{tpu_custom_call.1} parent=11 // pred_fallthru
          _
        // Predicated region
        $region61: #{tpu_custom_call.1} parent=11 // pred_check
          %p621 = pneg %p338
        $region62: #{tpu_custom_call.1} parent=11 // pred_check_branch
          %623 = sbr.rel (%p621) target = $region64
        $region63: #{tpu_custom_call.1} parent=11 // pred_region
          %s625 = ssub.s32 16, 16
          %626 = vsyncadd [#allocation18], %s625
          %s628 = sshll.u32 [#allocation17], 4
          %s629 = int_to_ptr.vmem [resolvable:$true] %s628
          %631 = dma.hbm_to_vmem [thread:$0]  %s13, 16, %s629, [#allocation18]
        $region64: #{tpu_custom_call.1} parent=11 // pred_fallthru
          _
        // Predicated region
        $region65: #{tpu_custom_call.1} parent=11 // pred_check
          %p632 = pneg %p359
        $region66: #{tpu_custom_call.1} parent=11 // pred_check_branch
          %634 = sbr.rel (%p632) target = $region68
        $region67: #{tpu_custom_call.1} parent=11 // pred_region
          %s636 = ssub.s32 1024, 1024
          %637 = vsyncadd [#allocation18], %s636
          %s638 = sshll.u32 [#allocation19], 4
          %s639 = int_to_ptr.vmem [resolvable:$true] %s638
          %644 = dma.hbm_to_vmem [thread:$0]  %s14, 1024, %s639, [#allocation18], 64, 64, 4
        $region68: #{tpu_custom_call.1} parent=11 // pred_fallthru
          _
        // Predicated region
        $region69: #{tpu_custom_call.1} parent=11 // pred_check
          %p645 = pneg %p380
        $region70: #{tpu_custom_call.1} parent=11 // pred_check_branch
          %647 = sbr.rel (%p645) target = $region72
        $region71: #{tpu_custom_call.1} parent=11 // pred_region
          %s649 = ssub.s32 16, 16
          %650 = vsyncadd [#allocation21], %s649
          %s652 = sshll.u32 [#allocation20], 4
          %s653 = int_to_ptr.vmem [resolvable:$true] %s652
          %655 = dma.hbm_to_vmem [thread:$0]  %s15, 16, %s653, [#allocation21]
        $region72: #{tpu_custom_call.1} parent=11 // pred_fallthru
          _
        // Predicated region
        $region73: #{tpu_custom_call.1} parent=11 // pred_check
          %p656 = pneg %p401
        $region74: #{tpu_custom_call.1} parent=11 // pred_check_branch
          %658 = sbr.rel (%p656) target = $region76
        $region75: #{tpu_custom_call.1} parent=11 // pred_region
          %s660 = ssub.s32 1024, 1024
          %661 = vsyncadd [#allocation21], %s660
          %s662 = sshll.u32 [#allocation22], 4
          %s663 = int_to_ptr.vmem [resolvable:$true] %s662
          %668 = dma.hbm_to_vmem [thread:$0]  %s16, 1024, %s663, [#allocation21], 64, 64, 4
        $region76: #{tpu_custom_call.1} parent=11 // pred_fallthru
          _
        // Predicated region
        $region77: #{tpu_custom_call.1} parent=11 // pred_check
          %p669 = pneg %p422
        $region78: #{tpu_custom_call.1} parent=11 // pred_check_branch
          %671 = sbr.rel (%p669) target = $region80
        $region79: #{tpu_custom_call.1} parent=11 // pred_region
          %s673 = ssub.s32 16, 16
          %674 = vsyncadd [#allocation24], %s673
          %s676 = sshll.u32 [#allocation23], 4
          %s677 = int_to_ptr.vmem [resolvable:$true] %s676
          %679 = dma.hbm_to_vmem [thread:$0]  %s17, 16, %s677, [#allocation24]
        $region80: #{tpu_custom_call.1} parent=11 // pred_fallthru
          _
        // Predicated region
        $region81: #{tpu_custom_call.1} parent=11 // pred_check
          %p680 = pneg %p443
        $region82: #{tpu_custom_call.1} parent=11 // pred_check_branch
          %682 = sbr.rel (%p680) target = $region84
        $region83: #{tpu_custom_call.1} parent=11 // pred_region
          _
        $region84: #{tpu_custom_call.1} parent=11 // pred_fallthru
          _
        // Predicated region
        $region85: #{tpu_custom_call.1} parent=11 // pred_check
          %p683 = pneg %p464
        $region86: #{tpu_custom_call.1} parent=11 // pred_check_branch
          %685 = sbr.rel (%p683) target = $region88
        $region87: #{tpu_custom_call.1} parent=11 // pred_region
          _
        $region88: #{tpu_custom_call.1} parent=11 // pred_fallthru
          _
      $region12: #{tpu_custom_call.1} parent=5 // pred_fallthru
        _
      %p686 = scmp.lt.s32.totalorder %s39, 2
      // Predicated region
      $region89: #{tpu_custom_call.1} parent=5 // pred_check
        %p687 = pneg %p686
      $region90: #{tpu_custom_call.1} parent=5 // pred_check_branch
        %689 = sbr.rel (%p687) target = $region92
      $region91: #{tpu_custom_call.1} parent=5 // pred_region
        // Predicated region
        $region93: #{tpu_custom_call.1} parent=91 // pred_check
          %p690 = pneg %p59
        $region94: #{tpu_custom_call.1} parent=91 // pred_check_branch
          %692 = sbr.rel (%p690) target = $region96
        $region95: #{tpu_custom_call.1} parent=91 // pred_region
          %s693 = sand.u32 %s49, 1
          %s694 = scalar_lea.sflag [#allocation3], %s693
          %s695 = sand.u32 %s49, 1
          %s696 = smul.addr %s695, 160
          %s697 = scalar_lea.vmem [#allocation2], %s696
          %s698 = smul.u32 40, %s39
          %s700 = ssub.s32 2560, 2560
          %701 = vsyncadd %s694, %s700
          %s702 = smul.addr %s698, 64
          %s703 = scalar_lea.hbm %s0, %s702
          %s704 = sshll.u32 %s697, 4
          %s705 = int_to_ptr.vmem [resolvable:$true] %s704
          %710 = dma.hbm_to_vmem [thread:$0]  %s703, 2560, %s705, %s694, 64, 64, 4
        $region96: #{tpu_custom_call.1} parent=91 // pred_fallthru
          _
      $region92: #{tpu_custom_call.1} parent=5 // pred_fallthru
        _
      %p711 = scmp.le.s32.totalorder 1, %s39
      %p712 = scmp.lt.s32.totalorder %s39, 3
      %p713 = pnand %p711, %p712
      %p714 = pneg %p713
      // Predicated region
      $region97: #{tpu_custom_call.1} parent=5 // pred_check
        _
      $region98: #{tpu_custom_call.1} parent=5 // pred_check_branch
        %716 = sbr.rel (%p713) target = $region100
      $region99: #{tpu_custom_call.1} parent=5 // pred_region
        %s717 = ssub.s32 %s39, 1
        %s718 = sand.u32 %s52, 1
        %s719 = scalar_lea.sflag [#allocation3], %s718
        %s720 = sand.u32 %s52, 1
        %s721 = smul.addr %s720, 160
        %s722 = scalar_lea.vmem [#allocation2], %s721
        // Predicated region
        $region101: #{tpu_custom_call.1} parent=99 // pred_check
          %p723 = pneg %p65
        $region102: #{tpu_custom_call.1} parent=99 // pred_check_branch
          %725 = sbr.rel (%p723) target = $region104
        $region103: #{tpu_custom_call.1} parent=99 // pred_region
          %726 = dma.done %s719, 2560
        $region104: #{tpu_custom_call.1} parent=99 // pred_fallthru
          _
        // Predicated region
        $region105: #{tpu_custom_call.1} parent=99 // pred_check
          %p727 = pneg %p86
        $region106: #{tpu_custom_call.1} parent=99 // pred_check_branch
          %729 = sbr.rel (%p727) target = $region108
        $region107: #{tpu_custom_call.1} parent=99 // pred_region
          %730 = dma.done [#allocation6], 1024
        $region108: #{tpu_custom_call.1} parent=99 // pred_fallthru
          _
        // Predicated region
        $region109: #{tpu_custom_call.1} parent=99 // pred_check
          %p731 = pneg %p107
        $region110: #{tpu_custom_call.1} parent=99 // pred_check_branch
          %733 = sbr.rel (%p731) target = $region112
        $region111: #{tpu_custom_call.1} parent=99 // pred_region
          %734 = dma.done [#allocation6], 1024
        $region112: #{tpu_custom_call.1} parent=99 // pred_fallthru
          _
        // Predicated region
        $region113: #{tpu_custom_call.1} parent=99 // pred_check
          %p735 = pneg %p128
        $region114: #{tpu_custom_call.1} parent=99 // pred_check_branch
          %737 = sbr.rel (%p735) target = $region116
        $region115: #{tpu_custom_call.1} parent=99 // pred_region
          %738 = dma.done [#allocation9], 1024
        $region116: #{tpu_custom_call.1} parent=99 // pred_fallthru
          _
        // Predicated region
        $region117: #{tpu_custom_call.1} parent=99 // pred_check
          %p739 = pneg %p149
        $region118: #{tpu_custom_call.1} parent=99 // pred_check_branch
          %741 = sbr.rel (%p739) target = $region120
        $region119: #{tpu_custom_call.1} parent=99 // pred_region
          %742 = dma.done [#allocation9], 1024
        $region120: #{tpu_custom_call.1} parent=99 // pred_fallthru
          _
        // Predicated region
        $region121: #{tpu_custom_call.1} parent=99 // pred_check
          %p743 = pneg %p191
        $region122: #{tpu_custom_call.1} parent=99 // pred_check_branch
          %745 = sbr.rel (%p743) target = $region124
        $region123: #{tpu_custom_call.1} parent=99 // pred_region
          %746 = dma.done [#allocation12], 1024
        $region124: #{tpu_custom_call.1} parent=99 // pred_fallthru
          _
        // Predicated region
        $region125: #{tpu_custom_call.1} parent=99 // pred_check
          %p747 = pneg %p233
        $region126: #{tpu_custom_call.1} parent=99 // pred_check_branch
          %749 = sbr.rel (%p747) target = $region128
        $region127: #{tpu_custom_call.1} parent=99 // pred_region
          %750 = dma.done [#allocation12], 1024
        $region128: #{tpu_custom_call.1} parent=99 // pred_fallthru
          _
        // Predicated region
        $region129: #{tpu_custom_call.1} parent=99 // pred_check
          %p751 = pneg %p275
        $region130: #{tpu_custom_call.1} parent=99 // pred_check_branch
          %753 = sbr.rel (%p751) target = $region132
        $region131: #{tpu_custom_call.1} parent=99 // pred_region
          %754 = dma.done [#allocation15], 1024
        $region132: #{tpu_custom_call.1} parent=99 // pred_fallthru
          _
        // Predicated region
        $region133: #{tpu_custom_call.1} parent=99 // pred_check
          %p755 = pneg %p317
        $region134: #{tpu_custom_call.1} parent=99 // pred_check_branch
          %757 = sbr.rel (%p755) target = $region136
        $region135: #{tpu_custom_call.1} parent=99 // pred_region
          %758 = dma.done [#allocation15], 1024
        $region136: #{tpu_custom_call.1} parent=99 // pred_fallthru
          _
        // Predicated region
        $region137: #{tpu_custom_call.1} parent=99 // pred_check
          %p759 = pneg %p338
        $region138: #{tpu_custom_call.1} parent=99 // pred_check_branch
          %761 = sbr.rel (%p759) target = $region140
        $region139: #{tpu_custom_call.1} parent=99 // pred_region
          %762 = dma.done [#allocation18], 16
        $region140: #{tpu_custom_call.1} parent=99 // pred_fallthru
          _
        // Predicated region
        $region141: #{tpu_custom_call.1} parent=99 // pred_check
          %p763 = pneg %p359
        $region142: #{tpu_custom_call.1} parent=99 // pred_check_branch
          %765 = sbr.rel (%p763) target = $region144
        $region143: #{tpu_custom_call.1} parent=99 // pred_region
          %766 = dma.done [#allocation18], 1024
        $region144: #{tpu_custom_call.1} parent=99 // pred_fallthru
          _
        // Predicated region
        $region145: #{tpu_custom_call.1} parent=99 // pred_check
          %p767 = pneg %p380
        $region146: #{tpu_custom_call.1} parent=99 // pred_check_branch
          %769 = sbr.rel (%p767) target = $region148
        $region147: #{tpu_custom_call.1} parent=99 // pred_region
          %770 = dma.done [#allocation21], 16
        $region148: #{tpu_custom_call.1} parent=99 // pred_fallthru
          _
        // Predicated region
        $region149: #{tpu_custom_call.1} parent=99 // pred_check
          %p771 = pneg %p401
        $region150: #{tpu_custom_call.1} parent=99 // pred_check_branch
          %773 = sbr.rel (%p771) target = $region152
        $region151: #{tpu_custom_call.1} parent=99 // pred_region
          %774 = dma.done [#allocation21], 1024
        $region152: #{tpu_custom_call.1} parent=99 // pred_fallthru
          _
        // Predicated region
        $region153: #{tpu_custom_call.1} parent=99 // pred_check
          %p775 = pneg %p422
        $region154: #{tpu_custom_call.1} parent=99 // pred_check_branch
          %777 = sbr.rel (%p775) target = $region156
        $region155: #{tpu_custom_call.1} parent=99 // pred_region
          %778 = dma.done [#allocation24], 16
        $region156: #{tpu_custom_call.1} parent=99 // pred_fallthru
          _
        %s779 = sand.u32 %s52, 1
        %s780 = scalar_lea.sflag [#allocation3], %s779
        %s781 = sand.u32 %s52, 1
        %s782 = smul.addr %s781, 160
        %s783 = scalar_lea.vmem [#allocation2], %s782
        %p784 = pneg %p65
        %p785 = pneg %p62
        %p786 = pneg %p86
        %p787 = pneg %p83
        %p788 = pneg %p107
        %p789 = pneg %p104
        %p790 = pneg %p128
        %p791 = pneg %p125
        %p792 = pneg %p149
        %p793 = pneg %p146
        %p794 = pneg %p170
        %p795 = pneg %p167
        %p796 = pneg %p191
        %p797 = pneg %p188
        %p798 = pneg %p212
        %p799 = pneg %p209
        %p800 = pneg %p233
        %p801 = pneg %p230
        %p802 = pneg %p254
        %p803 = pneg %p251
        %p804 = pneg %p275
        %p805 = pneg %p272
        %p806 = pneg %p296
        %p807 = pneg %p293
        %p808 = pneg %p317
        %p809 = pneg %p314
        %p810 = pneg %p338
        %p811 = pneg %p335
        %p812 = pneg %p359
        %p813 = pneg %p356
        %p814 = pneg %p380
        %p815 = pneg %p377
        %p816 = pneg %p401
        %p817 = pneg %p398
        %p818 = pneg %p422
        %p819 = pneg %p419
        %p820 = pneg %p443
        %p821 = pneg %p440
        %p822 = pneg %p464
        %p823 = pneg %p461
        %p824 = pneg %p490
        %p825 = pneg %p487
        %s826 = sand.u32 %s477, 1
        %s827 = scalar_lea.sflag [#allocation4], %s826
        %s828 = sand.u32 %s477, 1
        %s829 = smul.addr %s828, 160
        %s830 = scalar_lea.vmem [#allocation25], %s829
        %s831 = smul.u32 40, %s44
        %s832 = smul.u32 40, %s44
        %v834 = vld [vmem:[%s722] sm:$0xf]
        %v835 = vld [vmem:[%s722 + $0x4] sm:$0xf]
        %v836 = vld [vmem:[%s722 + $0x8] sm:$0xf]
        %v837 = vld [vmem:[%s722 + $0xc] sm:$0xf]
        %v838 = vld [vmem:[%s722 + $0x10] sm:$0xf]
        %v839 = vld [vmem:[%s722 + $0x14] sm:$0xf]
        %v840 = vld [vmem:[%s722 + $0x18] sm:$0xf]
        %v841 = vld [vmem:[%s722 + $0x1c] sm:$0xf]
        %v842 = vld [vmem:[%s722 + $0x20] sm:$0xf]
        %v843 = vld [vmem:[%s722 + $0x24] sm:$0xf]
        %v844 = vld [vmem:[%s722 + $0x28] sm:$0xf]
        %v845 = vld [vmem:[%s722 + $0x2c] sm:$0xf]
        %v846 = vld [vmem:[%s722 + $0x30] sm:$0xf]
        %v847 = vld [vmem:[%s722 + $0x34] sm:$0xf]
        %v848 = vld [vmem:[%s722 + $0x38] sm:$0xf]
        %v849 = vld [vmem:[%s722 + $0x3c] sm:$0xf]
        %v850 = vld [vmem:[%s722 + $0x40] sm:$0xf]
        %v851 = vld [vmem:[%s722 + $0x44] sm:$0xf]
        %v852 = vld [vmem:[%s722 + $0x48] sm:$0xf]
        %v853 = vld [vmem:[%s722 + $0x4c] sm:$0xf]
        %v854 = vld [vmem:[%s722 + $0x50] sm:$0xf]
        %v855 = vld [vmem:[%s722 + $0x54] sm:$0xf]
        %v856 = vld [vmem:[%s722 + $0x58] sm:$0xf]
        %v857 = vld [vmem:[%s722 + $0x5c] sm:$0xf]
        %v858 = vld [vmem:[%s722 + $0x60] sm:$0xf]
        %v859 = vld [vmem:[%s722 + $0x64] sm:$0xf]
        %v860 = vld [vmem:[%s722 + $0x68] sm:$0xf]
        %v861 = vld [vmem:[%s722 + $0x6c] sm:$0xf]
        %v862 = vld [vmem:[%s722 + $0x70] sm:$0xf]
        %v863 = vld [vmem:[%s722 + $0x74] sm:$0xf]
        %v864 = vld [vmem:[%s722 + $0x78] sm:$0xf]
        %v865 = vld [vmem:[%s722 + $0x7c] sm:$0xf]
        %v866 = vld [vmem:[%s722 + $0x80] sm:$0xf]
        %v867 = vld [vmem:[%s722 + $0x84] sm:$0xf]
        %v868 = vld [vmem:[%s722 + $0x88] sm:$0xf]
        %v869 = vld [vmem:[%s722 + $0x8c] sm:$0xf]
        %v870 = vld [vmem:[%s722 + $0x90] sm:$0xf]
        %v871 = vld [vmem:[%s722 + $0x94] sm:$0xf]
        %v872 = vld [vmem:[%s722 + $0x98] sm:$0xf]
        %v873 = vld [vmem:[%s722 + $0x9c] sm:$0xf]
        %v874 = vld [vmem:[#allocation5] sm:$0xf]
        %v875 = vld [vmem:[#allocation5 + $0x4] sm:$0xf]
        %v876 = vld [vmem:[#allocation5 + $0x8] sm:$0xf]
        %v877 = vld [vmem:[#allocation5 + $0xc] sm:$0xf]
        %v878 = vld [vmem:[#allocation5 + $0x10] sm:$0xf]
        %v879 = vld [vmem:[#allocation5 + $0x14] sm:$0xf]
        %v880 = vld [vmem:[#allocation5 + $0x18] sm:$0xf]
        %v881 = vld [vmem:[#allocation5 + $0x1c] sm:$0xf]
        %v882 = vld [vmem:[#allocation5 + $0x20] sm:$0xf]
        %v883 = vld [vmem:[#allocation5 + $0x24] sm:$0xf]
        %v884 = vld [vmem:[#allocation5 + $0x28] sm:$0xf]
        %v885 = vld [vmem:[#allocation5 + $0x2c] sm:$0xf]
        %v886 = vld [vmem:[#allocation5 + $0x30] sm:$0xf]
        %v887 = vld [vmem:[#allocation5 + $0x34] sm:$0xf]
        %v888 = vld [vmem:[#allocation5 + $0x38] sm:$0xf]
        %v889 = vld [vmem:[#allocation5 + $0x3c] sm:$0xf]
        %v930 = vunpack.c.l.b16 %v834
        %v931 = vunpack.c.l.b16 %v835
        %v932 = vunpack.c.l.b16 %v836
        %v933 = vunpack.c.l.b16 %v837
        %v934 = vunpack.c.l.b16 %v838
        %v935 = vunpack.c.l.b16 %v839
        %v936 = vunpack.c.l.b16 %v840
        %v937 = vunpack.c.l.b16 %v841
        %v938 = vunpack.c.l.b16 %v842
        %v939 = vunpack.c.l.b16 %v843
        %v940 = vunpack.c.l.b16 %v844
        %v941 = vunpack.c.l.b16 %v845
        %v942 = vunpack.c.l.b16 %v846
        %v943 = vunpack.c.l.b16 %v847
        %v944 = vunpack.c.l.b16 %v848
        %v945 = vunpack.c.l.b16 %v849
        %v946 = vunpack.c.l.b16 %v850
        %v947 = vunpack.c.l.b16 %v851
        %v948 = vunpack.c.l.b16 %v852
        %v949 = vunpack.c.l.b16 %v853
        %v950 = vunpack.c.l.b16 %v854
        %v951 = vunpack.c.l.b16 %v855
        %v952 = vunpack.c.l.b16 %v856
        %v953 = vunpack.c.l.b16 %v857
        %v954 = vunpack.c.l.b16 %v858
        %v955 = vunpack.c.l.b16 %v859
        %v956 = vunpack.c.l.b16 %v860
        %v957 = vunpack.c.l.b16 %v861
        %v958 = vunpack.c.l.b16 %v862
        %v959 = vunpack.c.l.b16 %v863
        %v960 = vunpack.c.l.b16 %v864
        %v961 = vunpack.c.l.b16 %v865
        %v962 = vunpack.c.l.b16 %v866
        %v963 = vunpack.c.l.b16 %v867
        %v964 = vunpack.c.l.b16 %v868
        %v965 = vunpack.c.l.b16 %v869
        %v966 = vunpack.c.l.b16 %v870
        %v967 = vunpack.c.l.b16 %v871
        %v968 = vunpack.c.l.b16 %v872
        %v969 = vunpack.c.l.b16 %v873
        %v970 = vpack.c.b16 %v931, %v930
        %v971 = vpack.c.b16 %v933, %v932
        %v972 = vpack.c.b16 %v935, %v934
        %v973 = vpack.c.b16 %v937, %v936
        %v974 = vpack.c.b16 %v939, %v938
        %v975 = vpack.c.b16 %v941, %v940
        %v976 = vpack.c.b16 %v943, %v942
        %v977 = vpack.c.b16 %v945, %v944
        %v978 = vpack.c.b16 %v947, %v946
        %v979 = vpack.c.b16 %v949, %v948
        %v980 = vpack.c.b16 %v951, %v950
        %v981 = vpack.c.b16 %v953, %v952
        %v982 = vpack.c.b16 %v955, %v954
        %v983 = vpack.c.b16 %v957, %v956
        %v984 = vpack.c.b16 %v959, %v958
        %v985 = vpack.c.b16 %v961, %v960
        %v986 = vpack.c.b16 %v963, %v962
        %v987 = vpack.c.b16 %v965, %v964
        %v988 = vpack.c.b16 %v967, %v966
        %v989 = vpack.c.b16 %v969, %v968
        %v1026 = vunpack.c.l.b16 %v874
        %v1027 = vunpack.c.l.b16 %v875
        %v1028 = vunpack.c.l.b16 %v876
        %v1029 = vunpack.c.l.b16 %v877
        %v1030 = vunpack.c.l.b16 %v878
        %v1031 = vunpack.c.l.b16 %v879
        %v1032 = vunpack.c.l.b16 %v880
        %v1033 = vunpack.c.l.b16 %v881
        %v1034 = vunpack.c.l.b16 %v882
        %v1035 = vunpack.c.l.b16 %v883
        %v1036 = vunpack.c.l.b16 %v884
        %v1037 = vunpack.c.l.b16 %v885
        %v1038 = vunpack.c.l.b16 %v886
        %v1039 = vunpack.c.l.b16 %v887
        %v1040 = vunpack.c.l.b16 %v888
        %v1041 = vunpack.c.l.b16 %v889
        %v1042 = vpack.c.b16 %v1027, %v1026
        %v1043 = vpack.c.b16 %v1029, %v1028
        %v1044 = vpack.c.b16 %v1031, %v1030
        %v1045 = vpack.c.b16 %v1033, %v1032
        %v1046 = vpack.c.b16 %v1035, %v1034
        %v1047 = vpack.c.b16 %v1037, %v1036
        %v1048 = vpack.c.b16 %v1039, %v1038
        %v1049 = vpack.c.b16 %v1041, %v1040
        %1058 = vmatprep.subr.bf16.mxu0 0
        %1059 = vmatpush1.bf16.msra.mxu0 %v1042
        %1060 = vmatprep.subr.bf16.mxu0 0
        %1061 = vmatpush1.bf16.msra.mxu0 %v1043
        %1062 = vmatprep.subr.bf16.mxu0 0
        %1063 = vmatpush1.bf16.msra.mxu0 %v1044
        %1064 = vmatprep.subr.bf16.mxu0 0
        %1065 = vmatpush1.bf16.msra.mxu0 %v1045
        %1066 = vmatprep.subr.bf16.mxu0 0
        %1067 = vmatpush1.bf16.msra.mxu0 %v1046
        %1068 = vmatprep.subr.bf16.mxu0 0
        %1069 = vmatpush1.bf16.msra.mxu0 %v1047
        %1070 = vmatprep.subr.bf16.mxu0 0
        %1071 = vmatpush1.bf16.msra.mxu0 %v1048
        %1072 = vmatprep.subr.bf16.mxu0 0
        %1073 = vmatpush1.bf16.msra.mxu0 %v1049
        %1074 = vmatprep.subr.bf16.mxu0 0
        %1075 = vmatpush1.bf16.msra.mxu0 0
        %1076 = vmatprep.subr.bf16.mxu0 0
        %1077 = vmatpush1.bf16.msra.mxu0 0
        %1078 = vmatprep.subr.bf16.mxu0 0
        %1079 = vmatpush1.bf16.msra.mxu0 0
        %1080 = vmatprep.subr.bf16.mxu0 0
        %1081 = vmatpush1.bf16.msra.mxu0 0
        %1082 = vmatprep.subr.bf16.mxu0 0
        %1083 = vmatpush1.bf16.msra.mxu0 0
        %1084 = vmatprep.subr.bf16.mxu0 0
        %1085 = vmatpush1.bf16.msra.mxu0 0
        %1086 = vmatprep.subr.bf16.mxu0 0
        %1087 = vmatpush1.bf16.msra.mxu0 0
        %1088 = vmatprep.subr.bf16.mxu0 0
        %1089 = vmatpush1.bf16.msra.mxu0 0
        %1090 = vmatprep.mubr.bf16.mxu0 0
        %1091 = vmatmul.mubr.bf16.gmra.mrb[0].mxu0 %v970
        %v1092 = vpop.f32.mrb[0].mxu0
        %v1093 = vadd.f32 0.0, %v1092
        %v1094 = vpop.f32.mrb[0].mxu0
        %v1095 = vpop.f32.mrb[0].mxu0
        %v1096 = vadd.f32 0.0, %v1095
        %v1097 = vpop.f32.mrb[0].mxu0
        %1098 = vmatprep.mubr.bf16.mxu0 0
        %1099 = vmatmul.mubr.bf16.gmra.mrb[0].mxu0 %v971
        %v1100 = vpop.f32.mrb[0].mxu0
        %v1101 = vadd.f32 0.0, %v1100
        %v1102 = vpop.f32.mrb[0].mxu0
        %v1103 = vpop.f32.mrb[0].mxu0
        %v1104 = vadd.f32 0.0, %v1103
        %v1105 = vpop.f32.mrb[0].mxu0
        %1106 = vmatprep.mubr.bf16.mxu0 0
        %1107 = vmatmul.mubr.bf16.gmra.mrb[0].mxu0 %v972
        %v1108 = vpop.f32.mrb[0].mxu0
        %v1109 = vadd.f32 0.0, %v1108
        %v1110 = vpop.f32.mrb[0].mxu0
        %v1111 = vpop.f32.mrb[0].mxu0
        %v1112 = vadd.f32 0.0, %v1111
        %v1113 = vpop.f32.mrb[0].mxu0
        %1114 = vmatprep.mubr.bf16.mxu0 0
        %1115 = vmatmul.mubr.bf16.gmra.mrb[0].mxu0 %v973
        %v1116 = vpop.f32.mrb[0].mxu0
        %v1117 = vadd.f32 0.0, %v1116
        %v1118 = vpop.f32.mrb[0].mxu0
        %v1119 = vpop.f32.mrb[0].mxu0
        %v1120 = vadd.f32 0.0, %v1119
        %v1121 = vpop.f32.mrb[0].mxu0
        %1122 = vmatprep.mubr.bf16.mxu0 0
        %1123 = vmatmul.mubr.bf16.gmra.mrb[0].mxu0 %v974
        %v1124 = vpop.f32.mrb[0].mxu0
        %v1125 = vadd.f32 0.0, %v1124
        %v1126 = vpop.f32.mrb[0].mxu0
        %v1127 = vpop.f32.mrb[0].mxu0
        %v1128 = vadd.f32 0.0, %v1127
        %v1129 = vpop.f32.mrb[0].mxu0
        %1130 = vmatprep.mubr.bf16.mxu0 0
        %1131 = vmatmul.mubr.bf16.gmra.mrb[0].mxu0 %v975
        %v1132 = vpop.f32.mrb[0].mxu0
        %v1133 = vadd.f32 0.0, %v1132
        %v1134 = vpop.f32.mrb[0].mxu0
        %v1135 = vpop.f32.mrb[0].mxu0
        %v1136 = vadd.f32 0.0, %v1135
        %v1137 = vpop.f32.mrb[0].mxu0
        %1138 = vmatprep.mubr.bf16.mxu0 0
        %1139 = vmatmul.mubr.bf16.gmra.mrb[0].mxu0 %v976
        %v1140 = vpop.f32.mrb[0].mxu0
        %v1141 = vadd.f32 0.0, %v1140
        %v1142 = vpop.f32.mrb[0].mxu0
        %v1143 = vpop.f32.mrb[0].mxu0
        %v1144 = vadd.f32 0.0, %v1143
        %v1145 = vpop.f32.mrb[0].mxu0
        %1146 = vmatprep.mubr.bf16.mxu0 0
        %1147 = vmatmul.mubr.bf16.gmra.mrb[0].mxu0 %v977
        %v1148 = vpop.f32.mrb[0].mxu0
        %v1149 = vadd.f32 0.0, %v1148
        %v1150 = vpop.f32.mrb[0].mxu0
        %v1151 = vpop.f32.mrb[0].mxu0
        %v1152 = vadd.f32 0.0, %v1151
        %v1153 = vpop.f32.mrb[0].mxu0
        %1154 = vmatprep.mubr.bf16.mxu0 0
        %1155 = vmatmul.mubr.bf16.gmra.mrb[0].mxu0 %v978
        %v1156 = vpop.f32.mrb[0].mxu0
        %v1157 = vadd.f32 0.0, %v1156
        %v1158 = vpop.f32.mrb[0].mxu0
        %v1159 = vpop.f32.mrb[0].mxu0
        %v1160 = vadd.f32 0.0, %v1159
        %v1161 = vpop.f32.mrb[0].mxu0
        %1162 = vmatprep.mubr.bf16.mxu0 0
        %1163 = vmatmul.mubr.bf16.gmra.mrb[0].mxu0 %v979
        %v1164 = vpop.f32.mrb[0].mxu0
        %v1165 = vadd.f32 0.0, %v1164
        %v1166 = vpop.f32.mrb[0].mxu0
        %v1167 = vpop.f32.mrb[0].mxu0
        %v1168 = vadd.f32 0.0, %v1167
        %v1169 = vpop.f32.mrb[0].mxu0
        %1170 = vmatprep.mubr.bf16.mxu0 0
        %1171 = vmatmul.mubr.bf16.gmra.mrb[0].mxu0 %v980
        %v1172 = vpop.f32.mrb[0].mxu0
        %v1173 = vadd.f32 0.0, %v1172
        %v1174 = vpop.f32.mrb[0].mxu0
        %v1175 = vpop.f32.mrb[0].mxu0
        %v1176 = vadd.f32 0.0, %v1175
        %v1177 = vpop.f32.mrb[0].mxu0
        %1178 = vmatprep.mubr.bf16.mxu0 0
        %1179 = vmatmul.mubr.bf16.gmra.mrb[0].mxu0 %v981
        %v1180 = vpop.f32.mrb[0].mxu0
        %v1181 = vadd.f32 0.0, %v1180
        %v1182 = vpop.f32.mrb[0].mxu0
        %v1183 = vpop.f32.mrb[0].mxu0
        %v1184 = vadd.f32 0.0, %v1183
        %v1185 = vpop.f32.mrb[0].mxu0
        %1186 = vmatprep.mubr.bf16.mxu0 0
        %1187 = vmatmul.mubr.bf16.gmra.mrb[0].mxu0 %v982
        %v1188 = vpop.f32.mrb[0].mxu0
        %v1189 = vadd.f32 0.0, %v1188
        %v1190 = vpop.f32.mrb[0].mxu0
        %v1191 = vpop.f32.mrb[0].mxu0
        %v1192 = vadd.f32 0.0, %v1191
        %v1193 = vpop.f32.mrb[0].mxu0
        %1194 = vmatprep.mubr.bf16.mxu0 0
        %1195 = vmatmul.mubr.bf16.gmra.mrb[0].mxu0 %v983
        %v1196 = vpop.f32.mrb[0].mxu0
        %v1197 = vadd.f32 0.0, %v1196
        %v1198 = vpop.f32.mrb[0].mxu0
        %v1199 = vpop.f32.mrb[0].mxu0
        %v1200 = vadd.f32 0.0, %v1199
        %v1201 = vpop.f32.mrb[0].mxu0
        %1202 = vmatprep.mubr.bf16.mxu0 0
        %1203 = vmatmul.mubr.bf16.gmra.mrb[0].mxu0 %v984
        %v1204 = vpop.f32.mrb[0].mxu0
        %v1205 = vadd.f32 0.0, %v1204
        %v1206 = vpop.f32.mrb[0].mxu0
        %v1207 = vpop.f32.mrb[0].mxu0
        %v1208 = vadd.f32 0.0, %v1207
        %v1209 = vpop.f32.mrb[0].mxu0
        %1210 = vmatprep.mubr.bf16.mxu0 0
        %1211 = vmatmul.mubr.bf16.gmra.mrb[0].mxu0 %v985
        %v1212 = vpop.f32.mrb[0].mxu0
        %v1213 = vadd.f32 0.0, %v1212
        %v1214 = vpop.f32.mrb[0].mxu0
        %v1215 = vpop.f32.mrb[0].mxu0
        %v1216 = vadd.f32 0.0, %v1215
        %v1217 = vpop.f32.mrb[0].mxu0
        %1218 = vmatprep.mubr.bf16.mxu0 0
        %1219 = vmatmul.mubr.bf16.gmra.mrb[0].mxu0 %v986
        %v1220 = vpop.f32.mrb[0].mxu0
        %v1221 = vadd.f32 0.0, %v1220
        %v1222 = vpop.f32.mrb[0].mxu0
        %v1223 = vpop.f32.mrb[0].mxu0
        %v1224 = vadd.f32 0.0, %v1223
        %v1225 = vpop.f32.mrb[0].mxu0
        %1226 = vmatprep.mubr.bf16.mxu0 0
        %1227 = vmatmul.mubr.bf16.gmra.mrb[0].mxu0 %v987
        %v1228 = vpop.f32.mrb[0].mxu0
        %v1229 = vadd.f32 0.0, %v1228
        %v1230 = vpop.f32.mrb[0].mxu0
        %v1231 = vpop.f32.mrb[0].mxu0
        %v1232 = vadd.f32 0.0, %v1231
        %v1233 = vpop.f32.mrb[0].mxu0
        %1234 = vmatprep.mubr.bf16.mxu0 0
        %1235 = vmatmul.mubr.bf16.gmra.mrb[0].mxu0 %v988
        %v1236 = vpop.f32.mrb[0].mxu0
        %v1237 = vadd.f32 0.0, %v1236
        %v1238 = vpop.f32.mrb[0].mxu0
        %v1239 = vpop.f32.mrb[0].mxu0
        %v1240 = vadd.f32 0.0, %v1239
        %v1241 = vpop.f32.mrb[0].mxu0
        %1242 = vmatprep.mubr.bf16.mxu0 0
        %1243 = vmatmul.mubr.bf16.gmra.mrb[0].mxu0 %v989
        %v1244 = vpop.f32.mrb[0].mxu0
        %v1245 = vadd.f32 0.0, %v1244
        %v1246 = vpop.f32.mrb[0].mxu0
        %v1247 = vpop.f32.mrb[0].mxu0
        %v1248 = vadd.f32 0.0, %v1247
        %v1249 = vpop.f32.mrb[0].mxu0
        %1250 = vdwg.mxu0
        %v1251 = vmax.f32 %v1093, 0.0
        %v1252 = vmax.f32 %v1096, 0.0
        %v1253 = vmax.f32 %v1101, 0.0
        %v1254 = vmax.f32 %v1104, 0.0
        %v1255 = vmax.f32 %v1109, 0.0
        %v1256 = vmax.f32 %v1112, 0.0
        %v1257 = vmax.f32 %v1117, 0.0
        %v1258 = vmax.f32 %v1120, 0.0
        %v1259 = vmax.f32 %v1125, 0.0
        %v1260 = vmax.f32 %v1128, 0.0
        %v1261 = vmax.f32 %v1133, 0.0
        %v1262 = vmax.f32 %v1136, 0.0
        %v1263 = vmax.f32 %v1141, 0.0
        %v1264 = vmax.f32 %v1144, 0.0
        %v1265 = vmax.f32 %v1149, 0.0
        %v1266 = vmax.f32 %v1152, 0.0
        %v1267 = vmax.f32 %v1157, 0.0
        %v1268 = vmax.f32 %v1160, 0.0
        %v1269 = vmax.f32 %v1165, 0.0
        %v1270 = vmax.f32 %v1168, 0.0
        %v1271 = vmax.f32 %v1173, 0.0
        %v1272 = vmax.f32 %v1176, 0.0
        %v1273 = vmax.f32 %v1181, 0.0
        %v1274 = vmax.f32 %v1184, 0.0
        %v1275 = vmax.f32 %v1189, 0.0
        %v1276 = vmax.f32 %v1192, 0.0
        %v1277 = vmax.f32 %v1197, 0.0
        %v1278 = vmax.f32 %v1200, 0.0
        %v1279 = vmax.f32 %v1205, 0.0
        %v1280 = vmax.f32 %v1208, 0.0
        %v1281 = vmax.f32 %v1213, 0.0
        %v1282 = vmax.f32 %v1216, 0.0
        %v1283 = vmax.f32 %v1221, 0.0
        %v1284 = vmax.f32 %v1224, 0.0
        %v1285 = vmax.f32 %v1229, 0.0
        %v1286 = vmax.f32 %v1232, 0.0
        %v1287 = vmax.f32 %v1237, 0.0
        %v1288 = vmax.f32 %v1240, 0.0
        %v1289 = vmax.f32 %v1245, 0.0
        %v1290 = vmax.f32 %v1248, 0.0
        %v1291 = vpack.c.bf16 %v1252, %v1251
        %v1292 = vpack.c.bf16 %v1254, %v1253
        %v1293 = vpack.c.bf16 %v1256, %v1255
        %v1294 = vpack.c.bf16 %v1258, %v1257
        %v1295 = vpack.c.bf16 %v1260, %v1259
        %v1296 = vpack.c.bf16 %v1262, %v1261
        %v1297 = vpack.c.bf16 %v1264, %v1263
        %v1298 = vpack.c.bf16 %v1266, %v1265
        %v1299 = vpack.c.bf16 %v1268, %v1267
        %v1300 = vpack.c.bf16 %v1270, %v1269
        %v1301 = vpack.c.bf16 %v1272, %v1271
        %v1302 = vpack.c.bf16 %v1274, %v1273
        %v1303 = vpack.c.bf16 %v1276, %v1275
        %v1304 = vpack.c.bf16 %v1278, %v1277
        %v1305 = vpack.c.bf16 %v1280, %v1279
        %v1306 = vpack.c.bf16 %v1282, %v1281
        %v1307 = vpack.c.bf16 %v1284, %v1283
        %v1308 = vpack.c.bf16 %v1286, %v1285
        %v1309 = vpack.c.bf16 %v1288, %v1287
        %v1310 = vpack.c.bf16 %v1290, %v1289
        %v1311 = vld [vmem:[#allocation7] sm:$0xf]
        %v1312 = vld [vmem:[#allocation7 + $0x4] sm:$0xf]
        %v1313 = vld [vmem:[#allocation7 + $0x8] sm:$0xf]
        %v1314 = vld [vmem:[#allocation7 + $0xc] sm:$0xf]
        %v1315 = vld [vmem:[#allocation7 + $0x10] sm:$0xf]
        %v1316 = vld [vmem:[#allocation7 + $0x14] sm:$0xf]
        %v1317 = vld [vmem:[#allocation7 + $0x18] sm:$0xf]
        %v1318 = vld [vmem:[#allocation7 + $0x1c] sm:$0xf]
        %v1319 = vld [vmem:[#allocation7 + $0x20] sm:$0xf]
        %v1320 = vld [vmem:[#allocation7 + $0x24] sm:$0xf]
        %v1321 = vld [vmem:[#allocation7 + $0x28] sm:$0xf]
        %v1322 = vld [vmem:[#allocation7 + $0x2c] sm:$0xf]
        %v1323 = vld [vmem:[#allocation7 + $0x30] sm:$0xf]
        %v1324 = vld [vmem:[#allocation7 + $0x34] sm:$0xf]
        %v1325 = vld [vmem:[#allocation7 + $0x38] sm:$0xf]
        %v1326 = vld [vmem:[#allocation7 + $0x3c] sm:$0xf]
        %v1343 = vunpack.c.l.b16 %v1311
        %v1344 = vunpack.c.l.b16 %v1312
        %v1345 = vunpack.c.l.b16 %v1313
        %v1346 = vunpack.c.l.b16 %v1314
        %v1347 = vunpack.c.l.b16 %v1315
        %v1348 = vunpack.c.l.b16 %v1316
        %v1349 = vunpack.c.l.b16 %v1317
        %v1350 = vunpack.c.l.b16 %v1318
        %v1351 = vunpack.c.l.b16 %v1319
        %v1352 = vunpack.c.l.b16 %v1320
        %v1353 = vunpack.c.l.b16 %v1321
        %v1354 = vunpack.c.l.b16 %v1322
        %v1355 = vunpack.c.l.b16 %v1323
        %v1356 = vunpack.c.l.b16 %v1324
        %v1357 = vunpack.c.l.b16 %v1325
        %v1358 = vunpack.c.l.b16 %v1326
        %v1359 = vpack.c.b16 %v1344, %v1343
        %v1360 = vpack.c.b16 %v1346, %v1345
        %v1361 = vpack.c.b16 %v1348, %v1347
        %v1362 = vpack.c.b16 %v1350, %v1349
        %v1363 = vpack.c.b16 %v1352, %v1351
        %v1364 = vpack.c.b16 %v1354, %v1353
        %v1365 = vpack.c.b16 %v1356, %v1355
        %v1366 = vpack.c.b16 %v1358, %v1357
        %1375 = vmatprep.subr.bf16.mxu0 0
        %1376 = vmatpush1.bf16.msra.mxu0 %v1359
        %1377 = vmatprep.subr.bf16.mxu0 0
        %1378 = vmatpush1.bf16.msra.mxu0 %v1360
        %1379 = vmatprep.subr.bf16.mxu0 0
        %1380 = vmatpush1.bf16.msra.mxu0 %v1361
        %1381 = vmatprep.subr.bf16.mxu0 0
        %1382 = vmatpush1.bf16.msra.mxu0 %v1362
        %1383 = vmatprep.subr.bf16.mxu0 0
        %1384 = vmatpush1.bf16.msra.mxu0 %v1363
        %1385 = vmatprep.subr.bf16.mxu0 0
        %1386 = vmatpush1.bf16.msra.mxu0 %v1364
        %1387 = vmatprep.subr.bf16.mxu0 0
        %1388 = vmatpush1.bf16.msra.mxu0 %v1365
        %1389 = vmatprep.subr.bf16.mxu0 0
        %1390 = vmatpush1.bf16.msra.mxu0 %v1366
        %1391 = vmatprep.subr.bf16.mxu0 0
        %1392 = vmatpush1.bf16.msra.mxu0 0
        %1393 = vmatprep.subr.bf16.mxu0 0
        %1394 = vmatpush1.bf16.msra.mxu0 0
        %1395 = vmatprep.subr.bf16.mxu0 0
        %1396 = vmatpush1.bf16.msra.mxu0 0
        %1397 = vmatprep.subr.bf16.mxu0 0
        %1398 = vmatpush1.bf16.msra.mxu0 0
        %1399 = vmatprep.subr.bf16.mxu0 0
        %1400 = vmatpush1.bf16.msra.mxu0 0
        %1401 = vmatprep.subr.bf16.mxu0 0
        %1402 = vmatpush1.bf16.msra.mxu0 0
        %1403 = vmatprep.subr.bf16.mxu0 0
        %1404 = vmatpush1.bf16.msra.mxu0 0
        %1405 = vmatprep.subr.bf16.mxu0 0
        %1406 = vmatpush1.bf16.msra.mxu0 0
        %1407 = vmatprep.mubr.bf16.mxu0 0
        %1408 = vmatmul.mubr.bf16.gmra.mrb[0].mxu0 %v1291
        %v1409 = vpop.f32.mrb[0].mxu0
        %v1410 = vadd.f32 0.0, %v1409
        %v1411 = vpop.f32.mrb[0].mxu0
        %v1412 = vpop.f32.mrb[0].mxu0
        %v1413 = vadd.f32 0.0, %v1412
        %v1414 = vpop.f32.mrb[0].mxu0
        %1415 = vmatprep.mubr.bf16.mxu0 0
        %1416 = vmatmul.mubr.bf16.gmra.mrb[0].mxu0 %v1292
        %v1417 = vpop.f32.mrb[0].mxu0
        %v1418 = vadd.f32 0.0, %v1417
        %v1419 = vpop.f32.mrb[0].mxu0
        %v1420 = vpop.f32.mrb[0].mxu0
        %v1421 = vadd.f32 0.0, %v1420
        %v1422 = vpop.f32.mrb[0].mxu0
        %1423 = vmatprep.mubr.bf16.mxu0 0
        %1424 = vmatmul.mubr.bf16.gmra.mrb[0].mxu0 %v1293
        %v1425 = vpop.f32.mrb[0].mxu0
        %v1426 = vadd.f32 0.0, %v1425
        %v1427 = vpop.f32.mrb[0].mxu0
        %v1428 = vpop.f32.mrb[0].mxu0
        %v1429 = vadd.f32 0.0, %v1428
        %v1430 = vpop.f32.mrb[0].mxu0
        %1431 = vmatprep.mubr.bf16.mxu0 0
        %1432 = vmatmul.mubr.bf16.gmra.mrb[0].mxu0 %v1294
        %v1433 = vpop.f32.mrb[0].mxu0
        %v1434 = vadd.f32 0.0, %v1433
        %v1435 = vpop.f32.mrb[0].mxu0
        %v1436 = vpop.f32.mrb[0].mxu0
        %v1437 = vadd.f32 0.0, %v1436
        %v1438 = vpop.f32.mrb[0].mxu0
        %1439 = vmatprep.mubr.bf16.mxu0 0
        %1440 = vmatmul.mubr.bf16.gmra.mrb[0].mxu0 %v1295
        %v1441 = vpop.f32.mrb[0].mxu0
        %v1442 = vadd.f32 0.0, %v1441
        %v1443 = vpop.f32.mrb[0].mxu0
        %v1444 = vpop.f32.mrb[0].mxu0
        %v1445 = vadd.f32 0.0, %v1444
        %v1446 = vpop.f32.mrb[0].mxu0
        %1447 = vmatprep.mubr.bf16.mxu0 0
        %1448 = vmatmul.mubr.bf16.gmra.mrb[0].mxu0 %v1296
        %v1449 = vpop.f32.mrb[0].mxu0
        %v1450 = vadd.f32 0.0, %v1449
        %v1451 = vpop.f32.mrb[0].mxu0
        %v1452 = vpop.f32.mrb[0].mxu0
        %v1453 = vadd.f32 0.0, %v1452
        %v1454 = vpop.f32.mrb[0].mxu0
        %1455 = vmatprep.mubr.bf16.mxu0 0
        %1456 = vmatmul.mubr.bf16.gmra.mrb[0].mxu0 %v1297
        %v1457 = vpop.f32.mrb[0].mxu0
        %v1458 = vadd.f32 0.0, %v1457
        %v1459 = vpop.f32.mrb[0].mxu0
        %v1460 = vpop.f32.mrb[0].mxu0
        %v1461 = vadd.f32 0.0, %v1460
        %v1462 = vpop.f32.mrb[0].mxu0
        %1463 = vmatprep.mubr.bf16.mxu0 0
        %1464 = vmatmul.mubr.bf16.gmra.mrb[0].mxu0 %v1298
        %v1465 = vpop.f32.mrb[0].mxu0
        %v1466 = vadd.f32 0.0, %v1465
        %v1467 = vpop.f32.mrb[0].mxu0
        %v1468 = vpop.f32.mrb[0].mxu0
        %v1469 = vadd.f32 0.0, %v1468
        %v1470 = vpop.f32.mrb[0].mxu0
        %1471 = vmatprep.mubr.bf16.mxu0 0
        %1472 = vmatmul.mubr.bf16.gmra.mrb[0].mxu0 %v1299
        %v1473 = vpop.f32.mrb[0].mxu0
        %v1474 = vadd.f32 0.0, %v1473
        %v1475 = vpop.f32.mrb[0].mxu0
        %v1476 = vpop.f32.mrb[0].mxu0
        %v1477 = vadd.f32 0.0, %v1476
        %v1478 = vpop.f32.mrb[0].mxu0
        %1479 = vmatprep.mubr.bf16.mxu0 0
        %1480 = vmatmul.mubr.bf16.gmra.mrb[0].mxu0 %v1300
        %v1481 = vpop.f32.mrb[0].mxu0
        %v1482 = vadd.f32 0.0, %v1481
        %v1483 = vpop.f32.mrb[0].mxu0
        %v1484 = vpop.f32.mrb[0].mxu0
        %v1485 = vadd.f32 0.0, %v1484
        %v1486 = vpop.f32.mrb[0].mxu0
        %1487 = vmatprep.mubr.bf16.mxu0 0
        %1488 = vmatmul.mubr.bf16.gmra.mrb[0].mxu0 %v1301
        %v1489 = vpop.f32.mrb[0].mxu0
        %v1490 = vadd.f32 0.0, %v1489
        %v1491 = vpop.f32.mrb[0].mxu0
        %v1492 = vpop.f32.mrb[0].mxu0
        %v1493 = vadd.f32 0.0, %v1492
        %v1494 = vpop.f32.mrb[0].mxu0
        %1495 = vmatprep.mubr.bf16.mxu0 0
        %1496 = vmatmul.mubr.bf16.gmra.mrb[0].mxu0 %v1302
        %v1497 = vpop.f32.mrb[0].mxu0
        %v1498 = vadd.f32 0.0, %v1497
        %v1499 = vpop.f32.mrb[0].mxu0
        %v1500 = vpop.f32.mrb[0].mxu0
        %v1501 = vadd.f32 0.0, %v1500
        %v1502 = vpop.f32.mrb[0].mxu0
        %1503 = vmatprep.mubr.bf16.mxu0 0
        %1504 = vmatmul.mubr.bf16.gmra.mrb[0].mxu0 %v1303
        %v1505 = vpop.f32.mrb[0].mxu0
        %v1506 = vadd.f32 0.0, %v1505
        %v1507 = vpop.f32.mrb[0].mxu0
        %v1508 = vpop.f32.mrb[0].mxu0
        %v1509 = vadd.f32 0.0, %v1508
        %v1510 = vpop.f32.mrb[0].mxu0
        %1511 = vmatprep.mubr.bf16.mxu0 0
        %1512 = vmatmul.mubr.bf16.gmra.mrb[0].mxu0 %v1304
        %v1513 = vpop.f32.mrb[0].mxu0
        %v1514 = vadd.f32 0.0, %v1513
        %v1515 = vpop.f32.mrb[0].mxu0
        %v1516 = vpop.f32.mrb[0].mxu0
        %v1517 = vadd.f32 0.0, %v1516
        %v1518 = vpop.f32.mrb[0].mxu0
        %1519 = vmatprep.mubr.bf16.mxu0 0
        %1520 = vmatmul.mubr.bf16.gmra.mrb[0].mxu0 %v1305
        %v1521 = vpop.f32.mrb[0].mxu0
        %v1522 = vadd.f32 0.0, %v1521
        %v1523 = vpop.f32.mrb[0].mxu0
        %v1524 = vpop.f32.mrb[0].mxu0
        %v1525 = vadd.f32 0.0, %v1524
        %v1526 = vpop.f32.mrb[0].mxu0
        %1527 = vmatprep.mubr.bf16.mxu0 0
        %1528 = vmatmul.mubr.bf16.gmra.mrb[0].mxu0 %v1306
        %v1529 = vpop.f32.mrb[0].mxu0
        %v1530 = vadd.f32 0.0, %v1529
        %v1531 = vpop.f32.mrb[0].mxu0
        %v1532 = vpop.f32.mrb[0].mxu0
        %v1533 = vadd.f32 0.0, %v1532
        %v1534 = vpop.f32.mrb[0].mxu0
        %1535 = vmatprep.mubr.bf16.mxu0 0
        %1536 = vmatmul.mubr.bf16.gmra.mrb[0].mxu0 %v1307
        %v1537 = vpop.f32.mrb[0].mxu0
        %v1538 = vadd.f32 0.0, %v1537
        %v1539 = vpop.f32.mrb[0].mxu0
        %v1540 = vpop.f32.mrb[0].mxu0
        %v1541 = vadd.f32 0.0, %v1540
        %v1542 = vpop.f32.mrb[0].mxu0
        %1543 = vmatprep.mubr.bf16.mxu0 0
        %1544 = vmatmul.mubr.bf16.gmra.mrb[0].mxu0 %v1308
        %v1545 = vpop.f32.mrb[0].mxu0
        %v1546 = vadd.f32 0.0, %v1545
        %v1547 = vpop.f32.mrb[0].mxu0
        %v1548 = vpop.f32.mrb[0].mxu0
        %v1549 = vadd.f32 0.0, %v1548
        %v1550 = vpop.f32.mrb[0].mxu0
        %1551 = vmatprep.mubr.bf16.mxu0 0
        %1552 = vmatmul.mubr.bf16.gmra.mrb[0].mxu0 %v1309
        %v1553 = vpop.f32.mrb[0].mxu0
        %v1554 = vadd.f32 0.0, %v1553
        %v1555 = vpop.f32.mrb[0].mxu0
        %v1556 = vpop.f32.mrb[0].mxu0
        %v1557 = vadd.f32 0.0, %v1556
        %v1558 = vpop.f32.mrb[0].mxu0
        %1559 = vmatprep.mubr.bf16.mxu0 0
        %1560 = vmatmul.mubr.bf16.gmra.mrb[0].mxu0 %v1310
        %v1561 = vpop.f32.mrb[0].mxu0
        %v1562 = vadd.f32 0.0, %v1561
        %v1563 = vpop.f32.mrb[0].mxu0
        %v1564 = vpop.f32.mrb[0].mxu0
        %v1565 = vadd.f32 0.0, %v1564
        %v1566 = vpop.f32.mrb[0].mxu0
        %1567 = vdwg.mxu0
        %v1568 = vmax.f32 %v1410, 0.0
        %v1569 = vmax.f32 %v1413, 0.0
        %v1570 = vmax.f32 %v1418, 0.0
        %v1571 = vmax.f32 %v1421, 0.0
        %v1572 = vmax.f32 %v1426, 0.0
        %v1573 = vmax.f32 %v1429, 0.0
        %v1574 = vmax.f32 %v1434, 0.0
        %v1575 = vmax.f32 %v1437, 0.0
        %v1576 = vmax.f32 %v1442, 0.0
        %v1577 = vmax.f32 %v1445, 0.0
        %v1578 = vmax.f32 %v1450, 0.0
        %v1579 = vmax.f32 %v1453, 0.0
        %v1580 = vmax.f32 %v1458, 0.0
        %v1581 = vmax.f32 %v1461, 0.0
        %v1582 = vmax.f32 %v1466, 0.0
        %v1583 = vmax.f32 %v1469, 0.0
        %v1584 = vmax.f32 %v1474, 0.0
        %v1585 = vmax.f32 %v1477, 0.0
        %v1586 = vmax.f32 %v1482, 0.0
        %v1587 = vmax.f32 %v1485, 0.0
        %v1588 = vmax.f32 %v1490, 0.0
        %v1589 = vmax.f32 %v1493, 0.0
        %v1590 = vmax.f32 %v1498, 0.0
        %v1591 = vmax.f32 %v1501, 0.0
        %v1592 = vmax.f32 %v1506, 0.0
        %v1593 = vmax.f32 %v1509, 0.0
        %v1594 = vmax.f32 %v1514, 0.0
        %v1595 = vmax.f32 %v1517, 0.0
        %v1596 = vmax.f32 %v1522, 0.0
        %v1597 = vmax.f32 %v1525, 0.0
        %v1598 = vmax.f32 %v1530, 0.0
        %v1599 = vmax.f32 %v1533, 0.0
        %v1600 = vmax.f32 %v1538, 0.0
        %v1601 = vmax.f32 %v1541, 0.0
        %v1602 = vmax.f32 %v1546, 0.0
        %v1603 = vmax.f32 %v1549, 0.0
        %v1604 = vmax.f32 %v1554, 0.0
        %v1605 = vmax.f32 %v1557, 0.0
        %v1606 = vmax.f32 %v1562, 0.0
        %v1607 = vmax.f32 %v1565, 0.0
        %v1608 = vpack.c.bf16 %v1569, %v1568
        %v1609 = vpack.c.bf16 %v1571, %v1570
        %v1610 = vpack.c.bf16 %v1573, %v1572
        %v1611 = vpack.c.bf16 %v1575, %v1574
        %v1612 = vpack.c.bf16 %v1577, %v1576
        %v1613 = vpack.c.bf16 %v1579, %v1578
        %v1614 = vpack.c.bf16 %v1581, %v1580
        %v1615 = vpack.c.bf16 %v1583, %v1582
        %v1616 = vpack.c.bf16 %v1585, %v1584
        %v1617 = vpack.c.bf16 %v1587, %v1586
        %v1618 = vpack.c.bf16 %v1589, %v1588
        %v1619 = vpack.c.bf16 %v1591, %v1590
        %v1620 = vpack.c.bf16 %v1593, %v1592
        %v1621 = vpack.c.bf16 %v1595, %v1594
        %v1622 = vpack.c.bf16 %v1597, %v1596
        %v1623 = vpack.c.bf16 %v1599, %v1598
        %v1624 = vpack.c.bf16 %v1601, %v1600
        %v1625 = vpack.c.bf16 %v1603, %v1602
        %v1626 = vpack.c.bf16 %v1605, %v1604
        %v1627 = vpack.c.bf16 %v1607, %v1606
        %v1628 = vld [vmem:[#allocation8] sm:$0xf]
        %v1629 = vld [vmem:[#allocation8 + $0x4] sm:$0xf]
        %v1630 = vld [vmem:[#allocation8 + $0x8] sm:$0xf]
        %v1631 = vld [vmem:[#allocation8 + $0xc] sm:$0xf]
        %v1632 = vld [vmem:[#allocation8 + $0x10] sm:$0xf]
        %v1633 = vld [vmem:[#allocation8 + $0x14] sm:$0xf]
        %v1634 = vld [vmem:[#allocation8 + $0x18] sm:$0xf]
        %v1635 = vld [vmem:[#allocation8 + $0x1c] sm:$0xf]
        %v1636 = vld [vmem:[#allocation8 + $0x20] sm:$0xf]
        %v1637 = vld [vmem:[#allocation8 + $0x24] sm:$0xf]
        %v1638 = vld [vmem:[#allocation8 + $0x28] sm:$0xf]
        %v1639 = vld [vmem:[#allocation8 + $0x2c] sm:$0xf]
        %v1640 = vld [vmem:[#allocation8 + $0x30] sm:$0xf]
        %v1641 = vld [vmem:[#allocation8 + $0x34] sm:$0xf]
        %v1642 = vld [vmem:[#allocation8 + $0x38] sm:$0xf]
        %v1643 = vld [vmem:[#allocation8 + $0x3c] sm:$0xf]
        %v1660 = vunpack.c.l.b16 %v1628
        %v1661 = vunpack.c.l.b16 %v1629
        %v1662 = vunpack.c.l.b16 %v1630
        %v1663 = vunpack.c.l.b16 %v1631
        %v1664 = vunpack.c.l.b16 %v1632
        %v1665 = vunpack.c.l.b16 %v1633
        %v1666 = vunpack.c.l.b16 %v1634
        %v1667 = vunpack.c.l.b16 %v1635
        %v1668 = vunpack.c.l.b16 %v1636
        %v1669 = vunpack.c.l.b16 %v1637
        %v1670 = vunpack.c.l.b16 %v1638
        %v1671 = vunpack.c.l.b16 %v1639
        %v1672 = vunpack.c.l.b16 %v1640
        %v1673 = vunpack.c.l.b16 %v1641
        %v1674 = vunpack.c.l.b16 %v1642
        %v1675 = vunpack.c.l.b16 %v1643
        %v1676 = vpack.c.b16 %v1661, %v1660
        %v1677 = vpack.c.b16 %v1663, %v1662
        %v1678 = vpack.c.b16 %v1665, %v1664
        %v1679 = vpack.c.b16 %v1667, %v1666
        %v1680 = vpack.c.b16 %v1669, %v1668
        %v1681 = vpack.c.b16 %v1671, %v1670
        %v1682 = vpack.c.b16 %v1673, %v1672
        %v1683 = vpack.c.b16 %v1675, %v1674
        %1692 = vmatprep.subr.bf16.mxu0 0
        %1693 = vmatpush1.bf16.msra.mxu0 %v1676
        %1694 = vmatprep.subr.bf16.mxu0 0
        %1695 = vmatpush1.bf16.msra.mxu0 %v1677
        %1696 = vmatprep.subr.bf16.mxu0 0
        %1697 = vmatpush1.bf16.msra.mxu0 %v1678
        %1698 = vmatprep.subr.bf16.mxu0 0
        %1699 = vmatpush1.bf16.msra.mxu0 %v1679
        %1700 = vmatprep.subr.bf16.mxu0 0
        %1701 = vmatpush1.bf16.msra.mxu0 %v1680
        %1702 = vmatprep.subr.bf16.mxu0 0
        %1703 = vmatpush1.bf16.msra.mxu0 %v1681
        %1704 = vmatprep.subr.bf16.mxu0 0
        %1705 = vmatpush1.bf16.msra.mxu0 %v1682
        %1706 = vmatprep.subr.bf16.mxu0 0
        %1707 = vmatpush1.bf16.msra.mxu0 %v1683
        %1708 = vmatprep.subr.bf16.mxu0 0
        %1709 = vmatpush1.bf16.msra.mxu0 0
        %1710 = vmatprep.subr.bf16.mxu0 0
        %1711 = vmatpush1.bf16.msra.mxu0 0
        %1712 = vmatprep.subr.bf16.mxu0 0
        %1713 = vmatpush1.bf16.msra.mxu0 0
        %1714 = vmatprep.subr.bf16.mxu0 0
        %1715 = vmatpush1.bf16.msra.mxu0 0
        %1716 = vmatprep.subr.bf16.mxu0 0
        %1717 = vmatpush1.bf16.msra.mxu0 0
        %1718 = vmatprep.subr.bf16.mxu0 0
        %1719 = vmatpush1.bf16.msra.mxu0 0
        %1720 = vmatprep.subr.bf16.mxu0 0
        %1721 = vmatpush1.bf16.msra.mxu0 0
        %1722 = vmatprep.subr.bf16.mxu0 0
        %1723 = vmatpush1.bf16.msra.mxu0 0
        %1724 = vmatprep.mubr.bf16.mxu0 0
        %1725 = vmatmul.mubr.bf16.gmra.mrb[0].mxu0 %v1608
        %v1726 = vpop.f32.mrb[0].mxu0
        %v1727 = vadd.f32 0.0, %v1726
        %v1728 = vpop.f32.mrb[0].mxu0
        %v1729 = vpop.f32.mrb[0].mxu0
        %v1730 = vadd.f32 0.0, %v1729
        %v1731 = vpop.f32.mrb[0].mxu0
        %1732 = vmatprep.mubr.bf16.mxu0 0
        %1733 = vmatmul.mubr.bf16.gmra.mrb[0].mxu0 %v1609
        %v1734 = vpop.f32.mrb[0].mxu0
        %v1735 = vadd.f32 0.0, %v1734
        %v1736 = vpop.f32.mrb[0].mxu0
        %v1737 = vpop.f32.mrb[0].mxu0
        %v1738 = vadd.f32 0.0, %v1737
        %v1739 = vpop.f32.mrb[0].mxu0
        %1740 = vmatprep.mubr.bf16.mxu0 0
        %1741 = vmatmul.mubr.bf16.gmra.mrb[0].mxu0 %v1610
        %v1742 = vpop.f32.mrb[0].mxu0
        %v1743 = vadd.f32 0.0, %v1742
        %v1744 = vpop.f32.mrb[0].mxu0
        %v1745 = vpop.f32.mrb[0].mxu0
        %v1746 = vadd.f32 0.0, %v1745
        %v1747 = vpop.f32.mrb[0].mxu0
        %1748 = vmatprep.mubr.bf16.mxu0 0
        %1749 = vmatmul.mubr.bf16.gmra.mrb[0].mxu0 %v1611
        %v1750 = vpop.f32.mrb[0].mxu0
        %v1751 = vadd.f32 0.0, %v1750
        %v1752 = vpop.f32.mrb[0].mxu0
        %v1753 = vpop.f32.mrb[0].mxu0
        %v1754 = vadd.f32 0.0, %v1753
        %v1755 = vpop.f32.mrb[0].mxu0
        %1756 = vmatprep.mubr.bf16.mxu0 0
        %1757 = vmatmul.mubr.bf16.gmra.mrb[0].mxu0 %v1612
        %v1758 = vpop.f32.mrb[0].mxu0
        %v1759 = vadd.f32 0.0, %v1758
        %v1760 = vpop.f32.mrb[0].mxu0
        %v1761 = vpop.f32.mrb[0].mxu0
        %v1762 = vadd.f32 0.0, %v1761
        %v1763 = vpop.f32.mrb[0].mxu0
        %1764 = vmatprep.mubr.bf16.mxu0 0
        %1765 = vmatmul.mubr.bf16.gmra.mrb[0].mxu0 %v1613
        %v1766 = vpop.f32.mrb[0].mxu0
        %v1767 = vadd.f32 0.0, %v1766
        %v1768 = vpop.f32.mrb[0].mxu0
        %v1769 = vpop.f32.mrb[0].mxu0
        %v1770 = vadd.f32 0.0, %v1769
        %v1771 = vpop.f32.mrb[0].mxu0
        %1772 = vmatprep.mubr.bf16.mxu0 0
        %1773 = vmatmul.mubr.bf16.gmra.mrb[0].mxu0 %v1614
        %v1774 = vpop.f32.mrb[0].mxu0
        %v1775 = vadd.f32 0.0, %v1774
        %v1776 = vpop.f32.mrb[0].mxu0
        %v1777 = vpop.f32.mrb[0].mxu0
        %v1778 = vadd.f32 0.0, %v1777
        %v1779 = vpop.f32.mrb[0].mxu0
        %1780 = vmatprep.mubr.bf16.mxu0 0
        %1781 = vmatmul.mubr.bf16.gmra.mrb[0].mxu0 %v1615
        %v1782 = vpop.f32.mrb[0].mxu0
        %v1783 = vadd.f32 0.0, %v1782
        %v1784 = vpop.f32.mrb[0].mxu0
        %v1785 = vpop.f32.mrb[0].mxu0
        %v1786 = vadd.f32 0.0, %v1785
        %v1787 = vpop.f32.mrb[0].mxu0
        %1788 = vmatprep.mubr.bf16.mxu0 0
        %1789 = vmatmul.mubr.bf16.gmra.mrb[0].mxu0 %v1616
        %v1790 = vpop.f32.mrb[0].mxu0
        %v1791 = vadd.f32 0.0, %v1790
        %v1792 = vpop.f32.mrb[0].mxu0
        %v1793 = vpop.f32.mrb[0].mxu0
        %v1794 = vadd.f32 0.0, %v1793
        %v1795 = vpop.f32.mrb[0].mxu0
        %1796 = vmatprep.mubr.bf16.mxu0 0
        %1797 = vmatmul.mubr.bf16.gmra.mrb[0].mxu0 %v1617
        %v1798 = vpop.f32.mrb[0].mxu0
        %v1799 = vadd.f32 0.0, %v1798
        %v1800 = vpop.f32.mrb[0].mxu0
        %v1801 = vpop.f32.mrb[0].mxu0
        %v1802 = vadd.f32 0.0, %v1801
        %v1803 = vpop.f32.mrb[0].mxu0
        %1804 = vmatprep.mubr.bf16.mxu0 0
        %1805 = vmatmul.mubr.bf16.gmra.mrb[0].mxu0 %v1618
        %v1806 = vpop.f32.mrb[0].mxu0
        %v1807 = vadd.f32 0.0, %v1806
        %v1808 = vpop.f32.mrb[0].mxu0
        %v1809 = vpop.f32.mrb[0].mxu0
        %v1810 = vadd.f32 0.0, %v1809
        %v1811 = vpop.f32.mrb[0].mxu0
        %1812 = vmatprep.mubr.bf16.mxu0 0
        %1813 = vmatmul.mubr.bf16.gmra.mrb[0].mxu0 %v1619
        %v1814 = vpop.f32.mrb[0].mxu0
        %v1815 = vadd.f32 0.0, %v1814
        %v1816 = vpop.f32.mrb[0].mxu0
        %v1817 = vpop.f32.mrb[0].mxu0
        %v1818 = vadd.f32 0.0, %v1817
        %v1819 = vpop.f32.mrb[0].mxu0
        %1820 = vmatprep.mubr.bf16.mxu0 0
        %1821 = vmatmul.mubr.bf16.gmra.mrb[0].mxu0 %v1620
        %v1822 = vpop.f32.mrb[0].mxu0
        %v1823 = vadd.f32 0.0, %v1822
        %v1824 = vpop.f32.mrb[0].mxu0
        %v1825 = vpop.f32.mrb[0].mxu0
        %v1826 = vadd.f32 0.0, %v1825
        %v1827 = vpop.f32.mrb[0].mxu0
        %1828 = vmatprep.mubr.bf16.mxu0 0
        %1829 = vmatmul.mubr.bf16.gmra.mrb[0].mxu0 %v1621
        %v1830 = vpop.f32.mrb[0].mxu0
        %v1831 = vadd.f32 0.0, %v1830
        %v1832 = vpop.f32.mrb[0].mxu0
        %v1833 = vpop.f32.mrb[0].mxu0
        %v1834 = vadd.f32 0.0, %v1833
        %v1835 = vpop.f32.mrb[0].mxu0
        %1836 = vmatprep.mubr.bf16.mxu0 0
        %1837 = vmatmul.mubr.bf16.gmra.mrb[0].mxu0 %v1622
        %v1838 = vpop.f32.mrb[0].mxu0
        %v1839 = vadd.f32 0.0, %v1838
        %v1840 = vpop.f32.mrb[0].mxu0
        %v1841 = vpop.f32.mrb[0].mxu0
        %v1842 = vadd.f32 0.0, %v1841
        %v1843 = vpop.f32.mrb[0].mxu0
        %1844 = vmatprep.mubr.bf16.mxu0 0
        %1845 = vmatmul.mubr.bf16.gmra.mrb[0].mxu0 %v1623
        %v1846 = vpop.f32.mrb[0].mxu0
        %v1847 = vadd.f32 0.0, %v1846
        %v1848 = vpop.f32.mrb[0].mxu0
        %v1849 = vpop.f32.mrb[0].mxu0
        %v1850 = vadd.f32 0.0, %v1849
        %v1851 = vpop.f32.mrb[0].mxu0
        %1852 = vmatprep.mubr.bf16.mxu0 0
        %1853 = vmatmul.mubr.bf16.gmra.mrb[0].mxu0 %v1624
        %v1854 = vpop.f32.mrb[0].mxu0
        %v1855 = vadd.f32 0.0, %v1854
        %v1856 = vpop.f32.mrb[0].mxu0
        %v1857 = vpop.f32.mrb[0].mxu0
        %v1858 = vadd.f32 0.0, %v1857
        %v1859 = vpop.f32.mrb[0].mxu0
        %1860 = vmatprep.mubr.bf16.mxu0 0
        %1861 = vmatmul.mubr.bf16.gmra.mrb[0].mxu0 %v1625
        %v1862 = vpop.f32.mrb[0].mxu0
        %v1863 = vadd.f32 0.0, %v1862
        %v1864 = vpop.f32.mrb[0].mxu0
        %v1865 = vpop.f32.mrb[0].mxu0
        %v1866 = vadd.f32 0.0, %v1865
        %v1867 = vpop.f32.mrb[0].mxu0
        %1868 = vmatprep.mubr.bf16.mxu0 0
        %1869 = vmatmul.mubr.bf16.gmra.mrb[0].mxu0 %v1626
        %v1870 = vpop.f32.mrb[0].mxu0
        %v1871 = vadd.f32 0.0, %v1870
        %v1872 = vpop.f32.mrb[0].mxu0
        %v1873 = vpop.f32.mrb[0].mxu0
        %v1874 = vadd.f32 0.0, %v1873
        %v1875 = vpop.f32.mrb[0].mxu0
        %1876 = vmatprep.mubr.bf16.mxu0 0
        %1877 = vmatmul.mubr.bf16.gmra.mrb[0].mxu0 %v1627
        %v1878 = vpop.f32.mrb[0].mxu0
        %v1879 = vadd.f32 0.0, %v1878
        %v1880 = vpop.f32.mrb[0].mxu0
        %v1881 = vpop.f32.mrb[0].mxu0
        %v1882 = vadd.f32 0.0, %v1881
        %v1883 = vpop.f32.mrb[0].mxu0
        %1884 = vdwg.mxu0
        %v1885 = vunpack.c.l.bf16 %v834
        %v1886 = vunpack.c.l.bf16 %v835
        %v1887 = vunpack.c.l.bf16 %v836
        %v1888 = vunpack.c.l.bf16 %v837
        %v1889 = vunpack.c.l.bf16 %v838
        %v1890 = vunpack.c.l.bf16 %v839
        %v1891 = vunpack.c.l.bf16 %v840
        %v1892 = vunpack.c.l.bf16 %v841
        %v1893 = vunpack.c.l.bf16 %v842
        %v1894 = vunpack.c.l.bf16 %v843
        %v1895 = vunpack.c.l.bf16 %v844
        %v1896 = vunpack.c.l.bf16 %v845
        %v1897 = vunpack.c.l.bf16 %v846
        %v1898 = vunpack.c.l.bf16 %v847
        %v1899 = vunpack.c.l.bf16 %v848
        %v1900 = vunpack.c.l.bf16 %v849
        %v1901 = vunpack.c.l.bf16 %v850
        %v1902 = vunpack.c.l.bf16 %v851
        %v1903 = vunpack.c.l.bf16 %v852
        %v1904 = vunpack.c.l.bf16 %v853
        %v1905 = vunpack.c.l.bf16 %v854
        %v1906 = vunpack.c.l.bf16 %v855
        %v1907 = vunpack.c.l.bf16 %v856
        %v1908 = vunpack.c.l.bf16 %v857
        %v1909 = vunpack.c.l.bf16 %v858
        %v1910 = vunpack.c.l.bf16 %v859
        %v1911 = vunpack.c.l.bf16 %v860
        %v1912 = vunpack.c.l.bf16 %v861
        %v1913 = vunpack.c.l.bf16 %v862
        %v1914 = vunpack.c.l.bf16 %v863
        %v1915 = vunpack.c.l.bf16 %v864
        %v1916 = vunpack.c.l.bf16 %v865
        %v1917 = vunpack.c.l.bf16 %v866
        %v1918 = vunpack.c.l.bf16 %v867
        %v1919 = vunpack.c.l.bf16 %v868
        %v1920 = vunpack.c.l.bf16 %v869
        %v1921 = vunpack.c.l.bf16 %v870
        %v1922 = vunpack.c.l.bf16 %v871
        %v1923 = vunpack.c.l.bf16 %v872
        %v1924 = vunpack.c.l.bf16 %v873
        %v1925 = vmul.f32 %v1727, %v1885
        %v1926 = vmul.f32 %v1730, %v1886
        %v1927 = vmul.f32 %v1735, %v1887
        %v1928 = vmul.f32 %v1738, %v1888
        %v1929 = vmul.f32 %v1743, %v1889
        %v1930 = vmul.f32 %v1746, %v1890
        %v1931 = vmul.f32 %v1751, %v1891
        %v1932 = vmul.f32 %v1754, %v1892
        %v1933 = vmul.f32 %v1759, %v1893
        %v1934 = vmul.f32 %v1762, %v1894
        %v1935 = vmul.f32 %v1767, %v1895
        %v1936 = vmul.f32 %v1770, %v1896
        %v1937 = vmul.f32 %v1775, %v1897
        %v1938 = vmul.f32 %v1778, %v1898
        %v1939 = vmul.f32 %v1783, %v1899
        %v1940 = vmul.f32 %v1786, %v1900
        %v1941 = vmul.f32 %v1791, %v1901
        %v1942 = vmul.f32 %v1794, %v1902
        %v1943 = vmul.f32 %v1799, %v1903
        %v1944 = vmul.f32 %v1802, %v1904
        %v1945 = vmul.f32 %v1807, %v1905
        %v1946 = vmul.f32 %v1810, %v1906
        %v1947 = vmul.f32 %v1815, %v1907
        %v1948 = vmul.f32 %v1818, %v1908
        %v1949 = vmul.f32 %v1823, %v1909
        %v1950 = vmul.f32 %v1826, %v1910
        %v1951 = vmul.f32 %v1831, %v1911
        %v1952 = vmul.f32 %v1834, %v1912
        %v1953 = vmul.f32 %v1839, %v1913
        %v1954 = vmul.f32 %v1842, %v1914
        %v1955 = vmul.f32 %v1847, %v1915
        %v1956 = vmul.f32 %v1850, %v1916
        %v1957 = vmul.f32 %v1855, %v1917
        %v1958 = vmul.f32 %v1858, %v1918
        %v1959 = vmul.f32 %v1863, %v1919
        %v1960 = vmul.f32 %v1866, %v1920
        %v1961 = vmul.f32 %v1871, %v1921
        %v1962 = vmul.f32 %v1874, %v1922
        %v1963 = vmul.f32 %v1879, %v1923
        %v1964 = vmul.f32 %v1882, %v1924
        %v1965 = vpack.c.bf16 %v1926, %v1925
        %v1966 = vpack.c.bf16 %v1928, %v1927
        %v1967 = vpack.c.bf16 %v1930, %v1929
        %v1968 = vpack.c.bf16 %v1932, %v1931
        %v1969 = vpack.c.bf16 %v1934, %v1933
        %v1970 = vpack.c.bf16 %v1936, %v1935
        %v1971 = vpack.c.bf16 %v1938, %v1937
        %v1972 = vpack.c.bf16 %v1940, %v1939
        %v1973 = vpack.c.bf16 %v1942, %v1941
        %v1974 = vpack.c.bf16 %v1944, %v1943
        %v1975 = vpack.c.bf16 %v1946, %v1945
        %v1976 = vpack.c.bf16 %v1948, %v1947
        %v1977 = vpack.c.bf16 %v1950, %v1949
        %v1978 = vpack.c.bf16 %v1952, %v1951
        %v1979 = vpack.c.bf16 %v1954, %v1953
        %v1980 = vpack.c.bf16 %v1956, %v1955
        %v1981 = vpack.c.bf16 %v1958, %v1957
        %v1982 = vpack.c.bf16 %v1960, %v1959
        %v1983 = vpack.c.bf16 %v1962, %v1961
        %v1984 = vpack.c.bf16 %v1964, %v1963
        %v1985 = vld [vmem:[#allocation10] sm:$0xf]
        %v1986 = vld [vmem:[#allocation10 + $0x4] sm:$0xf]
        %v1987 = vld [vmem:[#allocation10 + $0x8] sm:$0xf]
        %v1988 = vld [vmem:[#allocation10 + $0xc] sm:$0xf]
        %v1989 = vld [vmem:[#allocation10 + $0x10] sm:$0xf]
        %v1990 = vld [vmem:[#allocation10 + $0x14] sm:$0xf]
        %v1991 = vld [vmem:[#allocation10 + $0x18] sm:$0xf]
        %v1992 = vld [vmem:[#allocation10 + $0x1c] sm:$0xf]
        %v1993 = vld [vmem:[#allocation10 + $0x20] sm:$0xf]
        %v1994 = vld [vmem:[#allocation10 + $0x24] sm:$0xf]
        %v1995 = vld [vmem:[#allocation10 + $0x28] sm:$0xf]
        %v1996 = vld [vmem:[#allocation10 + $0x2c] sm:$0xf]
        %v1997 = vld [vmem:[#allocation10 + $0x30] sm:$0xf]
        %v1998 = vld [vmem:[#allocation10 + $0x34] sm:$0xf]
        %v1999 = vld [vmem:[#allocation10 + $0x38] sm:$0xf]
        %v2000 = vld [vmem:[#allocation10 + $0x3c] sm:$0xf]
        %v2001 = vld [vmem:[%s5] sm:$0x1]
        %v2003 = vlaneseq
        %v2004 = vshrl.u32 %v2003, 7
        %v2005 = vsub.s32 0, %v2004
        %v2006 = vrot.slane %v2001, %v2005
        %v2024 = vunpack.c.l.b16 %v1985
        %v2025 = vunpack.c.l.b16 %v1986
        %v2026 = vunpack.c.l.b16 %v1987
        %v2027 = vunpack.c.l.b16 %v1988
        %v2028 = vunpack.c.l.b16 %v1989
        %v2029 = vunpack.c.l.b16 %v1990
        %v2030 = vunpack.c.l.b16 %v1991
        %v2031 = vunpack.c.l.b16 %v1992
        %v2032 = vunpack.c.l.b16 %v1993
        %v2033 = vunpack.c.l.b16 %v1994
        %v2034 = vunpack.c.l.b16 %v1995
        %v2035 = vunpack.c.l.b16 %v1996
        %v2036 = vunpack.c.l.b16 %v1997
        %v2037 = vunpack.c.l.b16 %v1998
        %v2038 = vunpack.c.l.b16 %v1999
        %v2039 = vunpack.c.l.b16 %v2000
        %v2040 = vpack.c.b16 %v2025, %v2024
        %v2041 = vpack.c.b16 %v2027, %v2026
        %v2042 = vpack.c.b16 %v2029, %v2028
        %v2043 = vpack.c.b16 %v2031, %v2030
        %v2044 = vpack.c.b16 %v2033, %v2032
        %v2045 = vpack.c.b16 %v2035, %v2034
        %v2046 = vpack.c.b16 %v2037, %v2036
        %v2047 = vpack.c.b16 %v2039, %v2038
        %2056 = vmatprep.subr.bf16.mxu0 0
        %2057 = vmatpush1.bf16.msra.mxu0 %v2040
        %2058 = vmatprep.subr.bf16.mxu0 0
        %2059 = vmatpush1.bf16.msra.mxu0 %v2041
        %2060 = vmatprep.subr.bf16.mxu0 0
        %2061 = vmatpush1.bf16.msra.mxu0 %v2042
        %2062 = vmatprep.subr.bf16.mxu0 0
        %2063 = vmatpush1.bf16.msra.mxu0 %v2043
        %2064 = vmatprep.subr.bf16.mxu0 0
        %2065 = vmatpush1.bf16.msra.mxu0 %v2044
        %2066 = vmatprep.subr.bf16.mxu0 0
        %2067 = vmatpush1.bf16.msra.mxu0 %v2045
        %2068 = vmatprep.subr.bf16.mxu0 0
        %2069 = vmatpush1.bf16.msra.mxu0 %v2046
        %2070 = vmatprep.subr.bf16.mxu0 0
        %2071 = vmatpush1.bf16.msra.mxu0 %v2047
        %2072 = vmatprep.subr.bf16.mxu0 0
        %2073 = vmatpush1.bf16.msra.mxu0 0
        %2074 = vmatprep.subr.bf16.mxu0 0
        %2075 = vmatpush1.bf16.msra.mxu0 0
        %2076 = vmatprep.subr.bf16.mxu0 0
        %2077 = vmatpush1.bf16.msra.mxu0 0
        %2078 = vmatprep.subr.bf16.mxu0 0
        %2079 = vmatpush1.bf16.msra.mxu0 0
        %2080 = vmatprep.subr.bf16.mxu0 0
        %2081 = vmatpush1.bf16.msra.mxu0 0
        %2082 = vmatprep.subr.bf16.mxu0 0
        %2083 = vmatpush1.bf16.msra.mxu0 0
        %2084 = vmatprep.subr.bf16.mxu0 0
        %2085 = vmatpush1.bf16.msra.mxu0 0
        %2086 = vmatprep.subr.bf16.mxu0 0
        %2087 = vmatpush1.bf16.msra.mxu0 0
        %2088 = vmatprep.mubr.bf16.mxu0 0
        %2089 = vmatmul.mubr.bf16.gmra.mrb[0].mxu0 %v1965
        %v2090 = vpop.f32.mrb[0].mxu0
        %v2091 = vadd.f32 %v2006, %v2090
        %v2092 = vpop.f32.mrb[0].mxu0
        %v2093 = vpop.f32.mrb[0].mxu0
        %v2094 = vadd.f32 %v2006, %v2093
        %v2095 = vpop.f32.mrb[0].mxu0
        %2096 = vmatprep.mubr.bf16.mxu0 0
        %2097 = vmatmul.mubr.bf16.gmra.mrb[0].mxu0 %v1966
        %v2098 = vpop.f32.mrb[0].mxu0
        %v2099 = vadd.f32 %v2006, %v2098
        %v2100 = vpop.f32.mrb[0].mxu0
        %v2101 = vpop.f32.mrb[0].mxu0
        %v2102 = vadd.f32 %v2006, %v2101
        %v2103 = vpop.f32.mrb[0].mxu0
        %2104 = vmatprep.mubr.bf16.mxu0 0
        %2105 = vmatmul.mubr.bf16.gmra.mrb[0].mxu0 %v1967
        %v2106 = vpop.f32.mrb[0].mxu0
        %v2107 = vadd.f32 %v2006, %v2106
        %v2108 = vpop.f32.mrb[0].mxu0
        %v2109 = vpop.f32.mrb[0].mxu0
        %v2110 = vadd.f32 %v2006, %v2109
        %v2111 = vpop.f32.mrb[0].mxu0
        %2112 = vmatprep.mubr.bf16.mxu0 0
        %2113 = vmatmul.mubr.bf16.gmra.mrb[0].mxu0 %v1968
        %v2114 = vpop.f32.mrb[0].mxu0
        %v2115 = vadd.f32 %v2006, %v2114
        %v2116 = vpop.f32.mrb[0].mxu0
        %v2117 = vpop.f32.mrb[0].mxu0
        %v2118 = vadd.f32 %v2006, %v2117
        %v2119 = vpop.f32.mrb[0].mxu0
        %2120 = vmatprep.mubr.bf16.mxu0 0
        %2121 = vmatmul.mubr.bf16.gmra.mrb[0].mxu0 %v1969
        %v2122 = vpop.f32.mrb[0].mxu0
        %v2123 = vadd.f32 %v2006, %v2122
        %v2124 = vpop.f32.mrb[0].mxu0
        %v2125 = vpop.f32.mrb[0].mxu0
        %v2126 = vadd.f32 %v2006, %v2125
        %v2127 = vpop.f32.mrb[0].mxu0
        %2128 = vmatprep.mubr.bf16.mxu0 0
        %2129 = vmatmul.mubr.bf16.gmra.mrb[0].mxu0 %v1970
        %v2130 = vpop.f32.mrb[0].mxu0
        %v2131 = vadd.f32 %v2006, %v2130
        %v2132 = vpop.f32.mrb[0].mxu0
        %v2133 = vpop.f32.mrb[0].mxu0
        %v2134 = vadd.f32 %v2006, %v2133
        %v2135 = vpop.f32.mrb[0].mxu0
        %2136 = vmatprep.mubr.bf16.mxu0 0
        %2137 = vmatmul.mubr.bf16.gmra.mrb[0].mxu0 %v1971
        %v2138 = vpop.f32.mrb[0].mxu0
        %v2139 = vadd.f32 %v2006, %v2138
        %v2140 = vpop.f32.mrb[0].mxu0
        %v2141 = vpop.f32.mrb[0].mxu0
        %v2142 = vadd.f32 %v2006, %v2141
        %v2143 = vpop.f32.mrb[0].mxu0
        %2144 = vmatprep.mubr.bf16.mxu0 0
        %2145 = vmatmul.mubr.bf16.gmra.mrb[0].mxu0 %v1972
        %v2146 = vpop.f32.mrb[0].mxu0
        %v2147 = vadd.f32 %v2006, %v2146
        %v2148 = vpop.f32.mrb[0].mxu0
        %v2149 = vpop.f32.mrb[0].mxu0
        %v2150 = vadd.f32 %v2006, %v2149
        %v2151 = vpop.f32.mrb[0].mxu0
        %2152 = vmatprep.mubr.bf16.mxu0 0
        %2153 = vmatmul.mubr.bf16.gmra.mrb[0].mxu0 %v1973
        %v2154 = vpop.f32.mrb[0].mxu0
        %v2155 = vadd.f32 %v2006, %v2154
        %v2156 = vpop.f32.mrb[0].mxu0
        %v2157 = vpop.f32.mrb[0].mxu0
        %v2158 = vadd.f32 %v2006, %v2157
        %v2159 = vpop.f32.mrb[0].mxu0
        %2160 = vmatprep.mubr.bf16.mxu0 0
        %2161 = vmatmul.mubr.bf16.gmra.mrb[0].mxu0 %v1974
        %v2162 = vpop.f32.mrb[0].mxu0
        %v2163 = vadd.f32 %v2006, %v2162
        %v2164 = vpop.f32.mrb[0].mxu0
        %v2165 = vpop.f32.mrb[0].mxu0
        %v2166 = vadd.f32 %v2006, %v2165
        %v2167 = vpop.f32.mrb[0].mxu0
        %2168 = vmatprep.mubr.bf16.mxu0 0
        %2169 = vmatmul.mubr.bf16.gmra.mrb[0].mxu0 %v1975
        %v2170 = vpop.f32.mrb[0].mxu0
        %v2171 = vadd.f32 %v2006, %v2170
        %v2172 = vpop.f32.mrb[0].mxu0
        %v2173 = vpop.f32.mrb[0].mxu0
        %v2174 = vadd.f32 %v2006, %v2173
        %v2175 = vpop.f32.mrb[0].mxu0
        %2176 = vmatprep.mubr.bf16.mxu0 0
        %2177 = vmatmul.mubr.bf16.gmra.mrb[0].mxu0 %v1976
        %v2178 = vpop.f32.mrb[0].mxu0
        %v2179 = vadd.f32 %v2006, %v2178
        %v2180 = vpop.f32.mrb[0].mxu0
        %v2181 = vpop.f32.mrb[0].mxu0
        %v2182 = vadd.f32 %v2006, %v2181
        %v2183 = vpop.f32.mrb[0].mxu0
        %2184 = vmatprep.mubr.bf16.mxu0 0
        %2185 = vmatmul.mubr.bf16.gmra.mrb[0].mxu0 %v1977
        %v2186 = vpop.f32.mrb[0].mxu0
        %v2187 = vadd.f32 %v2006, %v2186
        %v2188 = vpop.f32.mrb[0].mxu0
        %v2189 = vpop.f32.mrb[0].mxu0
        %v2190 = vadd.f32 %v2006, %v2189
        %v2191 = vpop.f32.mrb[0].mxu0
        %2192 = vmatprep.mubr.bf16.mxu0 0
        %2193 = vmatmul.mubr.bf16.gmra.mrb[0].mxu0 %v1978
        %v2194 = vpop.f32.mrb[0].mxu0
        %v2195 = vadd.f32 %v2006, %v2194
        %v2196 = vpop.f32.mrb[0].mxu0
        %v2197 = vpop.f32.mrb[0].mxu0
        %v2198 = vadd.f32 %v2006, %v2197
        %v2199 = vpop.f32.mrb[0].mxu0
        %2200 = vmatprep.mubr.bf16.mxu0 0
        %2201 = vmatmul.mubr.bf16.gmra.mrb[0].mxu0 %v1979
        %v2202 = vpop.f32.mrb[0].mxu0
        %v2203 = vadd.f32 %v2006, %v2202
        %v2204 = vpop.f32.mrb[0].mxu0
        %v2205 = vpop.f32.mrb[0].mxu0
        %v2206 = vadd.f32 %v2006, %v2205
        %v2207 = vpop.f32.mrb[0].mxu0
        %2208 = vmatprep.mubr.bf16.mxu0 0
        %2209 = vmatmul.mubr.bf16.gmra.mrb[0].mxu0 %v1980
        %v2210 = vpop.f32.mrb[0].mxu0
        %v2211 = vadd.f32 %v2006, %v2210
        %v2212 = vpop.f32.mrb[0].mxu0
        %v2213 = vpop.f32.mrb[0].mxu0
        %v2214 = vadd.f32 %v2006, %v2213
        %v2215 = vpop.f32.mrb[0].mxu0
        %2216 = vmatprep.mubr.bf16.mxu0 0
        %2217 = vmatmul.mubr.bf16.gmra.mrb[0].mxu0 %v1981
        %v2218 = vpop.f32.mrb[0].mxu0
        %v2219 = vadd.f32 %v2006, %v2218
        %v2220 = vpop.f32.mrb[0].mxu0
        %v2221 = vpop.f32.mrb[0].mxu0
        %v2222 = vadd.f32 %v2006, %v2221
        %v2223 = vpop.f32.mrb[0].mxu0
        %2224 = vmatprep.mubr.bf16.mxu0 0
        %2225 = vmatmul.mubr.bf16.gmra.mrb[0].mxu0 %v1982
        %v2226 = vpop.f32.mrb[0].mxu0
        %v2227 = vadd.f32 %v2006, %v2226
        %v2228 = vpop.f32.mrb[0].mxu0
        %v2229 = vpop.f32.mrb[0].mxu0
        %v2230 = vadd.f32 %v2006, %v2229
        %v2231 = vpop.f32.mrb[0].mxu0
        %2232 = vmatprep.mubr.bf16.mxu0 0
        %2233 = vmatmul.mubr.bf16.gmra.mrb[0].mxu0 %v1983
        %v2234 = vpop.f32.mrb[0].mxu0
        %v2235 = vadd.f32 %v2006, %v2234
        %v2236 = vpop.f32.mrb[0].mxu0
        %v2237 = vpop.f32.mrb[0].mxu0
        %v2238 = vadd.f32 %v2006, %v2237
        %v2239 = vpop.f32.mrb[0].mxu0
        %2240 = vmatprep.mubr.bf16.mxu0 0
        %2241 = vmatmul.mubr.bf16.gmra.mrb[0].mxu0 %v1984
        %v2242 = vpop.f32.mrb[0].mxu0
        %v2243 = vadd.f32 %v2006, %v2242
        %v2244 = vpop.f32.mrb[0].mxu0
        %v2245 = vpop.f32.mrb[0].mxu0
        %v2246 = vadd.f32 %v2006, %v2245
        %v2247 = vpop.f32.mrb[0].mxu0
        %2248 = vdwg.mxu0
        %v2249 = vmax.f32 %v2091, 0.0
        %v2250 = vmax.f32 %v2094, 0.0
        %v2251 = vmax.f32 %v2099, 0.0
        %v2252 = vmax.f32 %v2102, 0.0
        %v2253 = vmax.f32 %v2107, 0.0
        %v2254 = vmax.f32 %v2110, 0.0
        %v2255 = vmax.f32 %v2115, 0.0
        %v2256 = vmax.f32 %v2118, 0.0
        %v2257 = vmax.f32 %v2123, 0.0
        %v2258 = vmax.f32 %v2126, 0.0
        %v2259 = vmax.f32 %v2131, 0.0
        %v2260 = vmax.f32 %v2134, 0.0
        %v2261 = vmax.f32 %v2139, 0.0
        %v2262 = vmax.f32 %v2142, 0.0
        %v2263 = vmax.f32 %v2147, 0.0
        %v2264 = vmax.f32 %v2150, 0.0
        %v2265 = vmax.f32 %v2155, 0.0
        %v2266 = vmax.f32 %v2158, 0.0
        %v2267 = vmax.f32 %v2163, 0.0
        %v2268 = vmax.f32 %v2166, 0.0
        %v2269 = vmax.f32 %v2171, 0.0
        %v2270 = vmax.f32 %v2174, 0.0
        %v2271 = vmax.f32 %v2179, 0.0
        %v2272 = vmax.f32 %v2182, 0.0
        %v2273 = vmax.f32 %v2187, 0.0
        %v2274 = vmax.f32 %v2190, 0.0
        %v2275 = vmax.f32 %v2195, 0.0
        %v2276 = vmax.f32 %v2198, 0.0
        %v2277 = vmax.f32 %v2203, 0.0
        %v2278 = vmax.f32 %v2206, 0.0
        %v2279 = vmax.f32 %v2211, 0.0
        %v2280 = vmax.f32 %v2214, 0.0
        %v2281 = vmax.f32 %v2219, 0.0
        %v2282 = vmax.f32 %v2222, 0.0
        %v2283 = vmax.f32 %v2227, 0.0
        %v2284 = vmax.f32 %v2230, 0.0
        %v2285 = vmax.f32 %v2235, 0.0
        %v2286 = vmax.f32 %v2238, 0.0
        %v2287 = vmax.f32 %v2243, 0.0
        %v2288 = vmax.f32 %v2246, 0.0
        %v2289 = vpack.c.bf16 %v2250, %v2249
        %v2290 = vpack.c.bf16 %v2252, %v2251
        %v2291 = vpack.c.bf16 %v2254, %v2253
        %v2292 = vpack.c.bf16 %v2256, %v2255
        %v2293 = vpack.c.bf16 %v2258, %v2257
        %v2294 = vpack.c.bf16 %v2260, %v2259
        %v2295 = vpack.c.bf16 %v2262, %v2261
        %v2296 = vpack.c.bf16 %v2264, %v2263
        %v2297 = vpack.c.bf16 %v2266, %v2265
        %v2298 = vpack.c.bf16 %v2268, %v2267
        %v2299 = vpack.c.bf16 %v2270, %v2269
        %v2300 = vpack.c.bf16 %v2272, %v2271
        %v2301 = vpack.c.bf16 %v2274, %v2273
        %v2302 = vpack.c.bf16 %v2276, %v2275
        %v2303 = vpack.c.bf16 %v2278, %v2277
        %v2304 = vpack.c.bf16 %v2280, %v2279
        %v2305 = vpack.c.bf16 %v2282, %v2281
        %v2306 = vpack.c.bf16 %v2284, %v2283
        %v2307 = vpack.c.bf16 %v2286, %v2285
        %v2308 = vpack.c.bf16 %v2288, %v2287
        %v2309 = vld [vmem:[#allocation11] sm:$0xf]
        %v2310 = vld [vmem:[#allocation11 + $0x4] sm:$0xf]
        %v2311 = vld [vmem:[#allocation11 + $0x8] sm:$0xf]
        %v2312 = vld [vmem:[#allocation11 + $0xc] sm:$0xf]
        %v2313 = vld [vmem:[#allocation11 + $0x10] sm:$0xf]
        %v2314 = vld [vmem:[#allocation11 + $0x14] sm:$0xf]
        %v2315 = vld [vmem:[#allocation11 + $0x18] sm:$0xf]
        %v2316 = vld [vmem:[#allocation11 + $0x1c] sm:$0xf]
        %v2317 = vld [vmem:[#allocation11 + $0x20] sm:$0xf]
        %v2318 = vld [vmem:[#allocation11 + $0x24] sm:$0xf]
        %v2319 = vld [vmem:[#allocation11 + $0x28] sm:$0xf]
        %v2320 = vld [vmem:[#allocation11 + $0x2c] sm:$0xf]
        %v2321 = vld [vmem:[#allocation11 + $0x30] sm:$0xf]
        %v2322 = vld [vmem:[#allocation11 + $0x34] sm:$0xf]
        %v2323 = vld [vmem:[#allocation11 + $0x38] sm:$0xf]
        %v2324 = vld [vmem:[#allocation11 + $0x3c] sm:$0xf]
        %v2325 = vld [vmem:[%s7] sm:$0x1]
        %v2327 = vlaneseq
        %v2328 = vshrl.u32 %v2327, 7
        %v2329 = vsub.s32 0, %v2328
        %v2330 = vrot.slane %v2325, %v2329
        %v2348 = vunpack.c.l.b16 %v2309
        %v2349 = vunpack.c.l.b16 %v2310
        %v2350 = vunpack.c.l.b16 %v2311
        %v2351 = vunpack.c.l.b16 %v2312
        %v2352 = vunpack.c.l.b16 %v2313
        %v2353 = vunpack.c.l.b16 %v2314
        %v2354 = vunpack.c.l.b16 %v2315
        %v2355 = vunpack.c.l.b16 %v2316
        %v2356 = vunpack.c.l.b16 %v2317
        %v2357 = vunpack.c.l.b16 %v2318
        %v2358 = vunpack.c.l.b16 %v2319
        %v2359 = vunpack.c.l.b16 %v2320
        %v2360 = vunpack.c.l.b16 %v2321
        %v2361 = vunpack.c.l.b16 %v2322
        %v2362 = vunpack.c.l.b16 %v2323
        %v2363 = vunpack.c.l.b16 %v2324
        %v2364 = vpack.c.b16 %v2349, %v2348
        %v2365 = vpack.c.b16 %v2351, %v2350
        %v2366 = vpack.c.b16 %v2353, %v2352
        %v2367 = vpack.c.b16 %v2355, %v2354
        %v2368 = vpack.c.b16 %v2357, %v2356
        %v2369 = vpack.c.b16 %v2359, %v2358
        %v2370 = vpack.c.b16 %v2361, %v2360
        %v2371 = vpack.c.b16 %v2363, %v2362
        %2380 = vmatprep.subr.bf16.mxu0 0
        %2381 = vmatpush1.bf16.msra.mxu0 %v2364
        %2382 = vmatprep.subr.bf16.mxu0 0
        %2383 = vmatpush1.bf16.msra.mxu0 %v2365
        %2384 = vmatprep.subr.bf16.mxu0 0
        %2385 = vmatpush1.bf16.msra.mxu0 %v2366
        %2386 = vmatprep.subr.bf16.mxu0 0
        %2387 = vmatpush1.bf16.msra.mxu0 %v2367
        %2388 = vmatprep.subr.bf16.mxu0 0
        %2389 = vmatpush1.bf16.msra.mxu0 %v2368
        %2390 = vmatprep.subr.bf16.mxu0 0
        %2391 = vmatpush1.bf16.msra.mxu0 %v2369
        %2392 = vmatprep.subr.bf16.mxu0 0
        %2393 = vmatpush1.bf16.msra.mxu0 %v2370
        %2394 = vmatprep.subr.bf16.mxu0 0
        %2395 = vmatpush1.bf16.msra.mxu0 %v2371
        %2396 = vmatprep.subr.bf16.mxu0 0
        %2397 = vmatpush1.bf16.msra.mxu0 0
        %2398 = vmatprep.subr.bf16.mxu0 0
        %2399 = vmatpush1.bf16.msra.mxu0 0
        %2400 = vmatprep.subr.bf16.mxu0 0
        %2401 = vmatpush1.bf16.msra.mxu0 0
        %2402 = vmatprep.subr.bf16.mxu0 0
        %2403 = vmatpush1.bf16.msra.mxu0 0
        %2404 = vmatprep.subr.bf16.mxu0 0
        %2405 = vmatpush1.bf16.msra.mxu0 0
        %2406 = vmatprep.subr.bf16.mxu0 0
        %2407 = vmatpush1.bf16.msra.mxu0 0
        %2408 = vmatprep.subr.bf16.mxu0 0
        %2409 = vmatpush1.bf16.msra.mxu0 0
        %2410 = vmatprep.subr.bf16.mxu0 0
        %2411 = vmatpush1.bf16.msra.mxu0 0
        %2412 = vmatprep.mubr.bf16.mxu0 0
        %2413 = vmatmul.mubr.bf16.gmra.mrb[0].mxu0 %v2289
        %v2414 = vpop.f32.mrb[0].mxu0
        %v2415 = vadd.f32 %v2330, %v2414
        %v2416 = vpop.f32.mrb[0].mxu0
        %v2417 = vpop.f32.mrb[0].mxu0
        %v2418 = vadd.f32 %v2330, %v2417
        %v2419 = vpop.f32.mrb[0].mxu0
        %2420 = vmatprep.mubr.bf16.mxu0 0
        %2421 = vmatmul.mubr.bf16.gmra.mrb[0].mxu0 %v2290
        %v2422 = vpop.f32.mrb[0].mxu0
        %v2423 = vadd.f32 %v2330, %v2422
        %v2424 = vpop.f32.mrb[0].mxu0
        %v2425 = vpop.f32.mrb[0].mxu0
        %v2426 = vadd.f32 %v2330, %v2425
        %v2427 = vpop.f32.mrb[0].mxu0
        %2428 = vmatprep.mubr.bf16.mxu0 0
        %2429 = vmatmul.mubr.bf16.gmra.mrb[0].mxu0 %v2291
        %v2430 = vpop.f32.mrb[0].mxu0
        %v2431 = vadd.f32 %v2330, %v2430
        %v2432 = vpop.f32.mrb[0].mxu0
        %v2433 = vpop.f32.mrb[0].mxu0
        %v2434 = vadd.f32 %v2330, %v2433
        %v2435 = vpop.f32.mrb[0].mxu0
        %2436 = vmatprep.mubr.bf16.mxu0 0
        %2437 = vmatmul.mubr.bf16.gmra.mrb[0].mxu0 %v2292
        %v2438 = vpop.f32.mrb[0].mxu0
        %v2439 = vadd.f32 %v2330, %v2438
        %v2440 = vpop.f32.mrb[0].mxu0
        %v2441 = vpop.f32.mrb[0].mxu0
        %v2442 = vadd.f32 %v2330, %v2441
        %v2443 = vpop.f32.mrb[0].mxu0
        %2444 = vmatprep.mubr.bf16.mxu0 0
        %2445 = vmatmul.mubr.bf16.gmra.mrb[0].mxu0 %v2293
        %v2446 = vpop.f32.mrb[0].mxu0
        %v2447 = vadd.f32 %v2330, %v2446
        %v2448 = vpop.f32.mrb[0].mxu0
        %v2449 = vpop.f32.mrb[0].mxu0
        %v2450 = vadd.f32 %v2330, %v2449
        %v2451 = vpop.f32.mrb[0].mxu0
        %2452 = vmatprep.mubr.bf16.mxu0 0
        %2453 = vmatmul.mubr.bf16.gmra.mrb[0].mxu0 %v2294
        %v2454 = vpop.f32.mrb[0].mxu0
        %v2455 = vadd.f32 %v2330, %v2454
        %v2456 = vpop.f32.mrb[0].mxu0
        %v2457 = vpop.f32.mrb[0].mxu0
        %v2458 = vadd.f32 %v2330, %v2457
        %v2459 = vpop.f32.mrb[0].mxu0
        %2460 = vmatprep.mubr.bf16.mxu0 0
        %2461 = vmatmul.mubr.bf16.gmra.mrb[0].mxu0 %v2295
        %v2462 = vpop.f32.mrb[0].mxu0
        %v2463 = vadd.f32 %v2330, %v2462
        %v2464 = vpop.f32.mrb[0].mxu0
        %v2465 = vpop.f32.mrb[0].mxu0
        %v2466 = vadd.f32 %v2330, %v2465
        %v2467 = vpop.f32.mrb[0].mxu0
        %2468 = vmatprep.mubr.bf16.mxu0 0
        %2469 = vmatmul.mubr.bf16.gmra.mrb[0].mxu0 %v2296
        %v2470 = vpop.f32.mrb[0].mxu0
        %v2471 = vadd.f32 %v2330, %v2470
        %v2472 = vpop.f32.mrb[0].mxu0
        %v2473 = vpop.f32.mrb[0].mxu0
        %v2474 = vadd.f32 %v2330, %v2473
        %v2475 = vpop.f32.mrb[0].mxu0
        %2476 = vmatprep.mubr.bf16.mxu0 0
        %2477 = vmatmul.mubr.bf16.gmra.mrb[0].mxu0 %v2297
        %v2478 = vpop.f32.mrb[0].mxu0
        %v2479 = vadd.f32 %v2330, %v2478
        %v2480 = vpop.f32.mrb[0].mxu0
        %v2481 = vpop.f32.mrb[0].mxu0
        %v2482 = vadd.f32 %v2330, %v2481
        %v2483 = vpop.f32.mrb[0].mxu0
        %2484 = vmatprep.mubr.bf16.mxu0 0
        %2485 = vmatmul.mubr.bf16.gmra.mrb[0].mxu0 %v2298
        %v2486 = vpop.f32.mrb[0].mxu0
        %v2487 = vadd.f32 %v2330, %v2486
        %v2488 = vpop.f32.mrb[0].mxu0
        %v2489 = vpop.f32.mrb[0].mxu0
        %v2490 = vadd.f32 %v2330, %v2489
        %v2491 = vpop.f32.mrb[0].mxu0
        %2492 = vmatprep.mubr.bf16.mxu0 0
        %2493 = vmatmul.mubr.bf16.gmra.mrb[0].mxu0 %v2299
        %v2494 = vpop.f32.mrb[0].mxu0
        %v2495 = vadd.f32 %v2330, %v2494
        %v2496 = vpop.f32.mrb[0].mxu0
        %v2497 = vpop.f32.mrb[0].mxu0
        %v2498 = vadd.f32 %v2330, %v2497
        %v2499 = vpop.f32.mrb[0].mxu0
        %2500 = vmatprep.mubr.bf16.mxu0 0
        %2501 = vmatmul.mubr.bf16.gmra.mrb[0].mxu0 %v2300
        %v2502 = vpop.f32.mrb[0].mxu0
        %v2503 = vadd.f32 %v2330, %v2502
        %v2504 = vpop.f32.mrb[0].mxu0
        %v2505 = vpop.f32.mrb[0].mxu0
        %v2506 = vadd.f32 %v2330, %v2505
        %v2507 = vpop.f32.mrb[0].mxu0
        %2508 = vmatprep.mubr.bf16.mxu0 0
        %2509 = vmatmul.mubr.bf16.gmra.mrb[0].mxu0 %v2301
        %v2510 = vpop.f32.mrb[0].mxu0
        %v2511 = vadd.f32 %v2330, %v2510
        %v2512 = vpop.f32.mrb[0].mxu0
        %v2513 = vpop.f32.mrb[0].mxu0
        %v2514 = vadd.f32 %v2330, %v2513
        %v2515 = vpop.f32.mrb[0].mxu0
        %2516 = vmatprep.mubr.bf16.mxu0 0
        %2517 = vmatmul.mubr.bf16.gmra.mrb[0].mxu0 %v2302
        %v2518 = vpop.f32.mrb[0].mxu0
        %v2519 = vadd.f32 %v2330, %v2518
        %v2520 = vpop.f32.mrb[0].mxu0
        %v2521 = vpop.f32.mrb[0].mxu0
        %v2522 = vadd.f32 %v2330, %v2521
        %v2523 = vpop.f32.mrb[0].mxu0
        %2524 = vmatprep.mubr.bf16.mxu0 0
        %2525 = vmatmul.mubr.bf16.gmra.mrb[0].mxu0 %v2303
        %v2526 = vpop.f32.mrb[0].mxu0
        %v2527 = vadd.f32 %v2330, %v2526
        %v2528 = vpop.f32.mrb[0].mxu0
        %v2529 = vpop.f32.mrb[0].mxu0
        %v2530 = vadd.f32 %v2330, %v2529
        %v2531 = vpop.f32.mrb[0].mxu0
        %2532 = vmatprep.mubr.bf16.mxu0 0
        %2533 = vmatmul.mubr.bf16.gmra.mrb[0].mxu0 %v2304
        %v2534 = vpop.f32.mrb[0].mxu0
        %v2535 = vadd.f32 %v2330, %v2534
        %v2536 = vpop.f32.mrb[0].mxu0
        %v2537 = vpop.f32.mrb[0].mxu0
        %v2538 = vadd.f32 %v2330, %v2537
        %v2539 = vpop.f32.mrb[0].mxu0
        %2540 = vmatprep.mubr.bf16.mxu0 0
        %2541 = vmatmul.mubr.bf16.gmra.mrb[0].mxu0 %v2305
        %v2542 = vpop.f32.mrb[0].mxu0
        %v2543 = vadd.f32 %v2330, %v2542
        %v2544 = vpop.f32.mrb[0].mxu0
        %v2545 = vpop.f32.mrb[0].mxu0
        %v2546 = vadd.f32 %v2330, %v2545
        %v2547 = vpop.f32.mrb[0].mxu0
        %2548 = vmatprep.mubr.bf16.mxu0 0
        %2549 = vmatmul.mubr.bf16.gmra.mrb[0].mxu0 %v2306
        %v2550 = vpop.f32.mrb[0].mxu0
        %v2551 = vadd.f32 %v2330, %v2550
        %v2552 = vpop.f32.mrb[0].mxu0
        %v2553 = vpop.f32.mrb[0].mxu0
        %v2554 = vadd.f32 %v2330, %v2553
        %v2555 = vpop.f32.mrb[0].mxu0
        %2556 = vmatprep.mubr.bf16.mxu0 0
        %2557 = vmatmul.mubr.bf16.gmra.mrb[0].mxu0 %v2307
        %v2558 = vpop.f32.mrb[0].mxu0
        %v2559 = vadd.f32 %v2330, %v2558
        %v2560 = vpop.f32.mrb[0].mxu0
        %v2561 = vpop.f32.mrb[0].mxu0
        %v2562 = vadd.f32 %v2330, %v2561
        %v2563 = vpop.f32.mrb[0].mxu0
        %2564 = vmatprep.mubr.bf16.mxu0 0
        %2565 = vmatmul.mubr.bf16.gmra.mrb[0].mxu0 %v2308
        %v2566 = vpop.f32.mrb[0].mxu0
        %v2567 = vadd.f32 %v2330, %v2566
        %v2568 = vpop.f32.mrb[0].mxu0
        %v2569 = vpop.f32.mrb[0].mxu0
        %v2570 = vadd.f32 %v2330, %v2569
        %v2571 = vpop.f32.mrb[0].mxu0
        %2572 = vdwg.mxu0
        %v2573 = vmax.f32 %v2415, 0.0
        %v2574 = vmax.f32 %v2418, 0.0
        %v2575 = vmax.f32 %v2423, 0.0
        %v2576 = vmax.f32 %v2426, 0.0
        %v2577 = vmax.f32 %v2431, 0.0
        %v2578 = vmax.f32 %v2434, 0.0
        %v2579 = vmax.f32 %v2439, 0.0
        %v2580 = vmax.f32 %v2442, 0.0
        %v2581 = vmax.f32 %v2447, 0.0
        %v2582 = vmax.f32 %v2450, 0.0
        %v2583 = vmax.f32 %v2455, 0.0
        %v2584 = vmax.f32 %v2458, 0.0
        %v2585 = vmax.f32 %v2463, 0.0
        %v2586 = vmax.f32 %v2466, 0.0
        %v2587 = vmax.f32 %v2471, 0.0
        %v2588 = vmax.f32 %v2474, 0.0
        %v2589 = vmax.f32 %v2479, 0.0
        %v2590 = vmax.f32 %v2482, 0.0
        %v2591 = vmax.f32 %v2487, 0.0
        %v2592 = vmax.f32 %v2490, 0.0
        %v2593 = vmax.f32 %v2495, 0.0
        %v2594 = vmax.f32 %v2498, 0.0
        %v2595 = vmax.f32 %v2503, 0.0
        %v2596 = vmax.f32 %v2506, 0.0
        %v2597 = vmax.f32 %v2511, 0.0
        %v2598 = vmax.f32 %v2514, 0.0
        %v2599 = vmax.f32 %v2519, 0.0
        %v2600 = vmax.f32 %v2522, 0.0
        %v2601 = vmax.f32 %v2527, 0.0
        %v2602 = vmax.f32 %v2530, 0.0
        %v2603 = vmax.f32 %v2535, 0.0
        %v2604 = vmax.f32 %v2538, 0.0
        %v2605 = vmax.f32 %v2543, 0.0
        %v2606 = vmax.f32 %v2546, 0.0
        %v2607 = vmax.f32 %v2551, 0.0
        %v2608 = vmax.f32 %v2554, 0.0
        %v2609 = vmax.f32 %v2559, 0.0
        %v2610 = vmax.f32 %v2562, 0.0
        %v2611 = vmax.f32 %v2567, 0.0
        %v2612 = vmax.f32 %v2570, 0.0
        %v2613 = vpack.c.bf16 %v2574, %v2573
        %v2614 = vpack.c.bf16 %v2576, %v2575
        %v2615 = vpack.c.bf16 %v2578, %v2577
        %v2616 = vpack.c.bf16 %v2580, %v2579
        %v2617 = vpack.c.bf16 %v2582, %v2581
        %v2618 = vpack.c.bf16 %v2584, %v2583
        %v2619 = vpack.c.bf16 %v2586, %v2585
        %v2620 = vpack.c.bf16 %v2588, %v2587
        %v2621 = vpack.c.bf16 %v2590, %v2589
        %v2622 = vpack.c.bf16 %v2592, %v2591
        %v2623 = vpack.c.bf16 %v2594, %v2593
        %v2624 = vpack.c.bf16 %v2596, %v2595
        %v2625 = vpack.c.bf16 %v2598, %v2597
        %v2626 = vpack.c.bf16 %v2600, %v2599
        %v2627 = vpack.c.bf16 %v2602, %v2601
        %v2628 = vpack.c.bf16 %v2604, %v2603
        %v2629 = vpack.c.bf16 %v2606, %v2605
        %v2630 = vpack.c.bf16 %v2608, %v2607
        %v2631 = vpack.c.bf16 %v2610, %v2609
        %v2632 = vpack.c.bf16 %v2612, %v2611
        %v2633 = vld [vmem:[#allocation13] sm:$0xf]
        %v2634 = vld [vmem:[#allocation13 + $0x4] sm:$0xf]
        %v2635 = vld [vmem:[#allocation13 + $0x8] sm:$0xf]
        %v2636 = vld [vmem:[#allocation13 + $0xc] sm:$0xf]
        %v2637 = vld [vmem:[#allocation13 + $0x10] sm:$0xf]
        %v2638 = vld [vmem:[#allocation13 + $0x14] sm:$0xf]
        %v2639 = vld [vmem:[#allocation13 + $0x18] sm:$0xf]
        %v2640 = vld [vmem:[#allocation13 + $0x1c] sm:$0xf]
        %v2641 = vld [vmem:[#allocation13 + $0x20] sm:$0xf]
        %v2642 = vld [vmem:[#allocation13 + $0x24] sm:$0xf]
        %v2643 = vld [vmem:[#allocation13 + $0x28] sm:$0xf]
        %v2644 = vld [vmem:[#allocation13 + $0x2c] sm:$0xf]
        %v2645 = vld [vmem:[#allocation13 + $0x30] sm:$0xf]
        %v2646 = vld [vmem:[#allocation13 + $0x34] sm:$0xf]
        %v2647 = vld [vmem:[#allocation13 + $0x38] sm:$0xf]
        %v2648 = vld [vmem:[#allocation13 + $0x3c] sm:$0xf]
        %v2649 = vld [vmem:[%s9] sm:$0x1]
        %v2651 = vlaneseq
        %v2652 = vshrl.u32 %v2651, 7
        %v2653 = vsub.s32 0, %v2652
        %v2654 = vrot.slane %v2649, %v2653
        %v2672 = vunpack.c.l.b16 %v2633
        %v2673 = vunpack.c.l.b16 %v2634
        %v2674 = vunpack.c.l.b16 %v2635
        %v2675 = vunpack.c.l.b16 %v2636
        %v2676 = vunpack.c.l.b16 %v2637
        %v2677 = vunpack.c.l.b16 %v2638
        %v2678 = vunpack.c.l.b16 %v2639
        %v2679 = vunpack.c.l.b16 %v2640
        %v2680 = vunpack.c.l.b16 %v2641
        %v2681 = vunpack.c.l.b16 %v2642
        %v2682 = vunpack.c.l.b16 %v2643
        %v2683 = vunpack.c.l.b16 %v2644
        %v2684 = vunpack.c.l.b16 %v2645
        %v2685 = vunpack.c.l.b16 %v2646
        %v2686 = vunpack.c.l.b16 %v2647
        %v2687 = vunpack.c.l.b16 %v2648
        %v2688 = vpack.c.b16 %v2673, %v2672
        %v2689 = vpack.c.b16 %v2675, %v2674
        %v2690 = vpack.c.b16 %v2677, %v2676
        %v2691 = vpack.c.b16 %v2679, %v2678
        %v2692 = vpack.c.b16 %v2681, %v2680
        %v2693 = vpack.c.b16 %v2683, %v2682
        %v2694 = vpack.c.b16 %v2685, %v2684
        %v2695 = vpack.c.b16 %v2687, %v2686
        %2704 = vmatprep.subr.bf16.mxu0 0
        %2705 = vmatpush1.bf16.msra.mxu0 %v2688
        %2706 = vmatprep.subr.bf16.mxu0 0
        %2707 = vmatpush1.bf16.msra.mxu0 %v2689
        %2708 = vmatprep.subr.bf16.mxu0 0
        %2709 = vmatpush1.bf16.msra.mxu0 %v2690
        %2710 = vmatprep.subr.bf16.mxu0 0
        %2711 = vmatpush1.bf16.msra.mxu0 %v2691
        %2712 = vmatprep.subr.bf16.mxu0 0
        %2713 = vmatpush1.bf16.msra.mxu0 %v2692
        %2714 = vmatprep.subr.bf16.mxu0 0
        %2715 = vmatpush1.bf16.msra.mxu0 %v2693
        %2716 = vmatprep.subr.bf16.mxu0 0
        %2717 = vmatpush1.bf16.msra.mxu0 %v2694
        %2718 = vmatprep.subr.bf16.mxu0 0
        %2719 = vmatpush1.bf16.msra.mxu0 %v2695
        %2720 = vmatprep.subr.bf16.mxu0 0
        %2721 = vmatpush1.bf16.msra.mxu0 0
        %2722 = vmatprep.subr.bf16.mxu0 0
        %2723 = vmatpush1.bf16.msra.mxu0 0
        %2724 = vmatprep.subr.bf16.mxu0 0
        %2725 = vmatpush1.bf16.msra.mxu0 0
        %2726 = vmatprep.subr.bf16.mxu0 0
        %2727 = vmatpush1.bf16.msra.mxu0 0
        %2728 = vmatprep.subr.bf16.mxu0 0
        %2729 = vmatpush1.bf16.msra.mxu0 0
        %2730 = vmatprep.subr.bf16.mxu0 0
        %2731 = vmatpush1.bf16.msra.mxu0 0
        %2732 = vmatprep.subr.bf16.mxu0 0
        %2733 = vmatpush1.bf16.msra.mxu0 0
        %2734 = vmatprep.subr.bf16.mxu0 0
        %2735 = vmatpush1.bf16.msra.mxu0 0
        %2736 = vmatprep.mubr.bf16.mxu0 0
        %2737 = vmatmul.mubr.bf16.gmra.mrb[0].mxu0 %v2613
        %v2738 = vpop.f32.mrb[0].mxu0
        %v2739 = vadd.f32 %v2654, %v2738
        %v2740 = vpop.f32.mrb[0].mxu0
        %v2741 = vpop.f32.mrb[0].mxu0
        %v2742 = vadd.f32 %v2654, %v2741
        %v2743 = vpop.f32.mrb[0].mxu0
        %2744 = vmatprep.mubr.bf16.mxu0 0
        %2745 = vmatmul.mubr.bf16.gmra.mrb[0].mxu0 %v2614
        %v2746 = vpop.f32.mrb[0].mxu0
        %v2747 = vadd.f32 %v2654, %v2746
        %v2748 = vpop.f32.mrb[0].mxu0
        %v2749 = vpop.f32.mrb[0].mxu0
        %v2750 = vadd.f32 %v2654, %v2749
        %v2751 = vpop.f32.mrb[0].mxu0
        %2752 = vmatprep.mubr.bf16.mxu0 0
        %2753 = vmatmul.mubr.bf16.gmra.mrb[0].mxu0 %v2615
        %v2754 = vpop.f32.mrb[0].mxu0
        %v2755 = vadd.f32 %v2654, %v2754
        %v2756 = vpop.f32.mrb[0].mxu0
        %v2757 = vpop.f32.mrb[0].mxu0
        %v2758 = vadd.f32 %v2654, %v2757
        %v2759 = vpop.f32.mrb[0].mxu0
        %2760 = vmatprep.mubr.bf16.mxu0 0
        %2761 = vmatmul.mubr.bf16.gmra.mrb[0].mxu0 %v2616
        %v2762 = vpop.f32.mrb[0].mxu0
        %v2763 = vadd.f32 %v2654, %v2762
        %v2764 = vpop.f32.mrb[0].mxu0
        %v2765 = vpop.f32.mrb[0].mxu0
        %v2766 = vadd.f32 %v2654, %v2765
        %v2767 = vpop.f32.mrb[0].mxu0
        %2768 = vmatprep.mubr.bf16.mxu0 0
        %2769 = vmatmul.mubr.bf16.gmra.mrb[0].mxu0 %v2617
        %v2770 = vpop.f32.mrb[0].mxu0
        %v2771 = vadd.f32 %v2654, %v2770
        %v2772 = vpop.f32.mrb[0].mxu0
        %v2773 = vpop.f32.mrb[0].mxu0
        %v2774 = vadd.f32 %v2654, %v2773
        %v2775 = vpop.f32.mrb[0].mxu0
        %2776 = vmatprep.mubr.bf16.mxu0 0
        %2777 = vmatmul.mubr.bf16.gmra.mrb[0].mxu0 %v2618
        %v2778 = vpop.f32.mrb[0].mxu0
        %v2779 = vadd.f32 %v2654, %v2778
        %v2780 = vpop.f32.mrb[0].mxu0
        %v2781 = vpop.f32.mrb[0].mxu0
        %v2782 = vadd.f32 %v2654, %v2781
        %v2783 = vpop.f32.mrb[0].mxu0
        %2784 = vmatprep.mubr.bf16.mxu0 0
        %2785 = vmatmul.mubr.bf16.gmra.mrb[0].mxu0 %v2619
        %v2786 = vpop.f32.mrb[0].mxu0
        %v2787 = vadd.f32 %v2654, %v2786
        %v2788 = vpop.f32.mrb[0].mxu0
        %v2789 = vpop.f32.mrb[0].mxu0
        %v2790 = vadd.f32 %v2654, %v2789
        %v2791 = vpop.f32.mrb[0].mxu0
        %2792 = vmatprep.mubr.bf16.mxu0 0
        %2793 = vmatmul.mubr.bf16.gmra.mrb[0].mxu0 %v2620
        %v2794 = vpop.f32.mrb[0].mxu0
        %v2795 = vadd.f32 %v2654, %v2794
        %v2796 = vpop.f32.mrb[0].mxu0
        %v2797 = vpop.f32.mrb[0].mxu0
        %v2798 = vadd.f32 %v2654, %v2797
        %v2799 = vpop.f32.mrb[0].mxu0
        %2800 = vmatprep.mubr.bf16.mxu0 0
        %2801 = vmatmul.mubr.bf16.gmra.mrb[0].mxu0 %v2621
        %v2802 = vpop.f32.mrb[0].mxu0
        %v2803 = vadd.f32 %v2654, %v2802
        %v2804 = vpop.f32.mrb[0].mxu0
        %v2805 = vpop.f32.mrb[0].mxu0
        %v2806 = vadd.f32 %v2654, %v2805
        %v2807 = vpop.f32.mrb[0].mxu0
        %2808 = vmatprep.mubr.bf16.mxu0 0
        %2809 = vmatmul.mubr.bf16.gmra.mrb[0].mxu0 %v2622
        %v2810 = vpop.f32.mrb[0].mxu0
        %v2811 = vadd.f32 %v2654, %v2810
        %v2812 = vpop.f32.mrb[0].mxu0
        %v2813 = vpop.f32.mrb[0].mxu0
        %v2814 = vadd.f32 %v2654, %v2813
        %v2815 = vpop.f32.mrb[0].mxu0
        %2816 = vmatprep.mubr.bf16.mxu0 0
        %2817 = vmatmul.mubr.bf16.gmra.mrb[0].mxu0 %v2623
        %v2818 = vpop.f32.mrb[0].mxu0
        %v2819 = vadd.f32 %v2654, %v2818
        %v2820 = vpop.f32.mrb[0].mxu0
        %v2821 = vpop.f32.mrb[0].mxu0
        %v2822 = vadd.f32 %v2654, %v2821
        %v2823 = vpop.f32.mrb[0].mxu0
        %2824 = vmatprep.mubr.bf16.mxu0 0
        %2825 = vmatmul.mubr.bf16.gmra.mrb[0].mxu0 %v2624
        %v2826 = vpop.f32.mrb[0].mxu0
        %v2827 = vadd.f32 %v2654, %v2826
        %v2828 = vpop.f32.mrb[0].mxu0
        %v2829 = vpop.f32.mrb[0].mxu0
        %v2830 = vadd.f32 %v2654, %v2829
        %v2831 = vpop.f32.mrb[0].mxu0
        %2832 = vmatprep.mubr.bf16.mxu0 0
        %2833 = vmatmul.mubr.bf16.gmra.mrb[0].mxu0 %v2625
        %v2834 = vpop.f32.mrb[0].mxu0
        %v2835 = vadd.f32 %v2654, %v2834
        %v2836 = vpop.f32.mrb[0].mxu0
        %v2837 = vpop.f32.mrb[0].mxu0
        %v2838 = vadd.f32 %v2654, %v2837
        %v2839 = vpop.f32.mrb[0].mxu0
        %2840 = vmatprep.mubr.bf16.mxu0 0
        %2841 = vmatmul.mubr.bf16.gmra.mrb[0].mxu0 %v2626
        %v2842 = vpop.f32.mrb[0].mxu0
        %v2843 = vadd.f32 %v2654, %v2842
        %v2844 = vpop.f32.mrb[0].mxu0
        %v2845 = vpop.f32.mrb[0].mxu0
        %v2846 = vadd.f32 %v2654, %v2845
        %v2847 = vpop.f32.mrb[0].mxu0
        %2848 = vmatprep.mubr.bf16.mxu0 0
        %2849 = vmatmul.mubr.bf16.gmra.mrb[0].mxu0 %v2627
        %v2850 = vpop.f32.mrb[0].mxu0
        %v2851 = vadd.f32 %v2654, %v2850
        %v2852 = vpop.f32.mrb[0].mxu0
        %v2853 = vpop.f32.mrb[0].mxu0
        %v2854 = vadd.f32 %v2654, %v2853
        %v2855 = vpop.f32.mrb[0].mxu0
        %2856 = vmatprep.mubr.bf16.mxu0 0
        %2857 = vmatmul.mubr.bf16.gmra.mrb[0].mxu0 %v2628
        %v2858 = vpop.f32.mrb[0].mxu0
        %v2859 = vadd.f32 %v2654, %v2858
        %v2860 = vpop.f32.mrb[0].mxu0
        %v2861 = vpop.f32.mrb[0].mxu0
        %v2862 = vadd.f32 %v2654, %v2861
        %v2863 = vpop.f32.mrb[0].mxu0
        %2864 = vmatprep.mubr.bf16.mxu0 0
        %2865 = vmatmul.mubr.bf16.gmra.mrb[0].mxu0 %v2629
        %v2866 = vpop.f32.mrb[0].mxu0
        %v2867 = vadd.f32 %v2654, %v2866
        %v2868 = vpop.f32.mrb[0].mxu0
        %v2869 = vpop.f32.mrb[0].mxu0
        %v2870 = vadd.f32 %v2654, %v2869
        %v2871 = vpop.f32.mrb[0].mxu0
        %2872 = vmatprep.mubr.bf16.mxu0 0
        %2873 = vmatmul.mubr.bf16.gmra.mrb[0].mxu0 %v2630
        %v2874 = vpop.f32.mrb[0].mxu0
        %v2875 = vadd.f32 %v2654, %v2874
        %v2876 = vpop.f32.mrb[0].mxu0
        %v2877 = vpop.f32.mrb[0].mxu0
        %v2878 = vadd.f32 %v2654, %v2877
        %v2879 = vpop.f32.mrb[0].mxu0
        %2880 = vmatprep.mubr.bf16.mxu0 0
        %2881 = vmatmul.mubr.bf16.gmra.mrb[0].mxu0 %v2631
        %v2882 = vpop.f32.mrb[0].mxu0
        %v2883 = vadd.f32 %v2654, %v2882
        %v2884 = vpop.f32.mrb[0].mxu0
        %v2885 = vpop.f32.mrb[0].mxu0
        %v2886 = vadd.f32 %v2654, %v2885
        %v2887 = vpop.f32.mrb[0].mxu0
        %2888 = vmatprep.mubr.bf16.mxu0 0
        %2889 = vmatmul.mubr.bf16.gmra.mrb[0].mxu0 %v2632
        %v2890 = vpop.f32.mrb[0].mxu0
        %v2891 = vadd.f32 %v2654, %v2890
        %v2892 = vpop.f32.mrb[0].mxu0
        %v2893 = vpop.f32.mrb[0].mxu0
        %v2894 = vadd.f32 %v2654, %v2893
        %v2895 = vpop.f32.mrb[0].mxu0
        %2896 = vdwg.mxu0
        %v2897 = vmax.f32 %v2739, 0.0
        %v2898 = vmax.f32 %v2742, 0.0
        %v2899 = vmax.f32 %v2747, 0.0
        %v2900 = vmax.f32 %v2750, 0.0
        %v2901 = vmax.f32 %v2755, 0.0
        %v2902 = vmax.f32 %v2758, 0.0
        %v2903 = vmax.f32 %v2763, 0.0
        %v2904 = vmax.f32 %v2766, 0.0
        %v2905 = vmax.f32 %v2771, 0.0
        %v2906 = vmax.f32 %v2774, 0.0
        %v2907 = vmax.f32 %v2779, 0.0
        %v2908 = vmax.f32 %v2782, 0.0
        %v2909 = vmax.f32 %v2787, 0.0
        %v2910 = vmax.f32 %v2790, 0.0
        %v2911 = vmax.f32 %v2795, 0.0
        %v2912 = vmax.f32 %v2798, 0.0
        %v2913 = vmax.f32 %v2803, 0.0
        %v2914 = vmax.f32 %v2806, 0.0
        %v2915 = vmax.f32 %v2811, 0.0
        %v2916 = vmax.f32 %v2814, 0.0
        %v2917 = vmax.f32 %v2819, 0.0
        %v2918 = vmax.f32 %v2822, 0.0
        %v2919 = vmax.f32 %v2827, 0.0
        %v2920 = vmax.f32 %v2830, 0.0
        %v2921 = vmax.f32 %v2835, 0.0
        %v2922 = vmax.f32 %v2838, 0.0
        %v2923 = vmax.f32 %v2843, 0.0
        %v2924 = vmax.f32 %v2846, 0.0
        %v2925 = vmax.f32 %v2851, 0.0
        %v2926 = vmax.f32 %v2854, 0.0
        %v2927 = vmax.f32 %v2859, 0.0
        %v2928 = vmax.f32 %v2862, 0.0
        %v2929 = vmax.f32 %v2867, 0.0
        %v2930 = vmax.f32 %v2870, 0.0
        %v2931 = vmax.f32 %v2875, 0.0
        %v2932 = vmax.f32 %v2878, 0.0
        %v2933 = vmax.f32 %v2883, 0.0
        %v2934 = vmax.f32 %v2886, 0.0
        %v2935 = vmax.f32 %v2891, 0.0
        %v2936 = vmax.f32 %v2894, 0.0
        %v2937 = vpack.c.bf16 %v2898, %v2897
        %v2938 = vpack.c.bf16 %v2900, %v2899
        %v2939 = vpack.c.bf16 %v2902, %v2901
        %v2940 = vpack.c.bf16 %v2904, %v2903
        %v2941 = vpack.c.bf16 %v2906, %v2905
        %v2942 = vpack.c.bf16 %v2908, %v2907
        %v2943 = vpack.c.bf16 %v2910, %v2909
        %v2944 = vpack.c.bf16 %v2912, %v2911
        %v2945 = vpack.c.bf16 %v2914, %v2913
        %v2946 = vpack.c.bf16 %v2916, %v2915
        %v2947 = vpack.c.bf16 %v2918, %v2917
        %v2948 = vpack.c.bf16 %v2920, %v2919
        %v2949 = vpack.c.bf16 %v2922, %v2921
        %v2950 = vpack.c.bf16 %v2924, %v2923
        %v2951 = vpack.c.bf16 %v2926, %v2925
        %v2952 = vpack.c.bf16 %v2928, %v2927
        %v2953 = vpack.c.bf16 %v2930, %v2929
        %v2954 = vpack.c.bf16 %v2932, %v2931
        %v2955 = vpack.c.bf16 %v2934, %v2933
        %v2956 = vpack.c.bf16 %v2936, %v2935
        %v2957 = vld [vmem:[#allocation14] sm:$0xf]
        %v2958 = vld [vmem:[#allocation14 + $0x4] sm:$0xf]
        %v2959 = vld [vmem:[#allocation14 + $0x8] sm:$0xf]
        %v2960 = vld [vmem:[#allocation14 + $0xc] sm:$0xf]
        %v2961 = vld [vmem:[#allocation14 + $0x10] sm:$0xf]
        %v2962 = vld [vmem:[#allocation14 + $0x14] sm:$0xf]
        %v2963 = vld [vmem:[#allocation14 + $0x18] sm:$0xf]
        %v2964 = vld [vmem:[#allocation14 + $0x1c] sm:$0xf]
        %v2965 = vld [vmem:[#allocation14 + $0x20] sm:$0xf]
        %v2966 = vld [vmem:[#allocation14 + $0x24] sm:$0xf]
        %v2967 = vld [vmem:[#allocation14 + $0x28] sm:$0xf]
        %v2968 = vld [vmem:[#allocation14 + $0x2c] sm:$0xf]
        %v2969 = vld [vmem:[#allocation14 + $0x30] sm:$0xf]
        %v2970 = vld [vmem:[#allocation14 + $0x34] sm:$0xf]
        %v2971 = vld [vmem:[#allocation14 + $0x38] sm:$0xf]
        %v2972 = vld [vmem:[#allocation14 + $0x3c] sm:$0xf]
        %v2973 = vld [vmem:[%s11] sm:$0x1]
        %v2975 = vlaneseq
        %v2976 = vshrl.u32 %v2975, 7
        %v2977 = vsub.s32 0, %v2976
        %v2978 = vrot.slane %v2973, %v2977
        %v2996 = vunpack.c.l.b16 %v2957
        %v2997 = vunpack.c.l.b16 %v2958
        %v2998 = vunpack.c.l.b16 %v2959
        %v2999 = vunpack.c.l.b16 %v2960
        %v3000 = vunpack.c.l.b16 %v2961
        %v3001 = vunpack.c.l.b16 %v2962
        %v3002 = vunpack.c.l.b16 %v2963
        %v3003 = vunpack.c.l.b16 %v2964
        %v3004 = vunpack.c.l.b16 %v2965
        %v3005 = vunpack.c.l.b16 %v2966
        %v3006 = vunpack.c.l.b16 %v2967
        %v3007 = vunpack.c.l.b16 %v2968
        %v3008 = vunpack.c.l.b16 %v2969
        %v3009 = vunpack.c.l.b16 %v2970
        %v3010 = vunpack.c.l.b16 %v2971
        %v3011 = vunpack.c.l.b16 %v2972
        %v3012 = vpack.c.b16 %v2997, %v2996
        %v3013 = vpack.c.b16 %v2999, %v2998
        %v3014 = vpack.c.b16 %v3001, %v3000
        %v3015 = vpack.c.b16 %v3003, %v3002
        %v3016 = vpack.c.b16 %v3005, %v3004
        %v3017 = vpack.c.b16 %v3007, %v3006
        %v3018 = vpack.c.b16 %v3009, %v3008
        %v3019 = vpack.c.b16 %v3011, %v3010
        %3028 = vmatprep.subr.bf16.mxu0 0
        %3029 = vmatpush1.bf16.msra.mxu0 %v3012
        %3030 = vmatprep.subr.bf16.mxu0 0
        %3031 = vmatpush1.bf16.msra.mxu0 %v3013
        %3032 = vmatprep.subr.bf16.mxu0 0
        %3033 = vmatpush1.bf16.msra.mxu0 %v3014
        %3034 = vmatprep.subr.bf16.mxu0 0
        %3035 = vmatpush1.bf16.msra.mxu0 %v3015
        %3036 = vmatprep.subr.bf16.mxu0 0
        %3037 = vmatpush1.bf16.msra.mxu0 %v3016
        %3038 = vmatprep.subr.bf16.mxu0 0
        %3039 = vmatpush1.bf16.msra.mxu0 %v3017
        %3040 = vmatprep.subr.bf16.mxu0 0
        %3041 = vmatpush1.bf16.msra.mxu0 %v3018
        %3042 = vmatprep.subr.bf16.mxu0 0
        %3043 = vmatpush1.bf16.msra.mxu0 %v3019
        %3044 = vmatprep.subr.bf16.mxu0 0
        %3045 = vmatpush1.bf16.msra.mxu0 0
        %3046 = vmatprep.subr.bf16.mxu0 0
        %3047 = vmatpush1.bf16.msra.mxu0 0
        %3048 = vmatprep.subr.bf16.mxu0 0
        %3049 = vmatpush1.bf16.msra.mxu0 0
        %3050 = vmatprep.subr.bf16.mxu0 0
        %3051 = vmatpush1.bf16.msra.mxu0 0
        %3052 = vmatprep.subr.bf16.mxu0 0
        %3053 = vmatpush1.bf16.msra.mxu0 0
        %3054 = vmatprep.subr.bf16.mxu0 0
        %3055 = vmatpush1.bf16.msra.mxu0 0
        %3056 = vmatprep.subr.bf16.mxu0 0
        %3057 = vmatpush1.bf16.msra.mxu0 0
        %3058 = vmatprep.subr.bf16.mxu0 0
        %3059 = vmatpush1.bf16.msra.mxu0 0
        %3060 = vmatprep.mubr.bf16.mxu0 0
        %3061 = vmatmul.mubr.bf16.gmra.mrb[0].mxu0 %v2937
        %v3062 = vpop.f32.mrb[0].mxu0
        %v3063 = vadd.f32 %v2978, %v3062
        %v3064 = vpop.f32.mrb[0].mxu0
        %v3065 = vpop.f32.mrb[0].mxu0
        %v3066 = vadd.f32 %v2978, %v3065
        %v3067 = vpop.f32.mrb[0].mxu0
        %3068 = vmatprep.mubr.bf16.mxu0 0
        %3069 = vmatmul.mubr.bf16.gmra.mrb[0].mxu0 %v2938
        %v3070 = vpop.f32.mrb[0].mxu0
        %v3071 = vadd.f32 %v2978, %v3070
        %v3072 = vpop.f32.mrb[0].mxu0
        %v3073 = vpop.f32.mrb[0].mxu0
        %v3074 = vadd.f32 %v2978, %v3073
        %v3075 = vpop.f32.mrb[0].mxu0
        %3076 = vmatprep.mubr.bf16.mxu0 0
        %3077 = vmatmul.mubr.bf16.gmra.mrb[0].mxu0 %v2939
        %v3078 = vpop.f32.mrb[0].mxu0
        %v3079 = vadd.f32 %v2978, %v3078
        %v3080 = vpop.f32.mrb[0].mxu0
        %v3081 = vpop.f32.mrb[0].mxu0
        %v3082 = vadd.f32 %v2978, %v3081
        %v3083 = vpop.f32.mrb[0].mxu0
        %3084 = vmatprep.mubr.bf16.mxu0 0
        %3085 = vmatmul.mubr.bf16.gmra.mrb[0].mxu0 %v2940
        %v3086 = vpop.f32.mrb[0].mxu0
        %v3087 = vadd.f32 %v2978, %v3086
        %v3088 = vpop.f32.mrb[0].mxu0
        %v3089 = vpop.f32.mrb[0].mxu0
        %v3090 = vadd.f32 %v2978, %v3089
        %v3091 = vpop.f32.mrb[0].mxu0
        %3092 = vmatprep.mubr.bf16.mxu0 0
        %3093 = vmatmul.mubr.bf16.gmra.mrb[0].mxu0 %v2941
        %v3094 = vpop.f32.mrb[0].mxu0
        %v3095 = vadd.f32 %v2978, %v3094
        %v3096 = vpop.f32.mrb[0].mxu0
        %v3097 = vpop.f32.mrb[0].mxu0
        %v3098 = vadd.f32 %v2978, %v3097
        %v3099 = vpop.f32.mrb[0].mxu0
        %3100 = vmatprep.mubr.bf16.mxu0 0
        %3101 = vmatmul.mubr.bf16.gmra.mrb[0].mxu0 %v2942
        %v3102 = vpop.f32.mrb[0].mxu0
        %v3103 = vadd.f32 %v2978, %v3102
        %v3104 = vpop.f32.mrb[0].mxu0
        %v3105 = vpop.f32.mrb[0].mxu0
        %v3106 = vadd.f32 %v2978, %v3105
        %v3107 = vpop.f32.mrb[0].mxu0
        %3108 = vmatprep.mubr.bf16.mxu0 0
        %3109 = vmatmul.mubr.bf16.gmra.mrb[0].mxu0 %v2943
        %v3110 = vpop.f32.mrb[0].mxu0
        %v3111 = vadd.f32 %v2978, %v3110
        %v3112 = vpop.f32.mrb[0].mxu0
        %v3113 = vpop.f32.mrb[0].mxu0
        %v3114 = vadd.f32 %v2978, %v3113
        %v3115 = vpop.f32.mrb[0].mxu0
        %3116 = vmatprep.mubr.bf16.mxu0 0
        %3117 = vmatmul.mubr.bf16.gmra.mrb[0].mxu0 %v2944
        %v3118 = vpop.f32.mrb[0].mxu0
        %v3119 = vadd.f32 %v2978, %v3118
        %v3120 = vpop.f32.mrb[0].mxu0
        %v3121 = vpop.f32.mrb[0].mxu0
        %v3122 = vadd.f32 %v2978, %v3121
        %v3123 = vpop.f32.mrb[0].mxu0
        %3124 = vmatprep.mubr.bf16.mxu0 0
        %3125 = vmatmul.mubr.bf16.gmra.mrb[0].mxu0 %v2945
        %v3126 = vpop.f32.mrb[0].mxu0
        %v3127 = vadd.f32 %v2978, %v3126
        %v3128 = vpop.f32.mrb[0].mxu0
        %v3129 = vpop.f32.mrb[0].mxu0
        %v3130 = vadd.f32 %v2978, %v3129
        %v3131 = vpop.f32.mrb[0].mxu0
        %3132 = vmatprep.mubr.bf16.mxu0 0
        %3133 = vmatmul.mubr.bf16.gmra.mrb[0].mxu0 %v2946
        %v3134 = vpop.f32.mrb[0].mxu0
        %v3135 = vadd.f32 %v2978, %v3134
        %v3136 = vpop.f32.mrb[0].mxu0
        %v3137 = vpop.f32.mrb[0].mxu0
        %v3138 = vadd.f32 %v2978, %v3137
        %v3139 = vpop.f32.mrb[0].mxu0
        %3140 = vmatprep.mubr.bf16.mxu0 0
        %3141 = vmatmul.mubr.bf16.gmra.mrb[0].mxu0 %v2947
        %v3142 = vpop.f32.mrb[0].mxu0
        %v3143 = vadd.f32 %v2978, %v3142
        %v3144 = vpop.f32.mrb[0].mxu0
        %v3145 = vpop.f32.mrb[0].mxu0
        %v3146 = vadd.f32 %v2978, %v3145
        %v3147 = vpop.f32.mrb[0].mxu0
        %3148 = vmatprep.mubr.bf16.mxu0 0
        %3149 = vmatmul.mubr.bf16.gmra.mrb[0].mxu0 %v2948
        %v3150 = vpop.f32.mrb[0].mxu0
        %v3151 = vadd.f32 %v2978, %v3150
        %v3152 = vpop.f32.mrb[0].mxu0
        %v3153 = vpop.f32.mrb[0].mxu0
        %v3154 = vadd.f32 %v2978, %v3153
        %v3155 = vpop.f32.mrb[0].mxu0
        %3156 = vmatprep.mubr.bf16.mxu0 0
        %3157 = vmatmul.mubr.bf16.gmra.mrb[0].mxu0 %v2949
        %v3158 = vpop.f32.mrb[0].mxu0
        %v3159 = vadd.f32 %v2978, %v3158
        %v3160 = vpop.f32.mrb[0].mxu0
        %v3161 = vpop.f32.mrb[0].mxu0
        %v3162 = vadd.f32 %v2978, %v3161
        %v3163 = vpop.f32.mrb[0].mxu0
        %3164 = vmatprep.mubr.bf16.mxu0 0
        %3165 = vmatmul.mubr.bf16.gmra.mrb[0].mxu0 %v2950
        %v3166 = vpop.f32.mrb[0].mxu0
        %v3167 = vadd.f32 %v2978, %v3166
        %v3168 = vpop.f32.mrb[0].mxu0
        %v3169 = vpop.f32.mrb[0].mxu0
        %v3170 = vadd.f32 %v2978, %v3169
        %v3171 = vpop.f32.mrb[0].mxu0
        %3172 = vmatprep.mubr.bf16.mxu0 0
        %3173 = vmatmul.mubr.bf16.gmra.mrb[0].mxu0 %v2951
        %v3174 = vpop.f32.mrb[0].mxu0
        %v3175 = vadd.f32 %v2978, %v3174
        %v3176 = vpop.f32.mrb[0].mxu0
        %v3177 = vpop.f32.mrb[0].mxu0
        %v3178 = vadd.f32 %v2978, %v3177
        %v3179 = vpop.f32.mrb[0].mxu0
        %3180 = vmatprep.mubr.bf16.mxu0 0
        %3181 = vmatmul.mubr.bf16.gmra.mrb[0].mxu0 %v2952
        %v3182 = vpop.f32.mrb[0].mxu0
        %v3183 = vadd.f32 %v2978, %v3182
        %v3184 = vpop.f32.mrb[0].mxu0
        %v3185 = vpop.f32.mrb[0].mxu0
        %v3186 = vadd.f32 %v2978, %v3185
        %v3187 = vpop.f32.mrb[0].mxu0
        %3188 = vmatprep.mubr.bf16.mxu0 0
        %3189 = vmatmul.mubr.bf16.gmra.mrb[0].mxu0 %v2953
        %v3190 = vpop.f32.mrb[0].mxu0
        %v3191 = vadd.f32 %v2978, %v3190
        %v3192 = vpop.f32.mrb[0].mxu0
        %v3193 = vpop.f32.mrb[0].mxu0
        %v3194 = vadd.f32 %v2978, %v3193
        %v3195 = vpop.f32.mrb[0].mxu0
        %3196 = vmatprep.mubr.bf16.mxu0 0
        %3197 = vmatmul.mubr.bf16.gmra.mrb[0].mxu0 %v2954
        %v3198 = vpop.f32.mrb[0].mxu0
        %v3199 = vadd.f32 %v2978, %v3198
        %v3200 = vpop.f32.mrb[0].mxu0
        %v3201 = vpop.f32.mrb[0].mxu0
        %v3202 = vadd.f32 %v2978, %v3201
        %v3203 = vpop.f32.mrb[0].mxu0
        %3204 = vmatprep.mubr.bf16.mxu0 0
        %3205 = vmatmul.mubr.bf16.gmra.mrb[0].mxu0 %v2955
        %v3206 = vpop.f32.mrb[0].mxu0
        %v3207 = vadd.f32 %v2978, %v3206
        %v3208 = vpop.f32.mrb[0].mxu0
        %v3209 = vpop.f32.mrb[0].mxu0
        %v3210 = vadd.f32 %v2978, %v3209
        %v3211 = vpop.f32.mrb[0].mxu0
        %3212 = vmatprep.mubr.bf16.mxu0 0
        %3213 = vmatmul.mubr.bf16.gmra.mrb[0].mxu0 %v2956
        %v3214 = vpop.f32.mrb[0].mxu0
        %v3215 = vadd.f32 %v2978, %v3214
        %v3216 = vpop.f32.mrb[0].mxu0
        %v3217 = vpop.f32.mrb[0].mxu0
        %v3218 = vadd.f32 %v2978, %v3217
        %v3219 = vpop.f32.mrb[0].mxu0
        %3220 = vdwg.mxu0
        %v3221 = vmax.f32 %v3063, 0.0
        %v3222 = vmax.f32 %v3066, 0.0
        %v3223 = vmax.f32 %v3071, 0.0
        %v3224 = vmax.f32 %v3074, 0.0
        %v3225 = vmax.f32 %v3079, 0.0
        %v3226 = vmax.f32 %v3082, 0.0
        %v3227 = vmax.f32 %v3087, 0.0
        %v3228 = vmax.f32 %v3090, 0.0
        %v3229 = vmax.f32 %v3095, 0.0
        %v3230 = vmax.f32 %v3098, 0.0
        %v3231 = vmax.f32 %v3103, 0.0
        %v3232 = vmax.f32 %v3106, 0.0
        %v3233 = vmax.f32 %v3111, 0.0
        %v3234 = vmax.f32 %v3114, 0.0
        %v3235 = vmax.f32 %v3119, 0.0
        %v3236 = vmax.f32 %v3122, 0.0
        %v3237 = vmax.f32 %v3127, 0.0
        %v3238 = vmax.f32 %v3130, 0.0
        %v3239 = vmax.f32 %v3135, 0.0
        %v3240 = vmax.f32 %v3138, 0.0
        %v3241 = vmax.f32 %v3143, 0.0
        %v3242 = vmax.f32 %v3146, 0.0
        %v3243 = vmax.f32 %v3151, 0.0
        %v3244 = vmax.f32 %v3154, 0.0
        %v3245 = vmax.f32 %v3159, 0.0
        %v3246 = vmax.f32 %v3162, 0.0
        %v3247 = vmax.f32 %v3167, 0.0
        %v3248 = vmax.f32 %v3170, 0.0
        %v3249 = vmax.f32 %v3175, 0.0
        %v3250 = vmax.f32 %v3178, 0.0
        %v3251 = vmax.f32 %v3183, 0.0
        %v3252 = vmax.f32 %v3186, 0.0
        %v3253 = vmax.f32 %v3191, 0.0
        %v3254 = vmax.f32 %v3194, 0.0
        %v3255 = vmax.f32 %v3199, 0.0
        %v3256 = vmax.f32 %v3202, 0.0
        %v3257 = vmax.f32 %v3207, 0.0
        %v3258 = vmax.f32 %v3210, 0.0
        %v3259 = vmax.f32 %v3215, 0.0
        %v3260 = vmax.f32 %v3218, 0.0
        %v3261 = vpack.c.bf16 %v3222, %v3221
        %v3262 = vpack.c.bf16 %v3224, %v3223
        %v3263 = vpack.c.bf16 %v3226, %v3225
        %v3264 = vpack.c.bf16 %v3228, %v3227
        %v3265 = vpack.c.bf16 %v3230, %v3229
        %v3266 = vpack.c.bf16 %v3232, %v3231
        %v3267 = vpack.c.bf16 %v3234, %v3233
        %v3268 = vpack.c.bf16 %v3236, %v3235
        %v3269 = vpack.c.bf16 %v3238, %v3237
        %v3270 = vpack.c.bf16 %v3240, %v3239
        %v3271 = vpack.c.bf16 %v3242, %v3241
        %v3272 = vpack.c.bf16 %v3244, %v3243
        %v3273 = vpack.c.bf16 %v3246, %v3245
        %v3274 = vpack.c.bf16 %v3248, %v3247
        %v3275 = vpack.c.bf16 %v3250, %v3249
        %v3276 = vpack.c.bf16 %v3252, %v3251
        %v3277 = vpack.c.bf16 %v3254, %v3253
        %v3278 = vpack.c.bf16 %v3256, %v3255
        %v3279 = vpack.c.bf16 %v3258, %v3257
        %v3280 = vpack.c.bf16 %v3260, %v3259
        %v3281 = vld [vmem:[#allocation16] sm:$0xf]
        %v3282 = vld [vmem:[#allocation16 + $0x4] sm:$0xf]
        %v3283 = vld [vmem:[#allocation16 + $0x8] sm:$0xf]
        %v3284 = vld [vmem:[#allocation16 + $0xc] sm:$0xf]
        %v3285 = vld [vmem:[#allocation16 + $0x10] sm:$0xf]
        %v3286 = vld [vmem:[#allocation16 + $0x14] sm:$0xf]
        %v3287 = vld [vmem:[#allocation16 + $0x18] sm:$0xf]
        %v3288 = vld [vmem:[#allocation16 + $0x1c] sm:$0xf]
        %v3289 = vld [vmem:[#allocation16 + $0x20] sm:$0xf]
        %v3290 = vld [vmem:[#allocation16 + $0x24] sm:$0xf]
        %v3291 = vld [vmem:[#allocation16 + $0x28] sm:$0xf]
        %v3292 = vld [vmem:[#allocation16 + $0x2c] sm:$0xf]
        %v3293 = vld [vmem:[#allocation16 + $0x30] sm:$0xf]
        %v3294 = vld [vmem:[#allocation16 + $0x34] sm:$0xf]
        %v3295 = vld [vmem:[#allocation16 + $0x38] sm:$0xf]
        %v3296 = vld [vmem:[#allocation16 + $0x3c] sm:$0xf]
        %v3297 = vld [vmem:[#allocation17] sm:$0x1]
        %v3299 = vlaneseq
        %v3300 = vshrl.u32 %v3299, 7
        %v3301 = vsub.s32 0, %v3300
        %v3302 = vrot.slane %v3297, %v3301
        %v3320 = vunpack.c.l.b16 %v3281
        %v3321 = vunpack.c.l.b16 %v3282
        %v3322 = vunpack.c.l.b16 %v3283
        %v3323 = vunpack.c.l.b16 %v3284
        %v3324 = vunpack.c.l.b16 %v3285
        %v3325 = vunpack.c.l.b16 %v3286
        %v3326 = vunpack.c.l.b16 %v3287
        %v3327 = vunpack.c.l.b16 %v3288
        %v3328 = vunpack.c.l.b16 %v3289
        %v3329 = vunpack.c.l.b16 %v3290
        %v3330 = vunpack.c.l.b16 %v3291
        %v3331 = vunpack.c.l.b16 %v3292
        %v3332 = vunpack.c.l.b16 %v3293
        %v3333 = vunpack.c.l.b16 %v3294
        %v3334 = vunpack.c.l.b16 %v3295
        %v3335 = vunpack.c.l.b16 %v3296
        %v3336 = vpack.c.b16 %v3321, %v3320
        %v3337 = vpack.c.b16 %v3323, %v3322
        %v3338 = vpack.c.b16 %v3325, %v3324
        %v3339 = vpack.c.b16 %v3327, %v3326
        %v3340 = vpack.c.b16 %v3329, %v3328
        %v3341 = vpack.c.b16 %v3331, %v3330
        %v3342 = vpack.c.b16 %v3333, %v3332
        %v3343 = vpack.c.b16 %v3335, %v3334
        %3352 = vmatprep.subr.bf16.mxu0 0
        %3353 = vmatpush1.bf16.msra.mxu0 %v3336
        %3354 = vmatprep.subr.bf16.mxu0 0
        %3355 = vmatpush1.bf16.msra.mxu0 %v3337
        %3356 = vmatprep.subr.bf16.mxu0 0
        %3357 = vmatpush1.bf16.msra.mxu0 %v3338
        %3358 = vmatprep.subr.bf16.mxu0 0
        %3359 = vmatpush1.bf16.msra.mxu0 %v3339
        %3360 = vmatprep.subr.bf16.mxu0 0
        %3361 = vmatpush1.bf16.msra.mxu0 %v3340
        %3362 = vmatprep.subr.bf16.mxu0 0
        %3363 = vmatpush1.bf16.msra.mxu0 %v3341
        %3364 = vmatprep.subr.bf16.mxu0 0
        %3365 = vmatpush1.bf16.msra.mxu0 %v3342
        %3366 = vmatprep.subr.bf16.mxu0 0
        %3367 = vmatpush1.bf16.msra.mxu0 %v3343
        %3368 = vmatprep.subr.bf16.mxu0 0
        %3369 = vmatpush1.bf16.msra.mxu0 0
        %3370 = vmatprep.subr.bf16.mxu0 0
        %3371 = vmatpush1.bf16.msra.mxu0 0
        %3372 = vmatprep.subr.bf16.mxu0 0
        %3373 = vmatpush1.bf16.msra.mxu0 0
        %3374 = vmatprep.subr.bf16.mxu0 0
        %3375 = vmatpush1.bf16.msra.mxu0 0
        %3376 = vmatprep.subr.bf16.mxu0 0
        %3377 = vmatpush1.bf16.msra.mxu0 0
        %3378 = vmatprep.subr.bf16.mxu0 0
        %3379 = vmatpush1.bf16.msra.mxu0 0
        %3380 = vmatprep.subr.bf16.mxu0 0
        %3381 = vmatpush1.bf16.msra.mxu0 0
        %3382 = vmatprep.subr.bf16.mxu0 0
        %3383 = vmatpush1.bf16.msra.mxu0 0
        %3384 = vmatprep.mubr.bf16.mxu0 0
        %3385 = vmatmul.mubr.bf16.gmra.mrb[0].mxu0 %v3261
        %v3386 = vpop.f32.mrb[0].mxu0
        %v3387 = vadd.f32 %v3302, %v3386
        %v3388 = vpop.f32.mrb[0].mxu0
        %v3389 = vpop.f32.mrb[0].mxu0
        %v3390 = vadd.f32 %v3302, %v3389
        %v3391 = vpop.f32.mrb[0].mxu0
        %3392 = vmatprep.mubr.bf16.mxu0 0
        %3393 = vmatmul.mubr.bf16.gmra.mrb[0].mxu0 %v3262
        %v3394 = vpop.f32.mrb[0].mxu0
        %v3395 = vadd.f32 %v3302, %v3394
        %v3396 = vpop.f32.mrb[0].mxu0
        %v3397 = vpop.f32.mrb[0].mxu0
        %v3398 = vadd.f32 %v3302, %v3397
        %v3399 = vpop.f32.mrb[0].mxu0
        %3400 = vmatprep.mubr.bf16.mxu0 0
        %3401 = vmatmul.mubr.bf16.gmra.mrb[0].mxu0 %v3263
        %v3402 = vpop.f32.mrb[0].mxu0
        %v3403 = vadd.f32 %v3302, %v3402
        %v3404 = vpop.f32.mrb[0].mxu0
        %v3405 = vpop.f32.mrb[0].mxu0
        %v3406 = vadd.f32 %v3302, %v3405
        %v3407 = vpop.f32.mrb[0].mxu0
        %3408 = vmatprep.mubr.bf16.mxu0 0
        %3409 = vmatmul.mubr.bf16.gmra.mrb[0].mxu0 %v3264
        %v3410 = vpop.f32.mrb[0].mxu0
        %v3411 = vadd.f32 %v3302, %v3410
        %v3412 = vpop.f32.mrb[0].mxu0
        %v3413 = vpop.f32.mrb[0].mxu0
        %v3414 = vadd.f32 %v3302, %v3413
        %v3415 = vpop.f32.mrb[0].mxu0
        %3416 = vmatprep.mubr.bf16.mxu0 0
        %3417 = vmatmul.mubr.bf16.gmra.mrb[0].mxu0 %v3265
        %v3418 = vpop.f32.mrb[0].mxu0
        %v3419 = vadd.f32 %v3302, %v3418
        %v3420 = vpop.f32.mrb[0].mxu0
        %v3421 = vpop.f32.mrb[0].mxu0
        %v3422 = vadd.f32 %v3302, %v3421
        %v3423 = vpop.f32.mrb[0].mxu0
        %3424 = vmatprep.mubr.bf16.mxu0 0
        %3425 = vmatmul.mubr.bf16.gmra.mrb[0].mxu0 %v3266
        %v3426 = vpop.f32.mrb[0].mxu0
        %v3427 = vadd.f32 %v3302, %v3426
        %v3428 = vpop.f32.mrb[0].mxu0
        %v3429 = vpop.f32.mrb[0].mxu0
        %v3430 = vadd.f32 %v3302, %v3429
        %v3431 = vpop.f32.mrb[0].mxu0
        %3432 = vmatprep.mubr.bf16.mxu0 0
        %3433 = vmatmul.mubr.bf16.gmra.mrb[0].mxu0 %v3267
        %v3434 = vpop.f32.mrb[0].mxu0
        %v3435 = vadd.f32 %v3302, %v3434
        %v3436 = vpop.f32.mrb[0].mxu0
        %v3437 = vpop.f32.mrb[0].mxu0
        %v3438 = vadd.f32 %v3302, %v3437
        %v3439 = vpop.f32.mrb[0].mxu0
        %3440 = vmatprep.mubr.bf16.mxu0 0
        %3441 = vmatmul.mubr.bf16.gmra.mrb[0].mxu0 %v3268
        %v3442 = vpop.f32.mrb[0].mxu0
        %v3443 = vadd.f32 %v3302, %v3442
        %v3444 = vpop.f32.mrb[0].mxu0
        %v3445 = vpop.f32.mrb[0].mxu0
        %v3446 = vadd.f32 %v3302, %v3445
        %v3447 = vpop.f32.mrb[0].mxu0
        %3448 = vmatprep.mubr.bf16.mxu0 0
        %3449 = vmatmul.mubr.bf16.gmra.mrb[0].mxu0 %v3269
        %v3450 = vpop.f32.mrb[0].mxu0
        %v3451 = vadd.f32 %v3302, %v3450
        %v3452 = vpop.f32.mrb[0].mxu0
        %v3453 = vpop.f32.mrb[0].mxu0
        %v3454 = vadd.f32 %v3302, %v3453
        %v3455 = vpop.f32.mrb[0].mxu0
        %3456 = vmatprep.mubr.bf16.mxu0 0
        %3457 = vmatmul.mubr.bf16.gmra.mrb[0].mxu0 %v3270
        %v3458 = vpop.f32.mrb[0].mxu0
        %v3459 = vadd.f32 %v3302, %v3458
        %v3460 = vpop.f32.mrb[0].mxu0
        %v3461 = vpop.f32.mrb[0].mxu0
        %v3462 = vadd.f32 %v3302, %v3461
        %v3463 = vpop.f32.mrb[0].mxu0
        %3464 = vmatprep.mubr.bf16.mxu0 0
        %3465 = vmatmul.mubr.bf16.gmra.mrb[0].mxu0 %v3271
        %v3466 = vpop.f32.mrb[0].mxu0
        %v3467 = vadd.f32 %v3302, %v3466
        %v3468 = vpop.f32.mrb[0].mxu0
        %v3469 = vpop.f32.mrb[0].mxu0
        %v3470 = vadd.f32 %v3302, %v3469
        %v3471 = vpop.f32.mrb[0].mxu0
        %3472 = vmatprep.mubr.bf16.mxu0 0
        %3473 = vmatmul.mubr.bf16.gmra.mrb[0].mxu0 %v3272
        %v3474 = vpop.f32.mrb[0].mxu0
        %v3475 = vadd.f32 %v3302, %v3474
        %v3476 = vpop.f32.mrb[0].mxu0
        %v3477 = vpop.f32.mrb[0].mxu0
        %v3478 = vadd.f32 %v3302, %v3477
        %v3479 = vpop.f32.mrb[0].mxu0
        %3480 = vmatprep.mubr.bf16.mxu0 0
        %3481 = vmatmul.mubr.bf16.gmra.mrb[0].mxu0 %v3273
        %v3482 = vpop.f32.mrb[0].mxu0
        %v3483 = vadd.f32 %v3302, %v3482
        %v3484 = vpop.f32.mrb[0].mxu0
        %v3485 = vpop.f32.mrb[0].mxu0
        %v3486 = vadd.f32 %v3302, %v3485
        %v3487 = vpop.f32.mrb[0].mxu0
        %3488 = vmatprep.mubr.bf16.mxu0 0
        %3489 = vmatmul.mubr.bf16.gmra.mrb[0].mxu0 %v3274
        %v3490 = vpop.f32.mrb[0].mxu0
        %v3491 = vadd.f32 %v3302, %v3490
        %v3492 = vpop.f32.mrb[0].mxu0
        %v3493 = vpop.f32.mrb[0].mxu0
        %v3494 = vadd.f32 %v3302, %v3493
        %v3495 = vpop.f32.mrb[0].mxu0
        %3496 = vmatprep.mubr.bf16.mxu0 0
        %3497 = vmatmul.mubr.bf16.gmra.mrb[0].mxu0 %v3275
        %v3498 = vpop.f32.mrb[0].mxu0
        %v3499 = vadd.f32 %v3302, %v3498
        %v3500 = vpop.f32.mrb[0].mxu0
        %v3501 = vpop.f32.mrb[0].mxu0
        %v3502 = vadd.f32 %v3302, %v3501
        %v3503 = vpop.f32.mrb[0].mxu0
        %3504 = vmatprep.mubr.bf16.mxu0 0
        %3505 = vmatmul.mubr.bf16.gmra.mrb[0].mxu0 %v3276
        %v3506 = vpop.f32.mrb[0].mxu0
        %v3507 = vadd.f32 %v3302, %v3506
        %v3508 = vpop.f32.mrb[0].mxu0
        %v3509 = vpop.f32.mrb[0].mxu0
        %v3510 = vadd.f32 %v3302, %v3509
        %v3511 = vpop.f32.mrb[0].mxu0
        %3512 = vmatprep.mubr.bf16.mxu0 0
        %3513 = vmatmul.mubr.bf16.gmra.mrb[0].mxu0 %v3277
        %v3514 = vpop.f32.mrb[0].mxu0
        %v3515 = vadd.f32 %v3302, %v3514
        %v3516 = vpop.f32.mrb[0].mxu0
        %v3517 = vpop.f32.mrb[0].mxu0
        %v3518 = vadd.f32 %v3302, %v3517
        %v3519 = vpop.f32.mrb[0].mxu0
        %3520 = vmatprep.mubr.bf16.mxu0 0
        %3521 = vmatmul.mubr.bf16.gmra.mrb[0].mxu0 %v3278
        %v3522 = vpop.f32.mrb[0].mxu0
        %v3523 = vadd.f32 %v3302, %v3522
        %v3524 = vpop.f32.mrb[0].mxu0
        %v3525 = vpop.f32.mrb[0].mxu0
        %v3526 = vadd.f32 %v3302, %v3525
        %v3527 = vpop.f32.mrb[0].mxu0
        %3528 = vmatprep.mubr.bf16.mxu0 0
        %3529 = vmatmul.mubr.bf16.gmra.mrb[0].mxu0 %v3279
        %v3530 = vpop.f32.mrb[0].mxu0
        %v3531 = vadd.f32 %v3302, %v3530
        %v3532 = vpop.f32.mrb[0].mxu0
        %v3533 = vpop.f32.mrb[0].mxu0
        %v3534 = vadd.f32 %v3302, %v3533
        %v3535 = vpop.f32.mrb[0].mxu0
        %3536 = vmatprep.mubr.bf16.mxu0 0
        %3537 = vmatmul.mubr.bf16.gmra.mrb[0].mxu0 %v3280
        %v3538 = vpop.f32.mrb[0].mxu0
        %v3539 = vadd.f32 %v3302, %v3538
        %v3540 = vpop.f32.mrb[0].mxu0
        %v3541 = vpop.f32.mrb[0].mxu0
        %v3542 = vadd.f32 %v3302, %v3541
        %v3543 = vpop.f32.mrb[0].mxu0
        %3544 = vdwg.mxu0
        %v3545 = vmax.f32 %v3387, 0.0
        %v3546 = vmax.f32 %v3390, 0.0
        %v3547 = vmax.f32 %v3395, 0.0
        %v3548 = vmax.f32 %v3398, 0.0
        %v3549 = vmax.f32 %v3403, 0.0
        %v3550 = vmax.f32 %v3406, 0.0
        %v3551 = vmax.f32 %v3411, 0.0
        %v3552 = vmax.f32 %v3414, 0.0
        %v3553 = vmax.f32 %v3419, 0.0
        %v3554 = vmax.f32 %v3422, 0.0
        %v3555 = vmax.f32 %v3427, 0.0
        %v3556 = vmax.f32 %v3430, 0.0
        %v3557 = vmax.f32 %v3435, 0.0
        %v3558 = vmax.f32 %v3438, 0.0
        %v3559 = vmax.f32 %v3443, 0.0
        %v3560 = vmax.f32 %v3446, 0.0
        %v3561 = vmax.f32 %v3451, 0.0
        %v3562 = vmax.f32 %v3454, 0.0
        %v3563 = vmax.f32 %v3459, 0.0
        %v3564 = vmax.f32 %v3462, 0.0
        %v3565 = vmax.f32 %v3467, 0.0
        %v3566 = vmax.f32 %v3470, 0.0
        %v3567 = vmax.f32 %v3475, 0.0
        %v3568 = vmax.f32 %v3478, 0.0
        %v3569 = vmax.f32 %v3483, 0.0
        %v3570 = vmax.f32 %v3486, 0.0
        %v3571 = vmax.f32 %v3491, 0.0
        %v3572 = vmax.f32 %v3494, 0.0
        %v3573 = vmax.f32 %v3499, 0.0
        %v3574 = vmax.f32 %v3502, 0.0
        %v3575 = vmax.f32 %v3507, 0.0
        %v3576 = vmax.f32 %v3510, 0.0
        %v3577 = vmax.f32 %v3515, 0.0
        %v3578 = vmax.f32 %v3518, 0.0
        %v3579 = vmax.f32 %v3523, 0.0
        %v3580 = vmax.f32 %v3526, 0.0
        %v3581 = vmax.f32 %v3531, 0.0
        %v3582 = vmax.f32 %v3534, 0.0
        %v3583 = vmax.f32 %v3539, 0.0
        %v3584 = vmax.f32 %v3542, 0.0
        %v3585 = vpack.c.bf16 %v3546, %v3545
        %v3586 = vpack.c.bf16 %v3548, %v3547
        %v3587 = vpack.c.bf16 %v3550, %v3549
        %v3588 = vpack.c.bf16 %v3552, %v3551
        %v3589 = vpack.c.bf16 %v3554, %v3553
        %v3590 = vpack.c.bf16 %v3556, %v3555
        %v3591 = vpack.c.bf16 %v3558, %v3557
        %v3592 = vpack.c.bf16 %v3560, %v3559
        %v3593 = vpack.c.bf16 %v3562, %v3561
        %v3594 = vpack.c.bf16 %v3564, %v3563
        %v3595 = vpack.c.bf16 %v3566, %v3565
        %v3596 = vpack.c.bf16 %v3568, %v3567
        %v3597 = vpack.c.bf16 %v3570, %v3569
        %v3598 = vpack.c.bf16 %v3572, %v3571
        %v3599 = vpack.c.bf16 %v3574, %v3573
        %v3600 = vpack.c.bf16 %v3576, %v3575
        %v3601 = vpack.c.bf16 %v3578, %v3577
        %v3602 = vpack.c.bf16 %v3580, %v3579
        %v3603 = vpack.c.bf16 %v3582, %v3581
        %v3604 = vpack.c.bf16 %v3584, %v3583
        %v3605 = vld [vmem:[#allocation19] sm:$0xf]
        %v3606 = vld [vmem:[#allocation19 + $0x4] sm:$0xf]
        %v3607 = vld [vmem:[#allocation19 + $0x8] sm:$0xf]
        %v3608 = vld [vmem:[#allocation19 + $0xc] sm:$0xf]
        %v3609 = vld [vmem:[#allocation19 + $0x10] sm:$0xf]
        %v3610 = vld [vmem:[#allocation19 + $0x14] sm:$0xf]
        %v3611 = vld [vmem:[#allocation19 + $0x18] sm:$0xf]
        %v3612 = vld [vmem:[#allocation19 + $0x1c] sm:$0xf]
        %v3613 = vld [vmem:[#allocation19 + $0x20] sm:$0xf]
        %v3614 = vld [vmem:[#allocation19 + $0x24] sm:$0xf]
        %v3615 = vld [vmem:[#allocation19 + $0x28] sm:$0xf]
        %v3616 = vld [vmem:[#allocation19 + $0x2c] sm:$0xf]
        %v3617 = vld [vmem:[#allocation19 + $0x30] sm:$0xf]
        %v3618 = vld [vmem:[#allocation19 + $0x34] sm:$0xf]
        %v3619 = vld [vmem:[#allocation19 + $0x38] sm:$0xf]
        %v3620 = vld [vmem:[#allocation19 + $0x3c] sm:$0xf]
        %v3621 = vld [vmem:[#allocation20] sm:$0x1]
        %v3623 = vlaneseq
        %v3624 = vshrl.u32 %v3623, 7
        %v3625 = vsub.s32 0, %v3624
        %v3626 = vrot.slane %v3621, %v3625
        %v3644 = vunpack.c.l.b16 %v3605
        %v3645 = vunpack.c.l.b16 %v3606
        %v3646 = vunpack.c.l.b16 %v3607
        %v3647 = vunpack.c.l.b16 %v3608
        %v3648 = vunpack.c.l.b16 %v3609
        %v3649 = vunpack.c.l.b16 %v3610
        %v3650 = vunpack.c.l.b16 %v3611
        %v3651 = vunpack.c.l.b16 %v3612
        %v3652 = vunpack.c.l.b16 %v3613
        %v3653 = vunpack.c.l.b16 %v3614
        %v3654 = vunpack.c.l.b16 %v3615
        %v3655 = vunpack.c.l.b16 %v3616
        %v3656 = vunpack.c.l.b16 %v3617
        %v3657 = vunpack.c.l.b16 %v3618
        %v3658 = vunpack.c.l.b16 %v3619
        %v3659 = vunpack.c.l.b16 %v3620
        %v3660 = vpack.c.b16 %v3645, %v3644
        %v3661 = vpack.c.b16 %v3647, %v3646
        %v3662 = vpack.c.b16 %v3649, %v3648
        %v3663 = vpack.c.b16 %v3651, %v3650
        %v3664 = vpack.c.b16 %v3653, %v3652
        %v3665 = vpack.c.b16 %v3655, %v3654
        %v3666 = vpack.c.b16 %v3657, %v3656
        %v3667 = vpack.c.b16 %v3659, %v3658
        %3676 = vmatprep.subr.bf16.mxu0 0
        %3677 = vmatpush1.bf16.msra.mxu0 %v3660
        %3678 = vmatprep.subr.bf16.mxu0 0
        %3679 = vmatpush1.bf16.msra.mxu0 %v3661
        %3680 = vmatprep.subr.bf16.mxu0 0
        %3681 = vmatpush1.bf16.msra.mxu0 %v3662
        %3682 = vmatprep.subr.bf16.mxu0 0
        %3683 = vmatpush1.bf16.msra.mxu0 %v3663
        %3684 = vmatprep.subr.bf16.mxu0 0
        %3685 = vmatpush1.bf16.msra.mxu0 %v3664
        %3686 = vmatprep.subr.bf16.mxu0 0
        %3687 = vmatpush1.bf16.msra.mxu0 %v3665
        %3688 = vmatprep.subr.bf16.mxu0 0
        %3689 = vmatpush1.bf16.msra.mxu0 %v3666
        %3690 = vmatprep.subr.bf16.mxu0 0
        %3691 = vmatpush1.bf16.msra.mxu0 %v3667
        %3692 = vmatprep.subr.bf16.mxu0 0
        %3693 = vmatpush1.bf16.msra.mxu0 0
        %3694 = vmatprep.subr.bf16.mxu0 0
        %3695 = vmatpush1.bf16.msra.mxu0 0
        %3696 = vmatprep.subr.bf16.mxu0 0
        %3697 = vmatpush1.bf16.msra.mxu0 0
        %3698 = vmatprep.subr.bf16.mxu0 0
        %3699 = vmatpush1.bf16.msra.mxu0 0
        %3700 = vmatprep.subr.bf16.mxu0 0
        %3701 = vmatpush1.bf16.msra.mxu0 0
        %3702 = vmatprep.subr.bf16.mxu0 0
        %3703 = vmatpush1.bf16.msra.mxu0 0
        %3704 = vmatprep.subr.bf16.mxu0 0
        %3705 = vmatpush1.bf16.msra.mxu0 0
        %3706 = vmatprep.subr.bf16.mxu0 0
        %3707 = vmatpush1.bf16.msra.mxu0 0
        %3708 = vmatprep.mubr.bf16.mxu0 0
        %3709 = vmatmul.mubr.bf16.gmra.mrb[0].mxu0 %v3585
        %v3710 = vpop.f32.mrb[0].mxu0
        %v3711 = vadd.f32 %v3626, %v3710
        %v3712 = vpop.f32.mrb[0].mxu0
        %v3713 = vpop.f32.mrb[0].mxu0
        %v3714 = vadd.f32 %v3626, %v3713
        %v3715 = vpop.f32.mrb[0].mxu0
        %3716 = vmatprep.mubr.bf16.mxu0 0
        %3717 = vmatmul.mubr.bf16.gmra.mrb[0].mxu0 %v3586
        %v3718 = vpop.f32.mrb[0].mxu0
        %v3719 = vadd.f32 %v3626, %v3718
        %v3720 = vpop.f32.mrb[0].mxu0
        %v3721 = vpop.f32.mrb[0].mxu0
        %v3722 = vadd.f32 %v3626, %v3721
        %v3723 = vpop.f32.mrb[0].mxu0
        %3724 = vmatprep.mubr.bf16.mxu0 0
        %3725 = vmatmul.mubr.bf16.gmra.mrb[0].mxu0 %v3587
        %v3726 = vpop.f32.mrb[0].mxu0
        %v3727 = vadd.f32 %v3626, %v3726
        %v3728 = vpop.f32.mrb[0].mxu0
        %v3729 = vpop.f32.mrb[0].mxu0
        %v3730 = vadd.f32 %v3626, %v3729
        %v3731 = vpop.f32.mrb[0].mxu0
        %3732 = vmatprep.mubr.bf16.mxu0 0
        %3733 = vmatmul.mubr.bf16.gmra.mrb[0].mxu0 %v3588
        %v3734 = vpop.f32.mrb[0].mxu0
        %v3735 = vadd.f32 %v3626, %v3734
        %v3736 = vpop.f32.mrb[0].mxu0
        %v3737 = vpop.f32.mrb[0].mxu0
        %v3738 = vadd.f32 %v3626, %v3737
        %v3739 = vpop.f32.mrb[0].mxu0
        %3740 = vmatprep.mubr.bf16.mxu0 0
        %3741 = vmatmul.mubr.bf16.gmra.mrb[0].mxu0 %v3589
        %v3742 = vpop.f32.mrb[0].mxu0
        %v3743 = vadd.f32 %v3626, %v3742
        %v3744 = vpop.f32.mrb[0].mxu0
        %v3745 = vpop.f32.mrb[0].mxu0
        %v3746 = vadd.f32 %v3626, %v3745
        %v3747 = vpop.f32.mrb[0].mxu0
        %3748 = vmatprep.mubr.bf16.mxu0 0
        %3749 = vmatmul.mubr.bf16.gmra.mrb[0].mxu0 %v3590
        %v3750 = vpop.f32.mrb[0].mxu0
        %v3751 = vadd.f32 %v3626, %v3750
        %v3752 = vpop.f32.mrb[0].mxu0
        %v3753 = vpop.f32.mrb[0].mxu0
        %v3754 = vadd.f32 %v3626, %v3753
        %v3755 = vpop.f32.mrb[0].mxu0
        %3756 = vmatprep.mubr.bf16.mxu0 0
        %3757 = vmatmul.mubr.bf16.gmra.mrb[0].mxu0 %v3591
        %v3758 = vpop.f32.mrb[0].mxu0
        %v3759 = vadd.f32 %v3626, %v3758
        %v3760 = vpop.f32.mrb[0].mxu0
        %v3761 = vpop.f32.mrb[0].mxu0
        %v3762 = vadd.f32 %v3626, %v3761
        %v3763 = vpop.f32.mrb[0].mxu0
        %3764 = vmatprep.mubr.bf16.mxu0 0
        %3765 = vmatmul.mubr.bf16.gmra.mrb[0].mxu0 %v3592
        %v3766 = vpop.f32.mrb[0].mxu0
        %v3767 = vadd.f32 %v3626, %v3766
        %v3768 = vpop.f32.mrb[0].mxu0
        %v3769 = vpop.f32.mrb[0].mxu0
        %v3770 = vadd.f32 %v3626, %v3769
        %v3771 = vpop.f32.mrb[0].mxu0
        %3772 = vmatprep.mubr.bf16.mxu0 0
        %3773 = vmatmul.mubr.bf16.gmra.mrb[0].mxu0 %v3593
        %v3774 = vpop.f32.mrb[0].mxu0
        %v3775 = vadd.f32 %v3626, %v3774
        %v3776 = vpop.f32.mrb[0].mxu0
        %v3777 = vpop.f32.mrb[0].mxu0
        %v3778 = vadd.f32 %v3626, %v3777
        %v3779 = vpop.f32.mrb[0].mxu0
        %3780 = vmatprep.mubr.bf16.mxu0 0
        %3781 = vmatmul.mubr.bf16.gmra.mrb[0].mxu0 %v3594
        %v3782 = vpop.f32.mrb[0].mxu0
        %v3783 = vadd.f32 %v3626, %v3782
        %v3784 = vpop.f32.mrb[0].mxu0
        %v3785 = vpop.f32.mrb[0].mxu0
        %v3786 = vadd.f32 %v3626, %v3785
        %v3787 = vpop.f32.mrb[0].mxu0
        %3788 = vmatprep.mubr.bf16.mxu0 0
        %3789 = vmatmul.mubr.bf16.gmra.mrb[0].mxu0 %v3595
        %v3790 = vpop.f32.mrb[0].mxu0
        %v3791 = vadd.f32 %v3626, %v3790
        %v3792 = vpop.f32.mrb[0].mxu0
        %v3793 = vpop.f32.mrb[0].mxu0
        %v3794 = vadd.f32 %v3626, %v3793
        %v3795 = vpop.f32.mrb[0].mxu0
        %3796 = vmatprep.mubr.bf16.mxu0 0
        %3797 = vmatmul.mubr.bf16.gmra.mrb[0].mxu0 %v3596
        %v3798 = vpop.f32.mrb[0].mxu0
        %v3799 = vadd.f32 %v3626, %v3798
        %v3800 = vpop.f32.mrb[0].mxu0
        %v3801 = vpop.f32.mrb[0].mxu0
        %v3802 = vadd.f32 %v3626, %v3801
        %v3803 = vpop.f32.mrb[0].mxu0
        %3804 = vmatprep.mubr.bf16.mxu0 0
        %3805 = vmatmul.mubr.bf16.gmra.mrb[0].mxu0 %v3597
        %v3806 = vpop.f32.mrb[0].mxu0
        %v3807 = vadd.f32 %v3626, %v3806
        %v3808 = vpop.f32.mrb[0].mxu0
        %v3809 = vpop.f32.mrb[0].mxu0
        %v3810 = vadd.f32 %v3626, %v3809
        %v3811 = vpop.f32.mrb[0].mxu0
        %3812 = vmatprep.mubr.bf16.mxu0 0
        %3813 = vmatmul.mubr.bf16.gmra.mrb[0].mxu0 %v3598
        %v3814 = vpop.f32.mrb[0].mxu0
        %v3815 = vadd.f32 %v3626, %v3814
        %v3816 = vpop.f32.mrb[0].mxu0
        %v3817 = vpop.f32.mrb[0].mxu0
        %v3818 = vadd.f32 %v3626, %v3817
        %v3819 = vpop.f32.mrb[0].mxu0
        %3820 = vmatprep.mubr.bf16.mxu0 0
        %3821 = vmatmul.mubr.bf16.gmra.mrb[0].mxu0 %v3599
        %v3822 = vpop.f32.mrb[0].mxu0
        %v3823 = vadd.f32 %v3626, %v3822
        %v3824 = vpop.f32.mrb[0].mxu0
        %v3825 = vpop.f32.mrb[0].mxu0
        %v3826 = vadd.f32 %v3626, %v3825
        %v3827 = vpop.f32.mrb[0].mxu0
        %3828 = vmatprep.mubr.bf16.mxu0 0
        %3829 = vmatmul.mubr.bf16.gmra.mrb[0].mxu0 %v3600
        %v3830 = vpop.f32.mrb[0].mxu0
        %v3831 = vadd.f32 %v3626, %v3830
        %v3832 = vpop.f32.mrb[0].mxu0
        %v3833 = vpop.f32.mrb[0].mxu0
        %v3834 = vadd.f32 %v3626, %v3833
        %v3835 = vpop.f32.mrb[0].mxu0
        %3836 = vmatprep.mubr.bf16.mxu0 0
        %3837 = vmatmul.mubr.bf16.gmra.mrb[0].mxu0 %v3601
        %v3838 = vpop.f32.mrb[0].mxu0
        %v3839 = vadd.f32 %v3626, %v3838
        %v3840 = vpop.f32.mrb[0].mxu0
        %v3841 = vpop.f32.mrb[0].mxu0
        %v3842 = vadd.f32 %v3626, %v3841
        %v3843 = vpop.f32.mrb[0].mxu0
        %3844 = vmatprep.mubr.bf16.mxu0 0
        %3845 = vmatmul.mubr.bf16.gmra.mrb[0].mxu0 %v3602
        %v3846 = vpop.f32.mrb[0].mxu0
        %v3847 = vadd.f32 %v3626, %v3846
        %v3848 = vpop.f32.mrb[0].mxu0
        %v3849 = vpop.f32.mrb[0].mxu0
        %v3850 = vadd.f32 %v3626, %v3849
        %v3851 = vpop.f32.mrb[0].mxu0
        %3852 = vmatprep.mubr.bf16.mxu0 0
        %3853 = vmatmul.mubr.bf16.gmra.mrb[0].mxu0 %v3603
        %v3854 = vpop.f32.mrb[0].mxu0
        %v3855 = vadd.f32 %v3626, %v3854
        %v3856 = vpop.f32.mrb[0].mxu0
        %v3857 = vpop.f32.mrb[0].mxu0
        %v3858 = vadd.f32 %v3626, %v3857
        %v3859 = vpop.f32.mrb[0].mxu0
        %3860 = vmatprep.mubr.bf16.mxu0 0
        %3861 = vmatmul.mubr.bf16.gmra.mrb[0].mxu0 %v3604
        %v3862 = vpop.f32.mrb[0].mxu0
        %v3863 = vadd.f32 %v3626, %v3862
        %v3864 = vpop.f32.mrb[0].mxu0
        %v3865 = vpop.f32.mrb[0].mxu0
        %v3866 = vadd.f32 %v3626, %v3865
        %v3867 = vpop.f32.mrb[0].mxu0
        %3868 = vdwg.mxu0
        %v3869 = vmax.f32 %v3711, 0.0
        %v3870 = vmax.f32 %v3714, 0.0
        %v3871 = vmax.f32 %v3719, 0.0
        %v3872 = vmax.f32 %v3722, 0.0
        %v3873 = vmax.f32 %v3727, 0.0
        %v3874 = vmax.f32 %v3730, 0.0
        %v3875 = vmax.f32 %v3735, 0.0
        %v3876 = vmax.f32 %v3738, 0.0
        %v3877 = vmax.f32 %v3743, 0.0
        %v3878 = vmax.f32 %v3746, 0.0
        %v3879 = vmax.f32 %v3751, 0.0
        %v3880 = vmax.f32 %v3754, 0.0
        %v3881 = vmax.f32 %v3759, 0.0
        %v3882 = vmax.f32 %v3762, 0.0
        %v3883 = vmax.f32 %v3767, 0.0
        %v3884 = vmax.f32 %v3770, 0.0
        %v3885 = vmax.f32 %v3775, 0.0
        %v3886 = vmax.f32 %v3778, 0.0
        %v3887 = vmax.f32 %v3783, 0.0
        %v3888 = vmax.f32 %v3786, 0.0
        %v3889 = vmax.f32 %v3791, 0.0
        %v3890 = vmax.f32 %v3794, 0.0
        %v3891 = vmax.f32 %v3799, 0.0
        %v3892 = vmax.f32 %v3802, 0.0
        %v3893 = vmax.f32 %v3807, 0.0
        %v3894 = vmax.f32 %v3810, 0.0
        %v3895 = vmax.f32 %v3815, 0.0
        %v3896 = vmax.f32 %v3818, 0.0
        %v3897 = vmax.f32 %v3823, 0.0
        %v3898 = vmax.f32 %v3826, 0.0
        %v3899 = vmax.f32 %v3831, 0.0
        %v3900 = vmax.f32 %v3834, 0.0
        %v3901 = vmax.f32 %v3839, 0.0
        %v3902 = vmax.f32 %v3842, 0.0
        %v3903 = vmax.f32 %v3847, 0.0
        %v3904 = vmax.f32 %v3850, 0.0
        %v3905 = vmax.f32 %v3855, 0.0
        %v3906 = vmax.f32 %v3858, 0.0
        %v3907 = vmax.f32 %v3863, 0.0
        %v3908 = vmax.f32 %v3866, 0.0
        %v3909 = vpack.c.bf16 %v3870, %v3869
        %v3910 = vpack.c.bf16 %v3872, %v3871
        %v3911 = vpack.c.bf16 %v3874, %v3873
        %v3912 = vpack.c.bf16 %v3876, %v3875
        %v3913 = vpack.c.bf16 %v3878, %v3877
        %v3914 = vpack.c.bf16 %v3880, %v3879
        %v3915 = vpack.c.bf16 %v3882, %v3881
        %v3916 = vpack.c.bf16 %v3884, %v3883
        %v3917 = vpack.c.bf16 %v3886, %v3885
        %v3918 = vpack.c.bf16 %v3888, %v3887
        %v3919 = vpack.c.bf16 %v3890, %v3889
        %v3920 = vpack.c.bf16 %v3892, %v3891
        %v3921 = vpack.c.bf16 %v3894, %v3893
        %v3922 = vpack.c.bf16 %v3896, %v3895
        %v3923 = vpack.c.bf16 %v3898, %v3897
        %v3924 = vpack.c.bf16 %v3900, %v3899
        %v3925 = vpack.c.bf16 %v3902, %v3901
        %v3926 = vpack.c.bf16 %v3904, %v3903
        %v3927 = vpack.c.bf16 %v3906, %v3905
        %v3928 = vpack.c.bf16 %v3908, %v3907
        %v3929 = vld [vmem:[#allocation22] sm:$0xf]
        %v3930 = vld [vmem:[#allocation22 + $0x4] sm:$0xf]
        %v3931 = vld [vmem:[#allocation22 + $0x8] sm:$0xf]
        %v3932 = vld [vmem:[#allocation22 + $0xc] sm:$0xf]
        %v3933 = vld [vmem:[#allocation22 + $0x10] sm:$0xf]
        %v3934 = vld [vmem:[#allocation22 + $0x14] sm:$0xf]
        %v3935 = vld [vmem:[#allocation22 + $0x18] sm:$0xf]
        %v3936 = vld [vmem:[#allocation22 + $0x1c] sm:$0xf]
        %v3937 = vld [vmem:[#allocation22 + $0x20] sm:$0xf]
        %v3938 = vld [vmem:[#allocation22 + $0x24] sm:$0xf]
        %v3939 = vld [vmem:[#allocation22 + $0x28] sm:$0xf]
        %v3940 = vld [vmem:[#allocation22 + $0x2c] sm:$0xf]
        %v3941 = vld [vmem:[#allocation22 + $0x30] sm:$0xf]
        %v3942 = vld [vmem:[#allocation22 + $0x34] sm:$0xf]
        %v3943 = vld [vmem:[#allocation22 + $0x38] sm:$0xf]
        %v3944 = vld [vmem:[#allocation22 + $0x3c] sm:$0xf]
        %v3945 = vld [vmem:[#allocation23] sm:$0x1]
        %v3947 = vlaneseq
        %v3948 = vshrl.u32 %v3947, 7
        %v3949 = vsub.s32 0, %v3948
        %v3950 = vrot.slane %v3945, %v3949
        %v3968 = vunpack.c.l.b16 %v3929
        %v3969 = vunpack.c.l.b16 %v3930
        %v3970 = vunpack.c.l.b16 %v3931
        %v3971 = vunpack.c.l.b16 %v3932
        %v3972 = vunpack.c.l.b16 %v3933
        %v3973 = vunpack.c.l.b16 %v3934
        %v3974 = vunpack.c.l.b16 %v3935
        %v3975 = vunpack.c.l.b16 %v3936
        %v3976 = vunpack.c.l.b16 %v3937
        %v3977 = vunpack.c.l.b16 %v3938
        %v3978 = vunpack.c.l.b16 %v3939
        %v3979 = vunpack.c.l.b16 %v3940
        %v3980 = vunpack.c.l.b16 %v3941
        %v3981 = vunpack.c.l.b16 %v3942
        %v3982 = vunpack.c.l.b16 %v3943
        %v3983 = vunpack.c.l.b16 %v3944
        %v3984 = vpack.c.b16 %v3969, %v3968
        %v3985 = vpack.c.b16 %v3971, %v3970
        %v3986 = vpack.c.b16 %v3973, %v3972
        %v3987 = vpack.c.b16 %v3975, %v3974
        %v3988 = vpack.c.b16 %v3977, %v3976
        %v3989 = vpack.c.b16 %v3979, %v3978
        %v3990 = vpack.c.b16 %v3981, %v3980
        %v3991 = vpack.c.b16 %v3983, %v3982
        %4000 = vmatprep.subr.bf16.mxu0 0
        %4001 = vmatpush1.bf16.msra.mxu0 %v3984
        %4002 = vmatprep.subr.bf16.mxu0 0
        %4003 = vmatpush1.bf16.msra.mxu0 %v3985
        %4004 = vmatprep.subr.bf16.mxu0 0
        %4005 = vmatpush1.bf16.msra.mxu0 %v3986
        %4006 = vmatprep.subr.bf16.mxu0 0
        %4007 = vmatpush1.bf16.msra.mxu0 %v3987
        %4008 = vmatprep.subr.bf16.mxu0 0
        %4009 = vmatpush1.bf16.msra.mxu0 %v3988
        %4010 = vmatprep.subr.bf16.mxu0 0
        %4011 = vmatpush1.bf16.msra.mxu0 %v3989
        %4012 = vmatprep.subr.bf16.mxu0 0
        %4013 = vmatpush1.bf16.msra.mxu0 %v3990
        %4014 = vmatprep.subr.bf16.mxu0 0
        %4015 = vmatpush1.bf16.msra.mxu0 %v3991
        %4016 = vmatprep.subr.bf16.mxu0 0
        %4017 = vmatpush1.bf16.msra.mxu0 0
        %4018 = vmatprep.subr.bf16.mxu0 0
        %4019 = vmatpush1.bf16.msra.mxu0 0
        %4020 = vmatprep.subr.bf16.mxu0 0
        %4021 = vmatpush1.bf16.msra.mxu0 0
        %4022 = vmatprep.subr.bf16.mxu0 0
        %4023 = vmatpush1.bf16.msra.mxu0 0
        %4024 = vmatprep.subr.bf16.mxu0 0
        %4025 = vmatpush1.bf16.msra.mxu0 0
        %4026 = vmatprep.subr.bf16.mxu0 0
        %4027 = vmatpush1.bf16.msra.mxu0 0
        %4028 = vmatprep.subr.bf16.mxu0 0
        %4029 = vmatpush1.bf16.msra.mxu0 0
        %4030 = vmatprep.subr.bf16.mxu0 0
        %4031 = vmatpush1.bf16.msra.mxu0 0
        %4032 = vmatprep.mubr.bf16.mxu0 0
        %4033 = vmatmul.mubr.bf16.gmra.mrb[0].mxu0 %v3909
        %v4034 = vpop.f32.mrb[0].mxu0
        %v4035 = vadd.f32 %v3950, %v4034
        %v4036 = vpop.f32.mrb[0].mxu0
        %v4037 = vpop.f32.mrb[0].mxu0
        %v4038 = vadd.f32 %v3950, %v4037
        %v4039 = vpop.f32.mrb[0].mxu0
        %4040 = vmatprep.mubr.bf16.mxu0 0
        %4041 = vmatmul.mubr.bf16.gmra.mrb[0].mxu0 %v3910
        %v4042 = vpop.f32.mrb[0].mxu0
        %v4043 = vadd.f32 %v3950, %v4042
        %v4044 = vpop.f32.mrb[0].mxu0
        %v4045 = vpop.f32.mrb[0].mxu0
        %v4046 = vadd.f32 %v3950, %v4045
        %v4047 = vpop.f32.mrb[0].mxu0
        %4048 = vmatprep.mubr.bf16.mxu0 0
        %4049 = vmatmul.mubr.bf16.gmra.mrb[0].mxu0 %v3911
        %v4050 = vpop.f32.mrb[0].mxu0
        %v4051 = vadd.f32 %v3950, %v4050
        %v4052 = vpop.f32.mrb[0].mxu0
        %v4053 = vpop.f32.mrb[0].mxu0
        %v4054 = vadd.f32 %v3950, %v4053
        %v4055 = vpop.f32.mrb[0].mxu0
        %4056 = vmatprep.mubr.bf16.mxu0 0
        %4057 = vmatmul.mubr.bf16.gmra.mrb[0].mxu0 %v3912
        %v4058 = vpop.f32.mrb[0].mxu0
        %v4059 = vadd.f32 %v3950, %v4058
        %v4060 = vpop.f32.mrb[0].mxu0
        %v4061 = vpop.f32.mrb[0].mxu0
        %v4062 = vadd.f32 %v3950, %v4061
        %v4063 = vpop.f32.mrb[0].mxu0
        %4064 = vmatprep.mubr.bf16.mxu0 0
        %4065 = vmatmul.mubr.bf16.gmra.mrb[0].mxu0 %v3913
        %v4066 = vpop.f32.mrb[0].mxu0
        %v4067 = vadd.f32 %v3950, %v4066
        %v4068 = vpop.f32.mrb[0].mxu0
        %v4069 = vpop.f32.mrb[0].mxu0
        %v4070 = vadd.f32 %v3950, %v4069
        %v4071 = vpop.f32.mrb[0].mxu0
        %4072 = vmatprep.mubr.bf16.mxu0 0
        %4073 = vmatmul.mubr.bf16.gmra.mrb[0].mxu0 %v3914
        %v4074 = vpop.f32.mrb[0].mxu0
        %v4075 = vadd.f32 %v3950, %v4074
        %v4076 = vpop.f32.mrb[0].mxu0
        %v4077 = vpop.f32.mrb[0].mxu0
        %v4078 = vadd.f32 %v3950, %v4077
        %v4079 = vpop.f32.mrb[0].mxu0
        %4080 = vmatprep.mubr.bf16.mxu0 0
        %4081 = vmatmul.mubr.bf16.gmra.mrb[0].mxu0 %v3915
        %v4082 = vpop.f32.mrb[0].mxu0
        %v4083 = vadd.f32 %v3950, %v4082
        %v4084 = vpop.f32.mrb[0].mxu0
        %v4085 = vpop.f32.mrb[0].mxu0
        %v4086 = vadd.f32 %v3950, %v4085
        %v4087 = vpop.f32.mrb[0].mxu0
        %4088 = vmatprep.mubr.bf16.mxu0 0
        %4089 = vmatmul.mubr.bf16.gmra.mrb[0].mxu0 %v3916
        %v4090 = vpop.f32.mrb[0].mxu0
        %v4091 = vadd.f32 %v3950, %v4090
        %v4092 = vpop.f32.mrb[0].mxu0
        %v4093 = vpop.f32.mrb[0].mxu0
        %v4094 = vadd.f32 %v3950, %v4093
        %v4095 = vpop.f32.mrb[0].mxu0
        %4096 = vmatprep.mubr.bf16.mxu0 0
        %4097 = vmatmul.mubr.bf16.gmra.mrb[0].mxu0 %v3917
        %v4098 = vpop.f32.mrb[0].mxu0
        %v4099 = vadd.f32 %v3950, %v4098
        %v4100 = vpop.f32.mrb[0].mxu0
        %v4101 = vpop.f32.mrb[0].mxu0
        %v4102 = vadd.f32 %v3950, %v4101
        %v4103 = vpop.f32.mrb[0].mxu0
        %4104 = vmatprep.mubr.bf16.mxu0 0
        %4105 = vmatmul.mubr.bf16.gmra.mrb[0].mxu0 %v3918
        %v4106 = vpop.f32.mrb[0].mxu0
        %v4107 = vadd.f32 %v3950, %v4106
        %v4108 = vpop.f32.mrb[0].mxu0
        %v4109 = vpop.f32.mrb[0].mxu0
        %v4110 = vadd.f32 %v3950, %v4109
        %v4111 = vpop.f32.mrb[0].mxu0
        %4112 = vmatprep.mubr.bf16.mxu0 0
        %4113 = vmatmul.mubr.bf16.gmra.mrb[0].mxu0 %v3919
        %v4114 = vpop.f32.mrb[0].mxu0
        %v4115 = vadd.f32 %v3950, %v4114
        %v4116 = vpop.f32.mrb[0].mxu0
        %v4117 = vpop.f32.mrb[0].mxu0
        %v4118 = vadd.f32 %v3950, %v4117
        %v4119 = vpop.f32.mrb[0].mxu0
        %4120 = vmatprep.mubr.bf16.mxu0 0
        %4121 = vmatmul.mubr.bf16.gmra.mrb[0].mxu0 %v3920
        %v4122 = vpop.f32.mrb[0].mxu0
        %v4123 = vadd.f32 %v3950, %v4122
        %v4124 = vpop.f32.mrb[0].mxu0
        %v4125 = vpop.f32.mrb[0].mxu0
        %v4126 = vadd.f32 %v3950, %v4125
        %v4127 = vpop.f32.mrb[0].mxu0
        %4128 = vmatprep.mubr.bf16.mxu0 0
        %4129 = vmatmul.mubr.bf16.gmra.mrb[0].mxu0 %v3921
        %v4130 = vpop.f32.mrb[0].mxu0
        %v4131 = vadd.f32 %v3950, %v4130
        %v4132 = vpop.f32.mrb[0].mxu0
        %v4133 = vpop.f32.mrb[0].mxu0
        %v4134 = vadd.f32 %v3950, %v4133
        %v4135 = vpop.f32.mrb[0].mxu0
        %4136 = vmatprep.mubr.bf16.mxu0 0
        %4137 = vmatmul.mubr.bf16.gmra.mrb[0].mxu0 %v3922
        %v4138 = vpop.f32.mrb[0].mxu0
        %v4139 = vadd.f32 %v3950, %v4138
        %v4140 = vpop.f32.mrb[0].mxu0
        %v4141 = vpop.f32.mrb[0].mxu0
        %v4142 = vadd.f32 %v3950, %v4141
        %v4143 = vpop.f32.mrb[0].mxu0
        %4144 = vmatprep.mubr.bf16.mxu0 0
        %4145 = vmatmul.mubr.bf16.gmra.mrb[0].mxu0 %v3923
        %v4146 = vpop.f32.mrb[0].mxu0
        %v4147 = vadd.f32 %v3950, %v4146
        %v4148 = vpop.f32.mrb[0].mxu0
        %v4149 = vpop.f32.mrb[0].mxu0
        %v4150 = vadd.f32 %v3950, %v4149
        %v4151 = vpop.f32.mrb[0].mxu0
        %4152 = vmatprep.mubr.bf16.mxu0 0
        %4153 = vmatmul.mubr.bf16.gmra.mrb[0].mxu0 %v3924
        %v4154 = vpop.f32.mrb[0].mxu0
        %v4155 = vadd.f32 %v3950, %v4154
        %v4156 = vpop.f32.mrb[0].mxu0
        %v4157 = vpop.f32.mrb[0].mxu0
        %v4158 = vadd.f32 %v3950, %v4157
        %v4159 = vpop.f32.mrb[0].mxu0
        %4160 = vmatprep.mubr.bf16.mxu0 0
        %4161 = vmatmul.mubr.bf16.gmra.mrb[0].mxu0 %v3925
        %v4162 = vpop.f32.mrb[0].mxu0
        %v4163 = vadd.f32 %v3950, %v4162
        %v4164 = vpop.f32.mrb[0].mxu0
        %v4165 = vpop.f32.mrb[0].mxu0
        %v4166 = vadd.f32 %v3950, %v4165
        %v4167 = vpop.f32.mrb[0].mxu0
        %4168 = vmatprep.mubr.bf16.mxu0 0
        %4169 = vmatmul.mubr.bf16.gmra.mrb[0].mxu0 %v3926
        %v4170 = vpop.f32.mrb[0].mxu0
        %v4171 = vadd.f32 %v3950, %v4170
        %v4172 = vpop.f32.mrb[0].mxu0
        %v4173 = vpop.f32.mrb[0].mxu0
        %v4174 = vadd.f32 %v3950, %v4173
        %v4175 = vpop.f32.mrb[0].mxu0
        %4176 = vmatprep.mubr.bf16.mxu0 0
        %4177 = vmatmul.mubr.bf16.gmra.mrb[0].mxu0 %v3927
        %v4178 = vpop.f32.mrb[0].mxu0
        %v4179 = vadd.f32 %v3950, %v4178
        %v4180 = vpop.f32.mrb[0].mxu0
        %v4181 = vpop.f32.mrb[0].mxu0
        %v4182 = vadd.f32 %v3950, %v4181
        %v4183 = vpop.f32.mrb[0].mxu0
        %4184 = vmatprep.mubr.bf16.mxu0 0
        %4185 = vmatmul.mubr.bf16.gmra.mrb[0].mxu0 %v3928
        %v4186 = vpop.f32.mrb[0].mxu0
        %v4187 = vadd.f32 %v3950, %v4186
        %v4188 = vpop.f32.mrb[0].mxu0
        %v4189 = vpop.f32.mrb[0].mxu0
        %v4190 = vadd.f32 %v3950, %v4189
        %v4191 = vpop.f32.mrb[0].mxu0
        %4192 = vdwg.mxu0
        %v4193 = vmax.f32 %v4035, 0.0
        %v4194 = vmax.f32 %v4038, 0.0
        %v4195 = vmax.f32 %v4043, 0.0
        %v4196 = vmax.f32 %v4046, 0.0
        %v4197 = vmax.f32 %v4051, 0.0
        %v4198 = vmax.f32 %v4054, 0.0
        %v4199 = vmax.f32 %v4059, 0.0
        %v4200 = vmax.f32 %v4062, 0.0
        %v4201 = vmax.f32 %v4067, 0.0
        %v4202 = vmax.f32 %v4070, 0.0
        %v4203 = vmax.f32 %v4075, 0.0
        %v4204 = vmax.f32 %v4078, 0.0
        %v4205 = vmax.f32 %v4083, 0.0
        %v4206 = vmax.f32 %v4086, 0.0
        %v4207 = vmax.f32 %v4091, 0.0
        %v4208 = vmax.f32 %v4094, 0.0
        %v4209 = vmax.f32 %v4099, 0.0
        %v4210 = vmax.f32 %v4102, 0.0
        %v4211 = vmax.f32 %v4107, 0.0
        %v4212 = vmax.f32 %v4110, 0.0
        %v4213 = vmax.f32 %v4115, 0.0
        %v4214 = vmax.f32 %v4118, 0.0
        %v4215 = vmax.f32 %v4123, 0.0
        %v4216 = vmax.f32 %v4126, 0.0
        %v4217 = vmax.f32 %v4131, 0.0
        %v4218 = vmax.f32 %v4134, 0.0
        %v4219 = vmax.f32 %v4139, 0.0
        %v4220 = vmax.f32 %v4142, 0.0
        %v4221 = vmax.f32 %v4147, 0.0
        %v4222 = vmax.f32 %v4150, 0.0
        %v4223 = vmax.f32 %v4155, 0.0
        %v4224 = vmax.f32 %v4158, 0.0
        %v4225 = vmax.f32 %v4163, 0.0
        %v4226 = vmax.f32 %v4166, 0.0
        %v4227 = vmax.f32 %v4171, 0.0
        %v4228 = vmax.f32 %v4174, 0.0
        %v4229 = vmax.f32 %v4179, 0.0
        %v4230 = vmax.f32 %v4182, 0.0
        %v4231 = vmax.f32 %v4187, 0.0
        %v4232 = vmax.f32 %v4190, 0.0
        %v4233 = vpack.c.bf16 %v4194, %v4193
        %v4234 = vpack.c.bf16 %v4196, %v4195
        %v4235 = vpack.c.bf16 %v4198, %v4197
        %v4236 = vpack.c.bf16 %v4200, %v4199
        %v4237 = vpack.c.bf16 %v4202, %v4201
        %v4238 = vpack.c.bf16 %v4204, %v4203
        %v4239 = vpack.c.bf16 %v4206, %v4205
        %v4240 = vpack.c.bf16 %v4208, %v4207
        %v4241 = vpack.c.bf16 %v4210, %v4209
        %v4242 = vpack.c.bf16 %v4212, %v4211
        %v4243 = vpack.c.bf16 %v4214, %v4213
        %v4244 = vpack.c.bf16 %v4216, %v4215
        %v4245 = vpack.c.bf16 %v4218, %v4217
        %v4246 = vpack.c.bf16 %v4220, %v4219
        %v4247 = vpack.c.bf16 %v4222, %v4221
        %v4248 = vpack.c.bf16 %v4224, %v4223
        %v4249 = vpack.c.bf16 %v4226, %v4225
        %v4250 = vpack.c.bf16 %v4228, %v4227
        %v4251 = vpack.c.bf16 %v4230, %v4229
        %v4252 = vpack.c.bf16 %v4232, %v4231
        %v4253 = vld [vmem:[%s18] sm:$0xf]
        %v4254 = vld [vmem:[%s18 + $0x4] sm:$0xf]
        %v4255 = vld [vmem:[%s18 + $0x8] sm:$0xf]
        %v4256 = vld [vmem:[%s18 + $0xc] sm:$0xf]
        %v4257 = vld [vmem:[%s18 + $0x10] sm:$0xf]
        %v4258 = vld [vmem:[%s18 + $0x14] sm:$0xf]
        %v4259 = vld [vmem:[%s18 + $0x18] sm:$0xf]
        %v4260 = vld [vmem:[%s18 + $0x1c] sm:$0xf]
        %v4261 = vld [vmem:[%s18 + $0x20] sm:$0xf]
        %v4262 = vld [vmem:[%s18 + $0x24] sm:$0xf]
        %v4263 = vld [vmem:[%s18 + $0x28] sm:$0xf]
        %v4264 = vld [vmem:[%s18 + $0x2c] sm:$0xf]
        %v4265 = vld [vmem:[%s18 + $0x30] sm:$0xf]
        %v4266 = vld [vmem:[%s18 + $0x34] sm:$0xf]
        %v4267 = vld [vmem:[%s18 + $0x38] sm:$0xf]
        %v4268 = vld [vmem:[%s18 + $0x3c] sm:$0xf]
        %v4269 = vld [vmem:[%s19] sm:$0x1]
        %v4271 = vlaneseq
        %v4272 = vshrl.u32 %v4271, 7
        %v4273 = vsub.s32 0, %v4272
        %v4274 = vrot.slane %v4269, %v4273
        %v4292 = vunpack.c.l.b16 %v4253
        %v4293 = vunpack.c.l.b16 %v4254
        %v4294 = vunpack.c.l.b16 %v4255
        %v4295 = vunpack.c.l.b16 %v4256
        %v4296 = vunpack.c.l.b16 %v4257
        %v4297 = vunpack.c.l.b16 %v4258
        %v4298 = vunpack.c.l.b16 %v4259
        %v4299 = vunpack.c.l.b16 %v4260
        %v4300 = vunpack.c.l.b16 %v4261
        %v4301 = vunpack.c.l.b16 %v4262
        %v4302 = vunpack.c.l.b16 %v4263
        %v4303 = vunpack.c.l.b16 %v4264
        %v4304 = vunpack.c.l.b16 %v4265
        %v4305 = vunpack.c.l.b16 %v4266
        %v4306 = vunpack.c.l.b16 %v4267
        %v4307 = vunpack.c.l.b16 %v4268
        %v4308 = vpack.c.b16 %v4293, %v4292
        %v4309 = vpack.c.b16 %v4295, %v4294
        %v4310 = vpack.c.b16 %v4297, %v4296
        %v4311 = vpack.c.b16 %v4299, %v4298
        %v4312 = vpack.c.b16 %v4301, %v4300
        %v4313 = vpack.c.b16 %v4303, %v4302
        %v4314 = vpack.c.b16 %v4305, %v4304
        %v4315 = vpack.c.b16 %v4307, %v4306
        %4324 = vmatprep.subr.bf16.mxu0 0
        %4325 = vmatpush1.bf16.msra.mxu0 %v4308
        %4326 = vmatprep.subr.bf16.mxu0 0
        %4327 = vmatpush1.bf16.msra.mxu0 %v4309
        %4328 = vmatprep.subr.bf16.mxu0 0
        %4329 = vmatpush1.bf16.msra.mxu0 %v4310
        %4330 = vmatprep.subr.bf16.mxu0 0
        %4331 = vmatpush1.bf16.msra.mxu0 %v4311
        %4332 = vmatprep.subr.bf16.mxu0 0
        %4333 = vmatpush1.bf16.msra.mxu0 %v4312
        %4334 = vmatprep.subr.bf16.mxu0 0
        %4335 = vmatpush1.bf16.msra.mxu0 %v4313
        %4336 = vmatprep.subr.bf16.mxu0 0
        %4337 = vmatpush1.bf16.msra.mxu0 %v4314
        %4338 = vmatprep.subr.bf16.mxu0 0
        %4339 = vmatpush1.bf16.msra.mxu0 %v4315
        %4340 = vmatprep.subr.bf16.mxu0 0
        %4341 = vmatpush1.bf16.msra.mxu0 0
        %4342 = vmatprep.subr.bf16.mxu0 0
        %4343 = vmatpush1.bf16.msra.mxu0 0
        %4344 = vmatprep.subr.bf16.mxu0 0
        %4345 = vmatpush1.bf16.msra.mxu0 0
        %4346 = vmatprep.subr.bf16.mxu0 0
        %4347 = vmatpush1.bf16.msra.mxu0 0
        %4348 = vmatprep.subr.bf16.mxu0 0
        %4349 = vmatpush1.bf16.msra.mxu0 0
        %4350 = vmatprep.subr.bf16.mxu0 0
        %4351 = vmatpush1.bf16.msra.mxu0 0
        %4352 = vmatprep.subr.bf16.mxu0 0
        %4353 = vmatpush1.bf16.msra.mxu0 0
        %4354 = vmatprep.subr.bf16.mxu0 0
        %4355 = vmatpush1.bf16.msra.mxu0 0
        %4356 = vmatprep.mubr.bf16.mxu0 0
        %4357 = vmatmul.mubr.bf16.gmra.mrb[0].mxu0 %v4233
        %v4358 = vpop.f32.mrb[0].mxu0
        %v4359 = vadd.f32 %v4274, %v4358
        %v4360 = vpop.f32.mrb[0].mxu0
        %v4361 = vpop.f32.mrb[0].mxu0
        %v4362 = vadd.f32 %v4274, %v4361
        %v4363 = vpop.f32.mrb[0].mxu0
        %4364 = vmatprep.mubr.bf16.mxu0 0
        %4365 = vmatmul.mubr.bf16.gmra.mrb[0].mxu0 %v4234
        %v4366 = vpop.f32.mrb[0].mxu0
        %v4367 = vadd.f32 %v4274, %v4366
        %v4368 = vpop.f32.mrb[0].mxu0
        %v4369 = vpop.f32.mrb[0].mxu0
        %v4370 = vadd.f32 %v4274, %v4369
        %v4371 = vpop.f32.mrb[0].mxu0
        %4372 = vmatprep.mubr.bf16.mxu0 0
        %4373 = vmatmul.mubr.bf16.gmra.mrb[0].mxu0 %v4235
        %v4374 = vpop.f32.mrb[0].mxu0
        %v4375 = vadd.f32 %v4274, %v4374
        %v4376 = vpop.f32.mrb[0].mxu0
        %v4377 = vpop.f32.mrb[0].mxu0
        %v4378 = vadd.f32 %v4274, %v4377
        %v4379 = vpop.f32.mrb[0].mxu0
        %4380 = vmatprep.mubr.bf16.mxu0 0
        %4381 = vmatmul.mubr.bf16.gmra.mrb[0].mxu0 %v4236
        %v4382 = vpop.f32.mrb[0].mxu0
        %v4383 = vadd.f32 %v4274, %v4382
        %v4384 = vpop.f32.mrb[0].mxu0
        %v4385 = vpop.f32.mrb[0].mxu0
        %v4386 = vadd.f32 %v4274, %v4385
        %v4387 = vpop.f32.mrb[0].mxu0
        %4388 = vmatprep.mubr.bf16.mxu0 0
        %4389 = vmatmul.mubr.bf16.gmra.mrb[0].mxu0 %v4237
        %v4390 = vpop.f32.mrb[0].mxu0
        %v4391 = vadd.f32 %v4274, %v4390
        %v4392 = vpop.f32.mrb[0].mxu0
        %v4393 = vpop.f32.mrb[0].mxu0
        %v4394 = vadd.f32 %v4274, %v4393
        %v4395 = vpop.f32.mrb[0].mxu0
        %4396 = vmatprep.mubr.bf16.mxu0 0
        %4397 = vmatmul.mubr.bf16.gmra.mrb[0].mxu0 %v4238
        %v4398 = vpop.f32.mrb[0].mxu0
        %v4399 = vadd.f32 %v4274, %v4398
        %v4400 = vpop.f32.mrb[0].mxu0
        %v4401 = vpop.f32.mrb[0].mxu0
        %v4402 = vadd.f32 %v4274, %v4401
        %v4403 = vpop.f32.mrb[0].mxu0
        %4404 = vmatprep.mubr.bf16.mxu0 0
        %4405 = vmatmul.mubr.bf16.gmra.mrb[0].mxu0 %v4239
        %v4406 = vpop.f32.mrb[0].mxu0
        %v4407 = vadd.f32 %v4274, %v4406
        %v4408 = vpop.f32.mrb[0].mxu0
        %v4409 = vpop.f32.mrb[0].mxu0
        %v4410 = vadd.f32 %v4274, %v4409
        %v4411 = vpop.f32.mrb[0].mxu0
        %4412 = vmatprep.mubr.bf16.mxu0 0
        %4413 = vmatmul.mubr.bf16.gmra.mrb[0].mxu0 %v4240
        %v4414 = vpop.f32.mrb[0].mxu0
        %v4415 = vadd.f32 %v4274, %v4414
        %v4416 = vpop.f32.mrb[0].mxu0
        %v4417 = vpop.f32.mrb[0].mxu0
        %v4418 = vadd.f32 %v4274, %v4417
        %v4419 = vpop.f32.mrb[0].mxu0
        %4420 = vmatprep.mubr.bf16.mxu0 0
        %4421 = vmatmul.mubr.bf16.gmra.mrb[0].mxu0 %v4241
        %v4422 = vpop.f32.mrb[0].mxu0
        %v4423 = vadd.f32 %v4274, %v4422
        %v4424 = vpop.f32.mrb[0].mxu0
        %v4425 = vpop.f32.mrb[0].mxu0
        %v4426 = vadd.f32 %v4274, %v4425
        %v4427 = vpop.f32.mrb[0].mxu0
        %4428 = vmatprep.mubr.bf16.mxu0 0
        %4429 = vmatmul.mubr.bf16.gmra.mrb[0].mxu0 %v4242
        %v4430 = vpop.f32.mrb[0].mxu0
        %v4431 = vadd.f32 %v4274, %v4430
        %v4432 = vpop.f32.mrb[0].mxu0
        %v4433 = vpop.f32.mrb[0].mxu0
        %v4434 = vadd.f32 %v4274, %v4433
        %v4435 = vpop.f32.mrb[0].mxu0
        %4436 = vmatprep.mubr.bf16.mxu0 0
        %4437 = vmatmul.mubr.bf16.gmra.mrb[0].mxu0 %v4243
        %v4438 = vpop.f32.mrb[0].mxu0
        %v4439 = vadd.f32 %v4274, %v4438
        %v4440 = vpop.f32.mrb[0].mxu0
        %v4441 = vpop.f32.mrb[0].mxu0
        %v4442 = vadd.f32 %v4274, %v4441
        %v4443 = vpop.f32.mrb[0].mxu0
        %4444 = vmatprep.mubr.bf16.mxu0 0
        %4445 = vmatmul.mubr.bf16.gmra.mrb[0].mxu0 %v4244
        %v4446 = vpop.f32.mrb[0].mxu0
        %v4447 = vadd.f32 %v4274, %v4446
        %v4448 = vpop.f32.mrb[0].mxu0
        %v4449 = vpop.f32.mrb[0].mxu0
        %v4450 = vadd.f32 %v4274, %v4449
        %v4451 = vpop.f32.mrb[0].mxu0
        %4452 = vmatprep.mubr.bf16.mxu0 0
        %4453 = vmatmul.mubr.bf16.gmra.mrb[0].mxu0 %v4245
        %v4454 = vpop.f32.mrb[0].mxu0
        %v4455 = vadd.f32 %v4274, %v4454
        %v4456 = vpop.f32.mrb[0].mxu0
        %v4457 = vpop.f32.mrb[0].mxu0
        %v4458 = vadd.f32 %v4274, %v4457
        %v4459 = vpop.f32.mrb[0].mxu0
        %4460 = vmatprep.mubr.bf16.mxu0 0
        %4461 = vmatmul.mubr.bf16.gmra.mrb[0].mxu0 %v4246
        %v4462 = vpop.f32.mrb[0].mxu0
        %v4463 = vadd.f32 %v4274, %v4462
        %v4464 = vpop.f32.mrb[0].mxu0
        %v4465 = vpop.f32.mrb[0].mxu0
        %v4466 = vadd.f32 %v4274, %v4465
        %v4467 = vpop.f32.mrb[0].mxu0
        %4468 = vmatprep.mubr.bf16.mxu0 0
        %4469 = vmatmul.mubr.bf16.gmra.mrb[0].mxu0 %v4247
        %v4470 = vpop.f32.mrb[0].mxu0
        %v4471 = vadd.f32 %v4274, %v4470
        %v4472 = vpop.f32.mrb[0].mxu0
        %v4473 = vpop.f32.mrb[0].mxu0
        %v4474 = vadd.f32 %v4274, %v4473
        %v4475 = vpop.f32.mrb[0].mxu0
        %4476 = vmatprep.mubr.bf16.mxu0 0
        %4477 = vmatmul.mubr.bf16.gmra.mrb[0].mxu0 %v4248
        %v4478 = vpop.f32.mrb[0].mxu0
        %v4479 = vadd.f32 %v4274, %v4478
        %v4480 = vpop.f32.mrb[0].mxu0
        %v4481 = vpop.f32.mrb[0].mxu0
        %v4482 = vadd.f32 %v4274, %v4481
        %v4483 = vpop.f32.mrb[0].mxu0
        %4484 = vmatprep.mubr.bf16.mxu0 0
        %4485 = vmatmul.mubr.bf16.gmra.mrb[0].mxu0 %v4249
        %v4486 = vpop.f32.mrb[0].mxu0
        %v4487 = vadd.f32 %v4274, %v4486
        %v4488 = vpop.f32.mrb[0].mxu0
        %v4489 = vpop.f32.mrb[0].mxu0
        %v4490 = vadd.f32 %v4274, %v4489
        %v4491 = vpop.f32.mrb[0].mxu0
        %4492 = vmatprep.mubr.bf16.mxu0 0
        %4493 = vmatmul.mubr.bf16.gmra.mrb[0].mxu0 %v4250
        %v4494 = vpop.f32.mrb[0].mxu0
        %v4495 = vadd.f32 %v4274, %v4494
        %v4496 = vpop.f32.mrb[0].mxu0
        %v4497 = vpop.f32.mrb[0].mxu0
        %v4498 = vadd.f32 %v4274, %v4497
        %v4499 = vpop.f32.mrb[0].mxu0
        %4500 = vmatprep.mubr.bf16.mxu0 0
        %4501 = vmatmul.mubr.bf16.gmra.mrb[0].mxu0 %v4251
        %v4502 = vpop.f32.mrb[0].mxu0
        %v4503 = vadd.f32 %v4274, %v4502
        %v4504 = vpop.f32.mrb[0].mxu0
        %v4505 = vpop.f32.mrb[0].mxu0
        %v4506 = vadd.f32 %v4274, %v4505
        %v4507 = vpop.f32.mrb[0].mxu0
        %4508 = vmatprep.mubr.bf16.mxu0 0
        %4509 = vmatmul.mubr.bf16.gmra.mrb[0].mxu0 %v4252
        %v4510 = vpop.f32.mrb[0].mxu0
        %v4511 = vadd.f32 %v4274, %v4510
        %v4512 = vpop.f32.mrb[0].mxu0
        %v4513 = vpop.f32.mrb[0].mxu0
        %v4514 = vadd.f32 %v4274, %v4513
        %v4515 = vpop.f32.mrb[0].mxu0
        %4516 = vdwg.mxu0
        %v4517 = vpack.c.bf16 %v4362, %v4359
        %v4518 = vpack.c.bf16 %v4370, %v4367
        %v4519 = vpack.c.bf16 %v4378, %v4375
        %v4520 = vpack.c.bf16 %v4386, %v4383
        %v4521 = vpack.c.bf16 %v4394, %v4391
        %v4522 = vpack.c.bf16 %v4402, %v4399
        %v4523 = vpack.c.bf16 %v4410, %v4407
        %v4524 = vpack.c.bf16 %v4418, %v4415
        %v4525 = vpack.c.bf16 %v4426, %v4423
        %v4526 = vpack.c.bf16 %v4434, %v4431
        %v4527 = vpack.c.bf16 %v4442, %v4439
        %v4528 = vpack.c.bf16 %v4450, %v4447
        %v4529 = vpack.c.bf16 %v4458, %v4455
        %v4530 = vpack.c.bf16 %v4466, %v4463
        %v4531 = vpack.c.bf16 %v4474, %v4471
        %v4532 = vpack.c.bf16 %v4482, %v4479
        %v4533 = vpack.c.bf16 %v4490, %v4487
        %v4534 = vpack.c.bf16 %v4498, %v4495
        %v4535 = vpack.c.bf16 %v4506, %v4503
        %v4536 = vpack.c.bf16 %v4514, %v4511
        %v4557 = vunpack.c.l.b16 %v4517
        %v4558 = vunpack.c.h.b16 %v4517
        %v4559 = vunpack.c.l.b16 %v4518
        %v4560 = vunpack.c.h.b16 %v4518
        %v4561 = vunpack.c.l.b16 %v4519
        %v4562 = vunpack.c.h.b16 %v4519
        %v4563 = vunpack.c.l.b16 %v4520
        %v4564 = vunpack.c.h.b16 %v4520
        %v4565 = vunpack.c.l.b16 %v4521
        %v4566 = vunpack.c.h.b16 %v4521
        %v4567 = vunpack.c.l.b16 %v4522
        %v4568 = vunpack.c.h.b16 %v4522
        %v4569 = vunpack.c.l.b16 %v4523
        %v4570 = vunpack.c.h.b16 %v4523
        %v4571 = vunpack.c.l.b16 %v4524
        %v4572 = vunpack.c.h.b16 %v4524
        %v4573 = vunpack.c.l.b16 %v4525
        %v4574 = vunpack.c.h.b16 %v4525
        %v4575 = vunpack.c.l.b16 %v4526
        %v4576 = vunpack.c.h.b16 %v4526
        %v4577 = vunpack.c.l.b16 %v4527
        %v4578 = vunpack.c.h.b16 %v4527
        %v4579 = vunpack.c.l.b16 %v4528
        %v4580 = vunpack.c.h.b16 %v4528
        %v4581 = vunpack.c.l.b16 %v4529
        %v4582 = vunpack.c.h.b16 %v4529
        %v4583 = vunpack.c.l.b16 %v4530
        %v4584 = vunpack.c.h.b16 %v4530
        %v4585 = vunpack.c.l.b16 %v4531
        %v4586 = vunpack.c.h.b16 %v4531
        %v4587 = vunpack.c.l.b16 %v4532
        %v4588 = vunpack.c.h.b16 %v4532
        %v4589 = vunpack.c.l.b16 %v4533
        %v4590 = vunpack.c.h.b16 %v4533
        %v4591 = vunpack.c.l.b16 %v4534
        %v4592 = vunpack.c.h.b16 %v4534
        %v4593 = vunpack.c.l.b16 %v4535
        %v4594 = vunpack.c.h.b16 %v4535
        %v4595 = vunpack.c.l.b16 %v4536
        %v4596 = vunpack.c.h.b16 %v4536
        %v4597 = vpack.c.b16 %v4557, %v4557
        %v4598 = vpack.c.b16 %v4558, %v4558
        %v4599 = vpack.c.b16 %v4559, %v4559
        %v4600 = vpack.c.b16 %v4560, %v4560
        %v4601 = vpack.c.b16 %v4561, %v4561
        %v4602 = vpack.c.b16 %v4562, %v4562
        %v4603 = vpack.c.b16 %v4563, %v4563
        %v4604 = vpack.c.b16 %v4564, %v4564
        %v4605 = vpack.c.b16 %v4565, %v4565
        %v4606 = vpack.c.b16 %v4566, %v4566
        %v4607 = vpack.c.b16 %v4567, %v4567
        %v4608 = vpack.c.b16 %v4568, %v4568
        %v4609 = vpack.c.b16 %v4569, %v4569
        %v4610 = vpack.c.b16 %v4570, %v4570
        %v4611 = vpack.c.b16 %v4571, %v4571
        %v4612 = vpack.c.b16 %v4572, %v4572
        %v4613 = vpack.c.b16 %v4573, %v4573
        %v4614 = vpack.c.b16 %v4574, %v4574
        %v4615 = vpack.c.b16 %v4575, %v4575
        %v4616 = vpack.c.b16 %v4576, %v4576
        %v4617 = vpack.c.b16 %v4577, %v4577
        %v4618 = vpack.c.b16 %v4578, %v4578
        %v4619 = vpack.c.b16 %v4579, %v4579
        %v4620 = vpack.c.b16 %v4580, %v4580
        %v4621 = vpack.c.b16 %v4581, %v4581
        %v4622 = vpack.c.b16 %v4582, %v4582
        %v4623 = vpack.c.b16 %v4583, %v4583
        %v4624 = vpack.c.b16 %v4584, %v4584
        %v4625 = vpack.c.b16 %v4585, %v4585
        %v4626 = vpack.c.b16 %v4586, %v4586
        %v4627 = vpack.c.b16 %v4587, %v4587
        %v4628 = vpack.c.b16 %v4588, %v4588
        %v4629 = vpack.c.b16 %v4589, %v4589
        %v4630 = vpack.c.b16 %v4590, %v4590
        %v4631 = vpack.c.b16 %v4591, %v4591
        %v4632 = vpack.c.b16 %v4592, %v4592
        %v4633 = vpack.c.b16 %v4593, %v4593
        %v4634 = vpack.c.b16 %v4594, %v4594
        %v4635 = vpack.c.b16 %v4595, %v4595
        %v4636 = vpack.c.b16 %v4596, %v4596
        %4677 = vst [vmem:[%s830] sm:$0xf] %v4597
        %4678 = vst [vmem:[%s830 + $0x4] sm:$0xf] %v4598
        %4679 = vst [vmem:[%s830 + $0x8] sm:$0xf] %v4599
        %4680 = vst [vmem:[%s830 + $0xc] sm:$0xf] %v4600
        %4681 = vst [vmem:[%s830 + $0x10] sm:$0xf] %v4601
        %4682 = vst [vmem:[%s830 + $0x14] sm:$0xf] %v4602
        %4683 = vst [vmem:[%s830 + $0x18] sm:$0xf] %v4603
        %4684 = vst [vmem:[%s830 + $0x1c] sm:$0xf] %v4604
        %4685 = vst [vmem:[%s830 + $0x20] sm:$0xf] %v4605
        %4686 = vst [vmem:[%s830 + $0x24] sm:$0xf] %v4606
        %4687 = vst [vmem:[%s830 + $0x28] sm:$0xf] %v4607
        %4688 = vst [vmem:[%s830 + $0x2c] sm:$0xf] %v4608
        %4689 = vst [vmem:[%s830 + $0x30] sm:$0xf] %v4609
        %4690 = vst [vmem:[%s830 + $0x34] sm:$0xf] %v4610
        %4691 = vst [vmem:[%s830 + $0x38] sm:$0xf] %v4611
        %4692 = vst [vmem:[%s830 + $0x3c] sm:$0xf] %v4612
        %4693 = vst [vmem:[%s830 + $0x40] sm:$0xf] %v4613
        %4694 = vst [vmem:[%s830 + $0x44] sm:$0xf] %v4614
        %4695 = vst [vmem:[%s830 + $0x48] sm:$0xf] %v4615
        %4696 = vst [vmem:[%s830 + $0x4c] sm:$0xf] %v4616
        %4697 = vst [vmem:[%s830 + $0x50] sm:$0xf] %v4617
        %4698 = vst [vmem:[%s830 + $0x54] sm:$0xf] %v4618
        %4699 = vst [vmem:[%s830 + $0x58] sm:$0xf] %v4619
        %4700 = vst [vmem:[%s830 + $0x5c] sm:$0xf] %v4620
        %4701 = vst [vmem:[%s830 + $0x60] sm:$0xf] %v4621
        %4702 = vst [vmem:[%s830 + $0x64] sm:$0xf] %v4622
        %4703 = vst [vmem:[%s830 + $0x68] sm:$0xf] %v4623
        %4704 = vst [vmem:[%s830 + $0x6c] sm:$0xf] %v4624
        %4705 = vst [vmem:[%s830 + $0x70] sm:$0xf] %v4625
        %4706 = vst [vmem:[%s830 + $0x74] sm:$0xf] %v4626
        %4707 = vst [vmem:[%s830 + $0x78] sm:$0xf] %v4627
        %4708 = vst [vmem:[%s830 + $0x7c] sm:$0xf] %v4628
        %4709 = vst [vmem:[%s830 + $0x80] sm:$0xf] %v4629
        %4710 = vst [vmem:[%s830 + $0x84] sm:$0xf] %v4630
        %4711 = vst [vmem:[%s830 + $0x88] sm:$0xf] %v4631
        %4712 = vst [vmem:[%s830 + $0x8c] sm:$0xf] %v4632
        %4713 = vst [vmem:[%s830 + $0x90] sm:$0xf] %v4633
        %4714 = vst [vmem:[%s830 + $0x94] sm:$0xf] %v4634
        %4715 = vst [vmem:[%s830 + $0x98] sm:$0xf] %v4635
        %4716 = vst [vmem:[%s830 + $0x9c] sm:$0xf] %v4636
        %s4717 = sand.u32 %s477, 1
        %s4718 = scalar_lea.sflag [#allocation4], %s4717
        %s4719 = sand.u32 %s477, 1
        %s4720 = smul.addr %s4719, 160
        %s4721 = scalar_lea.vmem [#allocation25], %s4720
        // Predicated region
        $region157: #{tpu_custom_call.1} parent=99 // pred_check
          %p4722 = pneg %p487
        $region158: #{tpu_custom_call.1} parent=99 // pred_check_branch
          %4724 = sbr.rel (%p4722) target = $region160
        $region159: #{tpu_custom_call.1} parent=99 // pred_region
          %s4725 = smul.u32 40, %s44
          %s4727 = ssub.s32 2560, 2560
          %4728 = vsyncadd %s4718, %s4727
          %s4729 = smul.addr %s4725, 64
          %s4730 = scalar_lea.hbm %s20, %s4729
          %s4731 = sshll.u32 %s4721, 4
          %s4732 = int_to_ptr.vmem [resolvable:$true] %s4731
          %4737 = dma.vmem_to_hbm [thread:$0]  %s4732, 2560, %s4730, %s4718, 64, 64, 4
        $region160: #{tpu_custom_call.1} parent=99 // pred_fallthru
          _
      $region100: #{tpu_custom_call.1} parent=5 // pred_fallthru
        _
      %p4738 = scmp.le.s32.totalorder 2, %s39
      // Predicated region
      $region161: #{tpu_custom_call.1} parent=5 // pred_check
        %p4739 = pneg %p4738
      $region162: #{tpu_custom_call.1} parent=5 // pred_check_branch
        %4741 = sbr.rel (%p4739) target = $region164
      $region163: #{tpu_custom_call.1} parent=5 // pred_region
        %s4742 = ssub.s32 %s39, 2
        // Predicated region
        $region165: #{tpu_custom_call.1} parent=163 // pred_check
          %p4743 = pneg %p493
        $region166: #{tpu_custom_call.1} parent=163 // pred_check_branch
          %4745 = sbr.rel (%p4743) target = $region168
        $region167: #{tpu_custom_call.1} parent=163 // pred_region
          %s4746 = sand.u32 %s478, 1
          %s4747 = scalar_lea.sflag [#allocation4], %s4746
          %s4748 = sand.u32 %s478, 1
          %s4749 = smul.addr %s4748, 160
          %s4750 = scalar_lea.vmem [#allocation25], %s4749
          %4751 = dma.done %s4747, 2560
        $region168: #{tpu_custom_call.1} parent=163 // pred_fallthru
          _
      $region164: #{tpu_custom_call.1} parent=5 // pred_fallthru
        _
    $region6: #{tpu_custom_call.1} parent=1 // loop_footer
      %s43 = sadd.s32 1, %s39
    $region7: #{tpu_custom_call.1} parent=1 // loop_footer_branch
      %38 = sbr.rel target = $region3
    $region8: #{tpu_custom_call.1} parent=1 // loop_exit
      _
    %4752 = vsyncpa [#allocation3], 1
    %s4753 = scalar_lea.sflag [#allocation3], 1
    %4754 = vsyncpa %s4753, 1
    %4755 = vsyncpa [#allocation6], 1
    %4756 = vsyncpa [#allocation9], 1
    %4757 = vsyncpa [#allocation12], 1
    %4758 = vsyncpa [#allocation15], 1
    %4759 = vsyncpa [#allocation18], 1
    %4760 = vsyncpa [#allocation21], 1
    %4761 = vsyncpa [#allocation24], 1
    %4762 = vsyncpa [#allocation4], 1
    %s4763 = scalar_lea.sflag [#allocation4], 1
    %4764 = vsyncpa %s4763, 1

</llo_original>
